<compile_context>
chip_gen: v7x
topology: tpu7x:2x2x1
jax: 0.10.0
libtpu: 0.0.40
codegen_flags: <defaults>
</compile_context>

<pallas_src>
import functools

import jax
import jax.numpy as jnp
from jax import lax
from jax.experimental import pallas as pl
from jax.experimental.pallas import tpu as pltpu

ANN_DIM = 58     # fixed by the module (self.annotation_dim = 58)
N_STEPS = 5      # fixed by the module (self.n_steps = 5)


# ----------------------------------------------------------------------------
# Kernel: one batch-tile of graphs per grid step.
# ----------------------------------------------------------------------------
def ggnn_kernel(
    a_ref, state_ref, ann_ref,
    w_su_ref, b_io_ref,                 # fused state-side (d,4d) + in/out bias
    w_a_ref, b_g_ref, w_st_ref,         # fused gate (2d,3d), gate bias, w_t[2d:]
    w_o1_ref, b_o1_ref, w_o2_ref, b_o2_ref,   # output head
    w_pack_ref, b_pack_ref,             # lane-dense [I | W_fc | 0] pack
    out_ref,
    *, use_vpu_adj,
):
    bt, n, d = state_ref.shape
    ann_dim = ann_ref.shape[2]
    ntot = bt * n

    # ---- hoisted, loop-invariant weight loads ----
    w_su = w_su_ref[...]                       # (d, 4d)
    w_a = w_a_ref[...]                         # (2d, 3d)
    w_st = w_st_ref[...]                       # (d, d)
    b_io = b_io_ref[...]                       # (1, 2d)  row-broadcast add
    b_g = b_g_ref[...]                         # (1, 3d)  row-broadcast add
    cd = w_su.dtype                            # MXU compute dtype

    def mm(x, w):
        # f32 accumulation; operands cast to the weight's (compute) dtype.
        return jnp.dot(x.astype(w.dtype), w, preferred_element_type=jnp.float32)

    # ---- adjacency, hoisted once (no per-step transpose / relayout) ----
    if use_vpu_adj:
        Af = a_ref[...].astype(jnp.float32)                       # (bt, n, n)
        # C_i[b,j,i] = A[b,i,j]  (for a_i);  C_o[b,j,i] = A[b,j,i]  (for a_o)
        AT_bc = jnp.broadcast_to(
            jnp.swapaxes(Af, 1, 2)[:, :, :, None], (bt, n, n, d))
        A_bc = jnp.broadcast_to(Af[:, :, :, None], (bt, n, n, d))
    else:
        A = a_ref[...]                                            # (bt, n, n)
        A_T = jnp.swapaxes(A, 1, 2)                               # hoisted once

    state0 = state_ref[...].reshape(ntot, d)   # f32

    # ---- 5 gated propagation steps ----
    def step(_, state):
        # One fused state-side matmul: [in_fc | out_fc | r_state | z_state].
        s4 = mm(state, w_su)                                      # (ntot, 4d)
        io = s4[:, :2 * d] + b_io                                 # + [b_in|b_out]
        rz_state = s4[:, 2 * d:]                                  # (ntot, 2d)
        in_sb = io[:, :d].reshape(bt, n, d)
        out_sb = io[:, d:].reshape(bt, n, d)

        if use_vpu_adj:
            # VPU broadcast-MAC; reduction over the neighbor axis is plain adds.
            a_i = jnp.sum(AT_bc * in_sb[:, :, None, :], axis=1)   # (bt, n, d)
            a_o = jnp.sum(A_bc * out_sb[:, :, None, :], axis=1)
        else:
            a_i = jnp.einsum('bij,bjd->bid', A, in_sb.astype(cd),
                             preferred_element_type=jnp.float32)
            a_o = jnp.einsum('bij,bjd->bid', A_T, out_sb.astype(cd),
                             preferred_element_type=jnp.float32)

        # One fused gate matmul (K = 2d) for the a-side of r / z / transform.
        aio = jnp.concatenate([a_i.reshape(ntot, d),
                               a_o.reshape(ntot, d)], axis=1)     # (ntot, 2d)
        g = mm(aio, w_a) + b_g                                    # (ntot, 3d)

        rz = jax.nn.sigmoid(g[:, :2 * d] + rz_state)
        r = rz[:, :d]
        z = rz[:, d:]
        h_hat = jnp.tanh(g[:, 2 * d:] + mm(r * state, w_st))
        return (1.0 - z) * state + z * h_hat                      # f32 VPU math

    state = lax.fori_loop(0, N_STEPS, step, state0, unroll=True)

    # ---- output head: one K = d+58 matmul -> tanh -> Linear(d -> d) ----
    ann2 = ann_ref[...].reshape(ntot, ann_dim)
    join = jnp.concatenate([state, ann2], axis=1)                 # (ntot, d+58)
    hid = jnp.tanh(mm(join, w_o1_ref[...]) + b_o1_ref[...])
    out = mm(hid, w_o2_ref[...]) + b_o2_ref[...]                  # (ntot, d)

    # ---- readout (sum over nodes) + classifier, packed lane-dense ----
    readout = jnp.sum(out.reshape(bt, n, d), axis=1)              # (bt, d)
    packed = jnp.dot(readout, w_pack_ref[...],
                     preferred_element_type=jnp.float32) + b_pack_ref[...]
    out_ref[0] = packed


# ----------------------------------------------------------------------------
# Tile selection: padding-aware VMEM model + MXU row-fill target.
# ----------------------------------------------------------------------------
def _round_up(x, m):
    return (x + m - 1) // m * m


def _estimate_vmem_bytes(bt, n, d, ann_dim, pack_w, a_bytes, use_vpu_adj):
    """(8,128)-padded, double-buffered pipeline blocks + weights + in-kernel
    f32 intermediates (conservative upper bound)."""
    f32 = 4
    n_s = _round_up(n, 8)
    lane = lambda x: _round_up(x, 128)
    # double-buffered per-grid-step blocks
    blocks = 2 * (bt * n_s * lane(n) * a_bytes              # A
                  + bt * n_s * lane(d) * f32                # prop_state
                  + bt * n_s * lane(ann_dim) * f32          # annotation
                  + _round_up(bt, 8) * lane(pack_w) * f32)  # packed output
    # weights (constant index_map; Pallas still double-buffers them -> x2)
    d128 = lane(d)
    w_words = (d * lane(4 * d) + lane(2 * d)                # w_su, b_io
               + 2 * d * lane(3 * d) + lane(3 * d)          # w_a, b_g
               + d * d128                                   # w_st
               + _round_up(d + ann_dim, 8) * d128 + d128    # w_o1, b_o1
               + d * d128 + d128                            # w_o2, b_o2
               + d * lane(pack_w) + lane(pack_w))           # w_pack, b_pack
    weights = 2 * w_words * f32
    # in-kernel f32 intermediates (state, s4, g, aio, rz, h_hat, ... ~8 slabs)
    inter = 8 * bt * n_s * lane(4 * d) * f32
    if use_vpu_adj:
        # two hoisted lane-broadcast adjacency tensors + one transient product
        inter += 3 * bt * n * n_s * lane(d) * f32
    return blocks + weights + inter + (1 << 20)   # +1 MiB slack


def _pick_batch_tile(B, n, d, ann_dim, pack_w, a_bytes, use_vpu_adj,
                     vmem_budget, target_rows=256):
    """Smallest divisor Bt of B with Bt*n >= target_rows (MXU row fill) that
    fits the padding-aware VMEM budget; otherwise the largest tile that fits.
    Among row-target tiles, prefer an even grid (v7x two-TC balance).  No
    grid>=2 constraint: on single-TC v5e/v6e the grid is just a serial loop."""
    divs = [bt for bt in range(1, B + 1) if B % bt == 0]
    fit = [bt for bt in divs
           if _estimate_vmem_bytes(bt, n, d, ann_dim, pack_w, a_bytes,
                                   use_vpu_adj) <= vmem_budget]
    if not fit:
        return 1
    good = [bt for bt in fit if bt * n >= target_rows]
    if not good:
        return max(fit)
    even = [bt for bt in good if (B // bt) % 2 == 0 or B // bt == 1]
    return min(even) if even else min(good)


# ----------------------------------------------------------------------------
# Wrapper
# ----------------------------------------------------------------------------
def ggnn_forward(prop_state, annotation, A, params, *, use_bf16=True,
                 batch_tile=None):
    """prop_state: (B, n, d) f32, annotation: (B, n, 58) f32, A: (B, n, n) f32."""
    B, n, d = prop_state.shape
    ann_dim = annotation.shape[2]
    nclass = params["w_fc"].shape[1]
    cd = jnp.bfloat16 if use_bf16 else jnp.float32
    f32 = jnp.float32
    pack_w = pl.cdiv(d + nclass, 128) * 128          # lane-dense output width

    # Small graphs: adjacency products run on the VPU, so A stays f32
    # end-to-end.  Large graphs: per-graph MXU einsums with A in compute dtype.
    use_vpu_adj = n <= 32
    a_dtype = f32 if use_vpu_adj else cd
    a_bytes = jnp.dtype(a_dtype).itemsize

    vmem_budget = 20 << 20     # selection budget; scoped limit is set to 32 MiB
    bt = batch_tile if batch_tile is not None else _pick_batch_tile(
        B, n, d, ann_dim, pack_w, a_bytes, use_vpu_adj, vmem_budget)
    assert B % bt == 0, "batch_tile must divide the batch size"
    G = B // bt

    # ---- weight fusion (once, in the wrapper; no in-kernel weight concats) ----
    w_r, w_z, w_t = params["w_r"], params["w_z"], params["w_t"]
    # state-side fused matmul: [in_fc | out_fc | r_state | z_state]  -> (d, 4d)
    w_su = jnp.concatenate([params["w_in"], params["w_out"],
                            w_r[2 * d:], w_z[2 * d:]], axis=1).astype(cd)
    b_io = jnp.concatenate([params["b_in"], params["b_out"]], axis=1).astype(f32)
    # adjacency-side gate weights: rows [a_i ; a_o], cols [r | z | t] -> (2d, 3d)
    w_a = jnp.concatenate([
        jnp.concatenate([w_r[:d], w_z[:d], w_t[:d]], axis=1),
        jnp.concatenate([w_r[d:2 * d], w_z[d:2 * d], w_t[d:2 * d]], axis=1),
    ], axis=0).astype(cd)
    b_g = jnp.concatenate([params["b_r"], params["b_z"], params["b_t"]],
                          axis=1).astype(f32)
    w_st = w_t[2 * d:].astype(cd)                                  # (d, d)
    # output head: one K = d+58 matmul on [state | annotation]
    w_o1 = jnp.concatenate([params["w_o1s"], params["w_o1a"]], axis=0).astype(cd)
    b_o1 = params["b_o1"].astype(f32)
    w_o2 = params["w_o2"].astype(cd)
    b_o2 = params["b_o2"].astype(f32)
    # Lane-dense pack matmul: readout @ [I | W_fc | 0] + [0 | b_fc | 0]  (f32)
    pad = pack_w - d - nclass
    w_pack = jnp.concatenate(
        [jnp.eye(d, dtype=f32), params["w_fc"].astype(f32),
         jnp.zeros((d, pad), f32)], axis=1)
    b_pack = jnp.concatenate(
        [jnp.zeros((1, d), f32), params["b_fc"].astype(f32),
         jnp.zeros((1, pad), f32)], axis=1)

    weights = [w_su, b_io, w_a, b_g, w_st,
               w_o1, b_o1, w_o2, b_o2, w_pack, b_pack]

    def wspec(x):
        # Constant-index (resident) weight blocks; ~0.3 MiB total, so the
        # default double buffering is negligible (Buffered(1) skipped).
        return pl.BlockSpec(x.shape, lambda b, nd=x.ndim: (0,) * nd)

    in_specs = [
        pl.BlockSpec((bt, n, n), lambda b: (b, 0, 0)),           # A
        pl.BlockSpec((bt, n, d), lambda b: (b, 0, 0)),           # prop_state
        pl.BlockSpec((bt, n, ann_dim), lambda b: (b, 0, 0)),     # annotation
    ] + [wspec(w) for w in weights]

    out_specs = pl.BlockSpec((1, bt, pack_w), lambda b: (b, 0, 0))
    out_shape = jax.ShapeDtypeStruct((G, bt, pack_w), f32)

    kernel = functools.partial(ggnn_kernel, use_vpu_adj=use_vpu_adj)
    packed = pl.pallas_call(
        kernel,
        grid=(G,),
        in_specs=in_specs,
        out_specs=out_specs,
        out_shape=out_shape,
        compiler_params=pltpu.CompilerParams(
            dimension_semantics=("parallel",),
            vmem_limit_bytes=32 * 1024 * 1024),
    )(A.astype(a_dtype), prop_state.astype(f32), annotation.astype(f32),
      *weights)

    packed = packed.reshape(B, pack_w)
    readout = packed[:, :d]
    result = packed[:, d:d + nclass]
    return result, readout


# ----------------------------------------------------------------------------
# Params + pure-JAX reference (matches the PyTorch forward exactly)
# ----------------------------------------------------------------------------
def init_params(key, d, nclass):
    """Weights ~ N(0, 0.02), biases = 0 (mirrors GGNN._initialization)."""
    ks = jax.random.split(key, 9)
    nrm = lambda k, shape: (0.02 * jax.random.normal(k, shape)).astype(jnp.float32)
    zeros = lambda shape: jnp.zeros(shape, jnp.float32)
    return {
        "w_in": nrm(ks[0], (d, d)), "b_in": zeros((1, d)),
        "w_out": nrm(ks[1], (d, d)), "b_out": zeros((1, d)),
        "w_r": nrm(ks[2], (3 * d, d)), "b_r": zeros((1, d)),
        "w_z": nrm(ks[3], (3 * d, d)), "b_z": zeros((1, d)),
        "w_t": nrm(ks[4], (3 * d, d)), "b_t": zeros((1, d)),
        "w_o1s": nrm(ks[5], (d, d)),
        "w_o1a": nrm(ks[6], (ANN_DIM, d)), "b_o1": zeros((1, d)),
        "w_o2": nrm(ks[7], (d, d)), "b_o2": zeros((1, d)),
        "w_fc": nrm(ks[8], (d, nclass)), "b_fc": zeros((1, nclass)),
    }


def ggnn_reference(prop_state, annotation, A, p):
    state = prop_state
    A_in = A
    A_out = jnp.transpose(A, (0, 2, 1))
    for _ in range(N_STEPS):
        in_s = state @ p["w_in"] + p["b_in"]
        out_s = state @ p["w_out"] + p["b_out"]
        a_i = A_in @ in_s
        a_o = A_out @ out_s
        a = jnp.concatenate([a_i, a_o, state], axis=2)
        r = jax.nn.sigmoid(a @ p["w_r"] + p["b_r"])
        z = jax.nn.sigmoid(a @ p["w_z"] + p["b_z"])
        joined = jnp.concatenate([a_i, a_o, r * state], axis=2)
        h_hat = jnp.tanh(joined @ p["w_t"] + p["b_t"])
        state = (1.0 - z) * state + z * h_hat
    join = jnp.concatenate([state, annotation], axis=2)
    w_o1 = jnp.concatenate([p["w_o1s"], p["w_o1a"]], axis=0)
    hid = jnp.tanh(join @ w_o1 + p["b_o1"])
    out = hid @ p["w_o2"] + p["b_o2"]
    readout = out.sum(1)
    result = readout @ p["w_fc"] + p["b_fc"]
    return result, readout


if __name__ == "__main__":
    B, n_node, hidden, nclass = 2, 8, 32, 6

    key = jax.random.PRNGKey(0)
    kp, k1, k2, k3 = jax.random.split(key, 4)

    params = init_params(kp, hidden, nclass)
    prop_state = jax.random.normal(k1, (B, n_node, hidden), jnp.float32)
    annotation = jax.random.normal(k2, (B, n_node, ANN_DIM), jnp.float32)
    A = jax.random.uniform(k3, (B, n_node, n_node), jnp.float32)

    ref_result, ref_readout = ggnn_reference(prop_state, annotation, A, params)

    # f32 path: tight check against the reference.
    result, readout = ggnn_forward(prop_state, annotation, A, params,
                                   use_bf16=False)
    jax.block_until_ready((result, readout))
    assert jnp.allclose(result, ref_result, atol=1e-4, rtol=1e-4), "result mismatch"
    assert jnp.allclose(readout, ref_readout, atol=1e-4, rtol=1e-4), "readout mismatch"

    # bf16 MXU-operand path (default; f32 accumulation + f32 gating): loose check.
    result_bf, readout_bf = ggnn_forward(prop_state, annotation, A, params,
                                         use_bf16=True)
    jax.block_until_ready((result_bf, readout_bf))
    assert jnp.allclose(result_bf, ref_result, atol=2e-2, rtol=5e-2), "bf16 result mismatch"
    assert jnp.allclose(readout_bf, ref_readout, atol=2e-2, rtol=5e-2), "bf16 readout mismatch"

    print("KERNEL_OK")
</pallas_src>

<mosaic_0001>
module attributes {stable_mosaic.version = 11 : i64} {
  func.func @ggnn_kernel(%arg0: i32, %arg1: memref<2x8x8xf32, #tpu.memory_space<vmem>>, %arg2: memref<2x8x32xf32, #tpu.memory_space<vmem>>, %arg3: memref<2x8x58xf32, #tpu.memory_space<vmem>>, %arg4: memref<32x128xf32, #tpu.memory_space<vmem>>, %arg5: memref<1x64xf32, #tpu.memory_space<vmem>>, %arg6: memref<64x96xf32, #tpu.memory_space<vmem>>, %arg7: memref<1x96xf32, #tpu.memory_space<vmem>>, %arg8: memref<32x32xf32, #tpu.memory_space<vmem>>, %arg9: memref<90x32xf32, #tpu.memory_space<vmem>>, %arg10: memref<1x32xf32, #tpu.memory_space<vmem>>, %arg11: memref<32x32xf32, #tpu.memory_space<vmem>>, %arg12: memref<1x32xf32, #tpu.memory_space<vmem>>, %arg13: memref<32x128xf32, #tpu.memory_space<vmem>>, %arg14: memref<1x128xf32, #tpu.memory_space<vmem>>, %arg15: memref<1x2x128xf32, #tpu.memory_space<vmem>>) attributes {dimension_semantics = [#tpu.dimension_semantics<parallel>], iteration_bounds = array<i64: 1>, scalar_prefetch = 0 : i64, scratch_operands = 0 : i64, tpu.core_type = #tpu.core_type<tc>, window_params = [{transform_indices = @transform_0, window_bounds = array<i64: 2, 8, 8>}, {transform_indices = @transform_1, window_bounds = array<i64: 2, 8, 32>}, {transform_indices = @transform_2, window_bounds = array<i64: 2, 8, 58>}, {pipeline_mode = #tpu.pipeline_mode<synchronous>, transform_indices = @transform_3, window_bounds = array<i64: 32, 128>}, {pipeline_mode = #tpu.pipeline_mode<synchronous>, transform_indices = @transform_4, window_bounds = array<i64: 1, 64>}, {pipeline_mode = #tpu.pipeline_mode<synchronous>, transform_indices = @transform_5, window_bounds = array<i64: 64, 96>}, {pipeline_mode = #tpu.pipeline_mode<synchronous>, transform_indices = @transform_6, window_bounds = array<i64: 1, 96>}, {pipeline_mode = #tpu.pipeline_mode<synchronous>, transform_indices = @transform_7, window_bounds = array<i64: 32, 32>}, {pipeline_mode = #tpu.pipeline_mode<synchronous>, transform_indices = @transform_8, window_bounds = array<i64: 90, 32>}, {pipeline_mode = #tpu.pipeline_mode<synchronous>, transform_indices = @transform_9, window_bounds = array<i64: 1, 32>}, {pipeline_mode = #tpu.pipeline_mode<synchronous>, transform_indices = @transform_10, window_bounds = array<i64: 32, 32>}, {pipeline_mode = #tpu.pipeline_mode<synchronous>, transform_indices = @transform_11, window_bounds = array<i64: 1, 32>}, {pipeline_mode = #tpu.pipeline_mode<synchronous>, transform_indices = @transform_12, window_bounds = array<i64: 32, 128>}, {pipeline_mode = #tpu.pipeline_mode<synchronous>, transform_indices = @transform_13, window_bounds = array<i64: 1, 128>}, {transform_indices = @transform_14, window_bounds = array<i64: 1, 2, 128>}]} {
    %c0 = arith.constant 0 : index
    %c0_0 = arith.constant 0 : index
    %0 = vector.load %arg4[%c0, %c0_0] : memref<32x128xf32, #tpu.memory_space<vmem>>, vector<32x128xf32>
    %c0_1 = arith.constant 0 : index
    %c0_2 = arith.constant 0 : index
    %1 = vector.load %arg6[%c0_1, %c0_2] : memref<64x96xf32, #tpu.memory_space<vmem>>, vector<64x96xf32>
    %c0_3 = arith.constant 0 : index
    %c0_4 = arith.constant 0 : index
    %2 = vector.load %arg8[%c0_3, %c0_4] : memref<32x32xf32, #tpu.memory_space<vmem>>, vector<32x32xf32>
    %c0_5 = arith.constant 0 : index
    %c0_6 = arith.constant 0 : index
    %3 = vector.load %arg5[%c0_5, %c0_6] : memref<1x64xf32, #tpu.memory_space<vmem>>, vector<1x64xf32>
    %c0_7 = arith.constant 0 : index
    %c0_8 = arith.constant 0 : index
    %4 = vector.load %arg7[%c0_7, %c0_8] : memref<1x96xf32, #tpu.memory_space<vmem>>, vector<1x96xf32>
    %c0_9 = arith.constant 0 : index
    %c0_10 = arith.constant 0 : index
    %c0_11 = arith.constant 0 : index
    %5 = vector.load %arg1[%c0_9, %c0_10, %c0_11] : memref<2x8x8xf32, #tpu.memory_space<vmem>>, vector<2x8x8xf32>
    %6 = tpu.transpose %5, [0, 2, 1] : vector<2x8x8xf32> -> vector<2x8x8xf32>
    %7 = vector.shape_cast %6 : vector<2x8x8xf32> to vector<2x8x8x1xf32>
    %8 = vector.shape_cast %7 : vector<2x8x8x1xf32> to vector<2x8x8x1xf32>
    %9 = vector.broadcast %8 : vector<2x8x8x1xf32> to vector<2x8x8x32xf32>
    %10 = vector.shape_cast %5 : vector<2x8x8xf32> to vector<2x8x8x1xf32>
    %11 = vector.shape_cast %10 : vector<2x8x8x1xf32> to vector<2x8x8x1xf32>
    %12 = vector.broadcast %11 : vector<2x8x8x1xf32> to vector<2x8x8x32xf32>
    %c0_12 = arith.constant 0 : index
    %c0_13 = arith.constant 0 : index
    %c0_14 = arith.constant 0 : index
    %13 = vector.load %arg2[%c0_12, %c0_13, %c0_14] : memref<2x8x32xf32, #tpu.memory_space<vmem>>, vector<2x8x32xf32>
    %14 = vector.shape_cast %13 : vector<2x8x32xf32> to vector<16x32xf32>
    %c0_i32 = arith.constant 0 : i32
    %cst = arith.constant dense<0.000000e+00> : vector<16x128xf32>
    %15 = tpu.matmul %14, %0, %cst {dimension_numbers = #tpu.dot_dimension_numbers<[1], [0], [0], [1], [0, 0, 1, 1], [], []>} : vector<16x32xf32>, vector<32x128xf32>, vector<16x128xf32> -> vector<16x128xf32>
    %16 = vector.extract_strided_slice %15 {offsets = [0, 0], sizes = [16, 64], strides = [1, 1]} : vector<16x128xf32> to vector<16x64xf32>
    %17 = vector.broadcast %3 : vector<1x64xf32> to vector<16x64xf32>
    %18 = arith.addf %16, %17 : vector<16x64xf32>
    %19 = vector.extract_strided_slice %15 {offsets = [0, 64], sizes = [16, 64], strides = [1, 1]} : vector<16x128xf32> to vector<16x64xf32>
    %20 = vector.extract_strided_slice %18 {offsets = [0, 0], sizes = [16, 32], strides = [1, 1]} : vector<16x64xf32> to vector<16x32xf32>
    %21 = vector.shape_cast %20 : vector<16x32xf32> to vector<2x8x32xf32>
    %22 = vector.extract_strided_slice %18 {offsets = [0, 32], sizes = [16, 32], strides = [1, 1]} : vector<16x64xf32> to vector<16x32xf32>
    %23 = vector.shape_cast %22 : vector<16x32xf32> to vector<2x8x32xf32>
    %24 = vector.shape_cast %21 : vector<2x8x32xf32> to vector<2x8x1x32xf32>
    %25 = vector.broadcast %24 : vector<2x8x1x32xf32> to vector<2x8x8x32xf32>
    %26 = arith.mulf %9, %25 : vector<2x8x8x32xf32>
    %cst_15 = arith.constant dense<0.000000e+00> : vector<2x8x32xf32>
    %27 = vector.multi_reduction <add>, %26, %cst_15 [1] : vector<2x8x8x32xf32> to vector<2x8x32xf32>
    %28 = vector.shape_cast %23 : vector<2x8x32xf32> to vector<2x8x1x32xf32>
    %29 = vector.broadcast %28 : vector<2x8x1x32xf32> to vector<2x8x8x32xf32>
    %30 = arith.mulf %12, %29 : vector<2x8x8x32xf32>
    %cst_16 = arith.constant dense<0.000000e+00> : vector<2x8x32xf32>
    %31 = vector.multi_reduction <add>, %30, %cst_16 [1] : vector<2x8x8x32xf32> to vector<2x8x32xf32>
    %32 = vector.shape_cast %27 : vector<2x8x32xf32> to vector<16x32xf32>
    %33 = vector.shape_cast %31 : vector<2x8x32xf32> to vector<16x32xf32>
    %34 = tpu.concatenate %32, %33 in 1 : vector<16x32xf32>, vector<16x32xf32> -> vector<16x64xf32>
    %cst_17 = arith.constant dense<0.000000e+00> : vector<16x96xf32>
    %35 = tpu.matmul %34, %1, %cst_17 {dimension_numbers = #tpu.dot_dimension_numbers<[1], [0], [0], [1], [0, 0, 1, 1], [], []>} : vector<16x64xf32>, vector<64x96xf32>, vector<16x96xf32> -> vector<16x96xf32>
    %36 = vector.broadcast %4 : vector<1x96xf32> to vector<16x96xf32>
    %37 = arith.addf %35, %36 : vector<16x96xf32>
    %38 = vector.extract_strided_slice %37 {offsets = [0, 0], sizes = [16, 64], strides = [1, 1]} : vector<16x96xf32> to vector<16x64xf32>
    %39 = arith.addf %38, %19 : vector<16x64xf32>
    %40 = arith.negf %39 : vector<16x64xf32>
    %41 = math.exp %40 : vector<16x64xf32>
    %cst_18 = arith.constant 1.000000e+00 : f32
    %42 = vector.broadcast %cst_18 : f32 to vector<16x64xf32>
    %43 = arith.addf %42, %41 : vector<16x64xf32>
    %44 = arith.divf %42, %43 : vector<16x64xf32>
    %45 = vector.extract_strided_slice %44 {offsets = [0, 0], sizes = [16, 32], strides = [1, 1]} : vector<16x64xf32> to vector<16x32xf32>
    %46 = vector.extract_strided_slice %44 {offsets = [0, 32], sizes = [16, 32], strides = [1, 1]} : vector<16x64xf32> to vector<16x32xf32>
    %47 = vector.extract_strided_slice %37 {offsets = [0, 64], sizes = [16, 32], strides = [1, 1]} : vector<16x96xf32> to vector<16x32xf32>
    %48 = arith.mulf %45, %14 : vector<16x32xf32>
    %cst_19 = arith.constant dense<0.000000e+00> : vector<16x32xf32>
    %49 = tpu.matmul %48, %2, %cst_19 {dimension_numbers = #tpu.dot_dimension_numbers<[1], [0], [0], [1], [0, 0, 1, 1], [], []>} : vector<16x32xf32>, vector<32x32xf32>, vector<16x32xf32> -> vector<16x32xf32>
    %50 = arith.addf %47, %49 : vector<16x32xf32>
    %51 = math.tanh %50 : vector<16x32xf32>
    %cst_20 = arith.constant 1.000000e+00 : f32
    %52 = vector.broadcast %cst_20 : f32 to vector<16x32xf32>
    %53 = arith.subf %52, %46 : vector<16x32xf32>
    %54 = arith.mulf %53, %14 : vector<16x32xf32>
    %55 = arith.mulf %46, %51 : vector<16x32xf32>
    %56 = arith.addf %54, %55 : vector<16x32xf32>
    %c1_i32 = arith.constant 1 : i32
    %cst_21 = arith.constant dense<0.000000e+00> : vector<16x128xf32>
    %57 = tpu.matmul %56, %0, %cst_21 {dimension_numbers = #tpu.dot_dimension_numbers<[1], [0], [0], [1], [0, 0, 1, 1], [], []>} : vector<16x32xf32>, vector<32x128xf32>, vector<16x128xf32> -> vector<16x128xf32>
    %58 = vector.extract_strided_slice %57 {offsets = [0, 0], sizes = [16, 64], strides = [1, 1]} : vector<16x128xf32> to vector<16x64xf32>
    %59 = vector.broadcast %3 : vector<1x64xf32> to vector<16x64xf32>
    %60 = arith.addf %58, %59 : vector<16x64xf32>
    %61 = vector.extract_strided_slice %57 {offsets = [0, 64], sizes = [16, 64], strides = [1, 1]} : vector<16x128xf32> to vector<16x64xf32>
    %62 = vector.extract_strided_slice %60 {offsets = [0, 0], sizes = [16, 32], strides = [1, 1]} : vector<16x64xf32> to vector<16x32xf32>
    %63 = vector.shape_cast %62 : vector<16x32xf32> to vector<2x8x32xf32>
    %64 = vector.extract_strided_slice %60 {offsets = [0, 32], sizes = [16, 32], strides = [1, 1]} : vector<16x64xf32> to vector<16x32xf32>
    %65 = vector.shape_cast %64 : vector<16x32xf32> to vector<2x8x32xf32>
    %66 = vector.shape_cast %63 : vector<2x8x32xf32> to vector<2x8x1x32xf32>
    %67 = vector.broadcast %66 : vector<2x8x1x32xf32> to vector<2x8x8x32xf32>
    %68 = arith.mulf %9, %67 : vector<2x8x8x32xf32>
    %cst_22 = arith.constant dense<0.000000e+00> : vector<2x8x32xf32>
    %69 = vector.multi_reduction <add>, %68, %cst_22 [1] : vector<2x8x8x32xf32> to vector<2x8x32xf32>
    %70 = vector.shape_cast %65 : vector<2x8x32xf32> to vector<2x8x1x32xf32>
    %71 = vector.broadcast %70 : vector<2x8x1x32xf32> to vector<2x8x8x32xf32>
    %72 = arith.mulf %12, %71 : vector<2x8x8x32xf32>
    %cst_23 = arith.constant dense<0.000000e+00> : vector<2x8x32xf32>
    %73 = vector.multi_reduction <add>, %72, %cst_23 [1] : vector<2x8x8x32xf32> to vector<2x8x32xf32>
    %74 = vector.shape_cast %69 : vector<2x8x32xf32> to vector<16x32xf32>
    %75 = vector.shape_cast %73 : vector<2x8x32xf32> to vector<16x32xf32>
    %76 = tpu.concatenate %74, %75 in 1 : vector<16x32xf32>, vector<16x32xf32> -> vector<16x64xf32>
    %cst_24 = arith.constant dense<0.000000e+00> : vector<16x96xf32>
    %77 = tpu.matmul %76, %1, %cst_24 {dimension_numbers = #tpu.dot_dimension_numbers<[1], [0], [0], [1], [0, 0, 1, 1], [], []>} : vector<16x64xf32>, vector<64x96xf32>, vector<16x96xf32> -> vector<16x96xf32>
    %78 = vector.broadcast %4 : vector<1x96xf32> to vector<16x96xf32>
    %79 = arith.addf %77, %78 : vector<16x96xf32>
    %80 = vector.extract_strided_slice %79 {offsets = [0, 0], sizes = [16, 64], strides = [1, 1]} : vector<16x96xf32> to vector<16x64xf32>
    %81 = arith.addf %80, %61 : vector<16x64xf32>
    %82 = arith.negf %81 : vector<16x64xf32>
    %83 = math.exp %82 : vector<16x64xf32>
    %cst_25 = arith.constant 1.000000e+00 : f32
    %84 = vector.broadcast %cst_25 : f32 to vector<16x64xf32>
    %85 = arith.addf %84, %83 : vector<16x64xf32>
    %86 = arith.divf %84, %85 : vector<16x64xf32>
    %87 = vector.extract_strided_slice %86 {offsets = [0, 0], sizes = [16, 32], strides = [1, 1]} : vector<16x64xf32> to vector<16x32xf32>
    %88 = vector.extract_strided_slice %86 {offsets = [0, 32], sizes = [16, 32], strides = [1, 1]} : vector<16x64xf32> to vector<16x32xf32>
    %89 = vector.extract_strided_slice %79 {offsets = [0, 64], sizes = [16, 32], strides = [1, 1]} : vector<16x96xf32> to vector<16x32xf32>
    %90 = arith.mulf %87, %56 : vector<16x32xf32>
    %cst_26 = arith.constant dense<0.000000e+00> : vector<16x32xf32>
    %91 = tpu.matmul %90, %2, %cst_26 {dimension_numbers = #tpu.dot_dimension_numbers<[1], [0], [0], [1], [0, 0, 1, 1], [], []>} : vector<16x32xf32>, vector<32x32xf32>, vector<16x32xf32> -> vector<16x32xf32>
    %92 = arith.addf %89, %91 : vector<16x32xf32>
    %93 = math.tanh %92 : vector<16x32xf32>
    %cst_27 = arith.constant 1.000000e+00 : f32
    %94 = vector.broadcast %cst_27 : f32 to vector<16x32xf32>
    %95 = arith.subf %94, %88 : vector<16x32xf32>
    %96 = arith.mulf %95, %56 : vector<16x32xf32>
    %97 = arith.mulf %88, %93 : vector<16x32xf32>
    %98 = arith.addf %96, %97 : vector<16x32xf32>
    %c2_i32 = arith.constant 2 : i32
    %cst_28 = arith.constant dense<0.000000e+00> : vector<16x128xf32>
    %99 = tpu.matmul %98, %0, %cst_28 {dimension_numbers = #tpu.dot_dimension_numbers<[1], [0], [0], [1], [0, 0, 1, 1], [], []>} : vector<16x32xf32>, vector<32x128xf32>, vector<16x128xf32> -> vector<16x128xf32>
    %100 = vector.extract_strided_slice %99 {offsets = [0, 0], sizes = [16, 64], strides = [1, 1]} : vector<16x128xf32> to vector<16x64xf32>
    %101 = vector.broadcast %3 : vector<1x64xf32> to vector<16x64xf32>
    %102 = arith.addf %100, %101 : vector<16x64xf32>
    %103 = vector.extract_strided_slice %99 {offsets = [0, 64], sizes = [16, 64], strides = [1, 1]} : vector<16x128xf32> to vector<16x64xf32>
    %104 = vector.extract_strided_slice %102 {offsets = [0, 0], sizes = [16, 32], strides = [1, 1]} : vector<16x64xf32> to vector<16x32xf32>
    %105 = vector.shape_cast %104 : vector<16x32xf32> to vector<2x8x32xf32>
    %106 = vector.extract_strided_slice %102 {offsets = [0, 32], sizes = [16, 32], strides = [1, 1]} : vector<16x64xf32> to vector<16x32xf32>
    %107 = vector.shape_cast %106 : vector<16x32xf32> to vector<2x8x32xf32>
    %108 = vector.shape_cast %105 : vector<2x8x32xf32> to vector<2x8x1x32xf32>
    %109 = vector.broadcast %108 : vector<2x8x1x32xf32> to vector<2x8x8x32xf32>
    %110 = arith.mulf %9, %109 : vector<2x8x8x32xf32>
    %cst_29 = arith.constant dense<0.000000e+00> : vector<2x8x32xf32>
    %111 = vector.multi_reduction <add>, %110, %cst_29 [1] : vector<2x8x8x32xf32> to vector<2x8x32xf32>
    %112 = vector.shape_cast %107 : vector<2x8x32xf32> to vector<2x8x1x32xf32>
    %113 = vector.broadcast %112 : vector<2x8x1x32xf32> to vector<2x8x8x32xf32>
    %114 = arith.mulf %12, %113 : vector<2x8x8x32xf32>
    %cst_30 = arith.constant dense<0.000000e+00> : vector<2x8x32xf32>
    %115 = vector.multi_reduction <add>, %114, %cst_30 [1] : vector<2x8x8x32xf32> to vector<2x8x32xf32>
    %116 = vector.shape_cast %111 : vector<2x8x32xf32> to vector<16x32xf32>
    %117 = vector.shape_cast %115 : vector<2x8x32xf32> to vector<16x32xf32>
    %118 = tpu.concatenate %116, %117 in 1 : vector<16x32xf32>, vector<16x32xf32> -> vector<16x64xf32>
    %cst_31 = arith.constant dense<0.000000e+00> : vector<16x96xf32>
    %119 = tpu.matmul %118, %1, %cst_31 {dimension_numbers = #tpu.dot_dimension_numbers<[1], [0], [0], [1], [0, 0, 1, 1], [], []>} : vector<16x64xf32>, vector<64x96xf32>, vector<16x96xf32> -> vector<16x96xf32>
    %120 = vector.broadcast %4 : vector<1x96xf32> to vector<16x96xf32>
    %121 = arith.addf %119, %120 : vector<16x96xf32>
    %122 = vector.extract_strided_slice %121 {offsets = [0, 0], sizes = [16, 64], strides = [1, 1]} : vector<16x96xf32> to vector<16x64xf32>
    %123 = arith.addf %122, %103 : vector<16x64xf32>
    %124 = arith.negf %123 : vector<16x64xf32>
    %125 = math.exp %124 : vector<16x64xf32>
    %cst_32 = arith.constant 1.000000e+00 : f32
    %126 = vector.broadcast %cst_32 : f32 to vector<16x64xf32>
    %127 = arith.addf %126, %125 : vector<16x64xf32>
    %128 = arith.divf %126, %127 : vector<16x64xf32>
    %129 = vector.extract_strided_slice %128 {offsets = [0, 0], sizes = [16, 32], strides = [1, 1]} : vector<16x64xf32> to vector<16x32xf32>
    %130 = vector.extract_strided_slice %128 {offsets = [0, 32], sizes = [16, 32], strides = [1, 1]} : vector<16x64xf32> to vector<16x32xf32>
    %131 = vector.extract_strided_slice %121 {offsets = [0, 64], sizes = [16, 32], strides = [1, 1]} : vector<16x96xf32> to vector<16x32xf32>
    %132 = arith.mulf %129, %98 : vector<16x32xf32>
    %cst_33 = arith.constant dense<0.000000e+00> : vector<16x32xf32>
    %133 = tpu.matmul %132, %2, %cst_33 {dimension_numbers = #tpu.dot_dimension_numbers<[1], [0], [0], [1], [0, 0, 1, 1], [], []>} : vector<16x32xf32>, vector<32x32xf32>, vector<16x32xf32> -> vector<16x32xf32>
    %134 = arith.addf %131, %133 : vector<16x32xf32>
    %135 = math.tanh %134 : vector<16x32xf32>
    %cst_34 = arith.constant 1.000000e+00 : f32
    %136 = vector.broadcast %cst_34 : f32 to vector<16x32xf32>
    %137 = arith.subf %136, %130 : vector<16x32xf32>
    %138 = arith.mulf %137, %98 : vector<16x32xf32>
    %139 = arith.mulf %130, %135 : vector<16x32xf32>
    %140 = arith.addf %138, %139 : vector<16x32xf32>
    %c3_i32 = arith.constant 3 : i32
    %cst_35 = arith.constant dense<0.000000e+00> : vector<16x128xf32>
    %141 = tpu.matmul %140, %0, %cst_35 {dimension_numbers = #tpu.dot_dimension_numbers<[1], [0], [0], [1], [0, 0, 1, 1], [], []>} : vector<16x32xf32>, vector<32x128xf32>, vector<16x128xf32> -> vector<16x128xf32>
    %142 = vector.extract_strided_slice %141 {offsets = [0, 0], sizes = [16, 64], strides = [1, 1]} : vector<16x128xf32> to vector<16x64xf32>
    %143 = vector.broadcast %3 : vector<1x64xf32> to vector<16x64xf32>
    %144 = arith.addf %142, %143 : vector<16x64xf32>
    %145 = vector.extract_strided_slice %141 {offsets = [0, 64], sizes = [16, 64], strides = [1, 1]} : vector<16x128xf32> to vector<16x64xf32>
    %146 = vector.extract_strided_slice %144 {offsets = [0, 0], sizes = [16, 32], strides = [1, 1]} : vector<16x64xf32> to vector<16x32xf32>
    %147 = vector.shape_cast %146 : vector<16x32xf32> to vector<2x8x32xf32>
    %148 = vector.extract_strided_slice %144 {offsets = [0, 32], sizes = [16, 32], strides = [1, 1]} : vector<16x64xf32> to vector<16x32xf32>
    %149 = vector.shape_cast %148 : vector<16x32xf32> to vector<2x8x32xf32>
    %150 = vector.shape_cast %147 : vector<2x8x32xf32> to vector<2x8x1x32xf32>
    %151 = vector.broadcast %150 : vector<2x8x1x32xf32> to vector<2x8x8x32xf32>
    %152 = arith.mulf %9, %151 : vector<2x8x8x32xf32>
    %cst_36 = arith.constant dense<0.000000e+00> : vector<2x8x32xf32>
    %153 = vector.multi_reduction <add>, %152, %cst_36 [1] : vector<2x8x8x32xf32> to vector<2x8x32xf32>
    %154 = vector.shape_cast %149 : vector<2x8x32xf32> to vector<2x8x1x32xf32>
    %155 = vector.broadcast %154 : vector<2x8x1x32xf32> to vector<2x8x8x32xf32>
    %156 = arith.mulf %12, %155 : vector<2x8x8x32xf32>
    %cst_37 = arith.constant dense<0.000000e+00> : vector<2x8x32xf32>
    %157 = vector.multi_reduction <add>, %156, %cst_37 [1] : vector<2x8x8x32xf32> to vector<2x8x32xf32>
    %158 = vector.shape_cast %153 : vector<2x8x32xf32> to vector<16x32xf32>
    %159 = vector.shape_cast %157 : vector<2x8x32xf32> to vector<16x32xf32>
    %160 = tpu.concatenate %158, %159 in 1 : vector<16x32xf32>, vector<16x32xf32> -> vector<16x64xf32>
    %cst_38 = arith.constant dense<0.000000e+00> : vector<16x96xf32>
    %161 = tpu.matmul %160, %1, %cst_38 {dimension_numbers = #tpu.dot_dimension_numbers<[1], [0], [0], [1], [0, 0, 1, 1], [], []>} : vector<16x64xf32>, vector<64x96xf32>, vector<16x96xf32> -> vector<16x96xf32>
    %162 = vector.broadcast %4 : vector<1x96xf32> to vector<16x96xf32>
    %163 = arith.addf %161, %162 : vector<16x96xf32>
    %164 = vector.extract_strided_slice %163 {offsets = [0, 0], sizes = [16, 64], strides = [1, 1]} : vector<16x96xf32> to vector<16x64xf32>
    %165 = arith.addf %164, %145 : vector<16x64xf32>
    %166 = arith.negf %165 : vector<16x64xf32>
    %167 = math.exp %166 : vector<16x64xf32>
    %cst_39 = arith.constant 1.000000e+00 : f32
    %168 = vector.broadcast %cst_39 : f32 to vector<16x64xf32>
    %169 = arith.addf %168, %167 : vector<16x64xf32>
    %170 = arith.divf %168, %169 : vector<16x64xf32>
    %171 = vector.extract_strided_slice %170 {offsets = [0, 0], sizes = [16, 32], strides = [1, 1]} : vector<16x64xf32> to vector<16x32xf32>
    %172 = vector.extract_strided_slice %170 {offsets = [0, 32], sizes = [16, 32], strides = [1, 1]} : vector<16x64xf32> to vector<16x32xf32>
    %173 = vector.extract_strided_slice %163 {offsets = [0, 64], sizes = [16, 32], strides = [1, 1]} : vector<16x96xf32> to vector<16x32xf32>
    %174 = arith.mulf %171, %140 : vector<16x32xf32>
    %cst_40 = arith.constant dense<0.000000e+00> : vector<16x32xf32>
    %175 = tpu.matmul %174, %2, %cst_40 {dimension_numbers = #tpu.dot_dimension_numbers<[1], [0], [0], [1], [0, 0, 1, 1], [], []>} : vector<16x32xf32>, vector<32x32xf32>, vector<16x32xf32> -> vector<16x32xf32>
    %176 = arith.addf %173, %175 : vector<16x32xf32>
    %177 = math.tanh %176 : vector<16x32xf32>
    %cst_41 = arith.constant 1.000000e+00 : f32
    %178 = vector.broadcast %cst_41 : f32 to vector<16x32xf32>
    %179 = arith.subf %178, %172 : vector<16x32xf32>
    %180 = arith.mulf %179, %140 : vector<16x32xf32>
    %181 = arith.mulf %172, %177 : vector<16x32xf32>
    %182 = arith.addf %180, %181 : vector<16x32xf32>
    %c4_i32 = arith.constant 4 : i32
    %cst_42 = arith.constant dense<0.000000e+00> : vector<16x128xf32>
    %183 = tpu.matmul %182, %0, %cst_42 {dimension_numbers = #tpu.dot_dimension_numbers<[1], [0], [0], [1], [0, 0, 1, 1], [], []>} : vector<16x32xf32>, vector<32x128xf32>, vector<16x128xf32> -> vector<16x128xf32>
    %184 = vector.extract_strided_slice %183 {offsets = [0, 0], sizes = [16, 64], strides = [1, 1]} : vector<16x128xf32> to vector<16x64xf32>
    %185 = vector.broadcast %3 : vector<1x64xf32> to vector<16x64xf32>
    %186 = arith.addf %184, %185 : vector<16x64xf32>
    %187 = vector.extract_strided_slice %183 {offsets = [0, 64], sizes = [16, 64], strides = [1, 1]} : vector<16x128xf32> to vector<16x64xf32>
    %188 = vector.extract_strided_slice %186 {offsets = [0, 0], sizes = [16, 32], strides = [1, 1]} : vector<16x64xf32> to vector<16x32xf32>
    %189 = vector.shape_cast %188 : vector<16x32xf32> to vector<2x8x32xf32>
    %190 = vector.extract_strided_slice %186 {offsets = [0, 32], sizes = [16, 32], strides = [1, 1]} : vector<16x64xf32> to vector<16x32xf32>
    %191 = vector.shape_cast %190 : vector<16x32xf32> to vector<2x8x32xf32>
    %192 = vector.shape_cast %189 : vector<2x8x32xf32> to vector<2x8x1x32xf32>
    %193 = vector.broadcast %192 : vector<2x8x1x32xf32> to vector<2x8x8x32xf32>
    %194 = arith.mulf %9, %193 : vector<2x8x8x32xf32>
    %cst_43 = arith.constant dense<0.000000e+00> : vector<2x8x32xf32>
    %195 = vector.multi_reduction <add>, %194, %cst_43 [1] : vector<2x8x8x32xf32> to vector<2x8x32xf32>
    %196 = vector.shape_cast %191 : vector<2x8x32xf32> to vector<2x8x1x32xf32>
    %197 = vector.broadcast %196 : vector<2x8x1x32xf32> to vector<2x8x8x32xf32>
    %198 = arith.mulf %12, %197 : vector<2x8x8x32xf32>
    %cst_44 = arith.constant dense<0.000000e+00> : vector<2x8x32xf32>
    %199 = vector.multi_reduction <add>, %198, %cst_44 [1] : vector<2x8x8x32xf32> to vector<2x8x32xf32>
    %200 = vector.shape_cast %195 : vector<2x8x32xf32> to vector<16x32xf32>
    %201 = vector.shape_cast %199 : vector<2x8x32xf32> to vector<16x32xf32>
    %202 = tpu.concatenate %200, %201 in 1 : vector<16x32xf32>, vector<16x32xf32> -> vector<16x64xf32>
    %cst_45 = arith.constant dense<0.000000e+00> : vector<16x96xf32>
    %203 = tpu.matmul %202, %1, %cst_45 {dimension_numbers = #tpu.dot_dimension_numbers<[1], [0], [0], [1], [0, 0, 1, 1], [], []>} : vector<16x64xf32>, vector<64x96xf32>, vector<16x96xf32> -> vector<16x96xf32>
    %204 = vector.broadcast %4 : vector<1x96xf32> to vector<16x96xf32>
    %205 = arith.addf %203, %204 : vector<16x96xf32>
    %206 = vector.extract_strided_slice %205 {offsets = [0, 0], sizes = [16, 64], strides = [1, 1]} : vector<16x96xf32> to vector<16x64xf32>
    %207 = arith.addf %206, %187 : vector<16x64xf32>
    %208 = arith.negf %207 : vector<16x64xf32>
    %209 = math.exp %208 : vector<16x64xf32>
    %cst_46 = arith.constant 1.000000e+00 : f32
    %210 = vector.broadcast %cst_46 : f32 to vector<16x64xf32>
    %211 = arith.addf %210, %209 : vector<16x64xf32>
    %212 = arith.divf %210, %211 : vector<16x64xf32>
    %213 = vector.extract_strided_slice %212 {offsets = [0, 0], sizes = [16, 32], strides = [1, 1]} : vector<16x64xf32> to vector<16x32xf32>
    %214 = vector.extract_strided_slice %212 {offsets = [0, 32], sizes = [16, 32], strides = [1, 1]} : vector<16x64xf32> to vector<16x32xf32>
    %215 = vector.extract_strided_slice %205 {offsets = [0, 64], sizes = [16, 32], strides = [1, 1]} : vector<16x96xf32> to vector<16x32xf32>
    %216 = arith.mulf %213, %182 : vector<16x32xf32>
    %cst_47 = arith.constant dense<0.000000e+00> : vector<16x32xf32>
    %217 = tpu.matmul %216, %2, %cst_47 {dimension_numbers = #tpu.dot_dimension_numbers<[1], [0], [0], [1], [0, 0, 1, 1], [], []>} : vector<16x32xf32>, vector<32x32xf32>, vector<16x32xf32> -> vector<16x32xf32>
    %218 = arith.addf %215, %217 : vector<16x32xf32>
    %219 = math.tanh %218 : vector<16x32xf32>
    %cst_48 = arith.constant 1.000000e+00 : f32
    %220 = vector.broadcast %cst_48 : f32 to vector<16x32xf32>
    %221 = arith.subf %220, %214 : vector<16x32xf32>
    %222 = arith.mulf %221, %182 : vector<16x32xf32>
    %223 = arith.mulf %214, %219 : vector<16x32xf32>
    %224 = arith.addf %222, %223 : vector<16x32xf32>
    %c0_49 = arith.constant 0 : index
    %c0_50 = arith.constant 0 : index
    %c0_51 = arith.constant 0 : index
    %225 = vector.load %arg3[%c0_49, %c0_50, %c0_51] : memref<2x8x58xf32, #tpu.memory_space<vmem>>, vector<2x8x58xf32>
    %226 = vector.shape_cast %225 : vector<2x8x58xf32> to vector<16x58xf32>
    %227 = tpu.concatenate %224, %226 in 1 : vector<16x32xf32>, vector<16x58xf32> -> vector<16x90xf32>
    %c0_52 = arith.constant 0 : index
    %c0_53 = arith.constant 0 : index
    %228 = vector.load %arg9[%c0_52, %c0_53] : memref<90x32xf32, #tpu.memory_space<vmem>>, vector<90x32xf32>
    %cst_54 = arith.constant dense<0.000000e+00> : vector<16x32xf32>
    %229 = tpu.matmul %227, %228, %cst_54 {dimension_numbers = #tpu.dot_dimension_numbers<[1], [0], [0], [1], [0, 0, 1, 1], [], []>} : vector<16x90xf32>, vector<90x32xf32>, vector<16x32xf32> -> vector<16x32xf32>
    %c0_55 = arith.constant 0 : index
    %c0_56 = arith.constant 0 : index
    %230 = vector.load %arg10[%c0_55, %c0_56] : memref<1x32xf32, #tpu.memory_space<vmem>>, vector<1x32xf32>
    %231 = vector.broadcast %230 : vector<1x32xf32> to vector<16x32xf32>
    %232 = arith.addf %229, %231 : vector<16x32xf32>
    %233 = math.tanh %232 : vector<16x32xf32>
    %c0_57 = arith.constant 0 : index
    %c0_58 = arith.constant 0 : index
    %234 = vector.load %arg11[%c0_57, %c0_58] : memref<32x32xf32, #tpu.memory_space<vmem>>, vector<32x32xf32>
    %cst_59 = arith.constant dense<0.000000e+00> : vector<16x32xf32>
    %235 = tpu.matmul %233, %234, %cst_59 {dimension_numbers = #tpu.dot_dimension_numbers<[1], [0], [0], [1], [0, 0, 1, 1], [], []>} : vector<16x32xf32>, vector<32x32xf32>, vector<16x32xf32> -> vector<16x32xf32>
    %c0_60 = arith.constant 0 : index
    %c0_61 = arith.constant 0 : index
    %236 = vector.load %arg12[%c0_60, %c0_61] : memref<1x32xf32, #tpu.memory_space<vmem>>, vector<1x32xf32>
    %237 = vector.broadcast %236 : vector<1x32xf32> to vector<16x32xf32>
    %238 = arith.addf %235, %237 : vector<16x32xf32>
    %239 = vector.shape_cast %238 : vector<16x32xf32> to vector<2x8x32xf32>
    %cst_62 = arith.constant dense<0.000000e+00> : vector<2x32xf32>
    %240 = vector.multi_reduction <add>, %239, %cst_62 [1] : vector<2x8x32xf32> to vector<2x32xf32>
    %c0_63 = arith.constant 0 : index
    %c0_64 = arith.constant 0 : index
    %241 = vector.load %arg13[%c0_63, %c0_64] : memref<32x128xf32, #tpu.memory_space<vmem>>, vector<32x128xf32>
    %cst_65 = arith.constant dense<0.000000e+00> : vector<2x128xf32>
    %242 = tpu.matmul %240, %241, %cst_65 {dimension_numbers = #tpu.dot_dimension_numbers<[1], [0], [0], [1], [0, 0, 1, 1], [], []>} : vector<2x32xf32>, vector<32x128xf32>, vector<2x128xf32> -> vector<2x128xf32>
    %c0_66 = arith.constant 0 : index
    %c0_67 = arith.constant 0 : index
    %243 = vector.load %arg14[%c0_66, %c0_67] : memref<1x128xf32, #tpu.memory_space<vmem>>, vector<1x128xf32>
    %244 = vector.broadcast %243 : vector<1x128xf32> to vector<2x128xf32>
    %245 = arith.addf %242, %244 : vector<2x128xf32>
    %c0_68 = arith.constant 0 : index
    %c0_69 = arith.constant 0 : index
    %c0_70 = arith.constant 0 : index
    %246 = vector.load %arg15[%c0_68, %c0_69, %c0_70] : memref<1x2x128xf32, #tpu.memory_space<vmem>>, vector<1x2x128xf32>
    %247 = vector.shape_cast %246 : vector<1x2x128xf32> to vector<2x128xf32>
    %248 = vector.shape_cast %245 : vector<2x128xf32> to vector<1x2x128xf32>
    tpu.vector_store %arg15[%c0_68, %c0_69, %c0_70], %248 {strides = array<i32>} : memref<1x2x128xf32, #tpu.memory_space<vmem>>, vector<1x2x128xf32>,
    return
  }
  func.func @transform_0(%arg0: i32) -> (i32, i32, i32) {
    %c0_i32 = arith.constant 0 : i32
    %c0_i32_0 = arith.constant 0 : i32
    %c0_i32_1 = arith.constant 0 : i32
    return %arg0, %c0_i32, %c0_i32_0 : i32, i32, i32
  }
  func.func @transform_1(%arg0: i32) -> (i32, i32, i32) {
    %c0_i32 = arith.constant 0 : i32
    %c0_i32_0 = arith.constant 0 : i32
    %c0_i32_1 = arith.constant 0 : i32
    return %arg0, %c0_i32, %c0_i32_0 : i32, i32, i32
  }
  func.func @transform_2(%arg0: i32) -> (i32, i32, i32) {
    %c0_i32 = arith.constant 0 : i32
    %c0_i32_0 = arith.constant 0 : i32
    %c0_i32_1 = arith.constant 0 : i32
    return %arg0, %c0_i32, %c0_i32_0 : i32, i32, i32
  }
  func.func @transform_3(%arg0: i32) -> (i32, i32) {
    %c0_i32 = arith.constant 0 : i32
    %c0_i32_0 = arith.constant 0 : i32
    %c0_i32_1 = arith.constant 0 : i32
    return %c0_i32, %c0_i32_0 : i32, i32
  }
  func.func @transform_4(%arg0: i32) -> (i32, i32) {
    %c0_i32 = arith.constant 0 : i32
    %c0_i32_0 = arith.constant 0 : i32
    %c0_i32_1 = arith.constant 0 : i32
    return %c0_i32, %c0_i32_0 : i32, i32
  }
  func.func @transform_5(%arg0: i32) -> (i32, i32) {
    %c0_i32 = arith.constant 0 : i32
    %c0_i32_0 = arith.constant 0 : i32
    %c0_i32_1 = arith.constant 0 : i32
    return %c0_i32, %c0_i32_0 : i32, i32
  }
  func.func @transform_6(%arg0: i32) -> (i32, i32) {
    %c0_i32 = arith.constant 0 : i32
    %c0_i32_0 = arith.constant 0 : i32
    %c0_i32_1 = arith.constant 0 : i32
    return %c0_i32, %c0_i32_0 : i32, i32
  }
  func.func @transform_7(%arg0: i32) -> (i32, i32) {
    %c0_i32 = arith.constant 0 : i32
    %c0_i32_0 = arith.constant 0 : i32
    %c0_i32_1 = arith.constant 0 : i32
    return %c0_i32, %c0_i32_0 : i32, i32
  }
  func.func @transform_8(%arg0: i32) -> (i32, i32) {
    %c0_i32 = arith.constant 0 : i32
    %c0_i32_0 = arith.constant 0 : i32
    %c0_i32_1 = arith.constant 0 : i32
    return %c0_i32, %c0_i32_0 : i32, i32
  }
  func.func @transform_9(%arg0: i32) -> (i32, i32) {
    %c0_i32 = arith.constant 0 : i32
    %c0_i32_0 = arith.constant 0 : i32
    %c0_i32_1 = arith.constant 0 : i32
    return %c0_i32, %c0_i32_0 : i32, i32
  }
  func.func @transform_10(%arg0: i32) -> (i32, i32) {
    %c0_i32 = arith.constant 0 : i32
    %c0_i32_0 = arith.constant 0 : i32
    %c0_i32_1 = arith.constant 0 : i32
    return %c0_i32, %c0_i32_0 : i32, i32
  }
  func.func @transform_11(%arg0: i32) -> (i32, i32) {
    %c0_i32 = arith.constant 0 : i32
    %c0_i32_0 = arith.constant 0 : i32
    %c0_i32_1 = arith.constant 0 : i32
    return %c0_i32, %c0_i32_0 : i32, i32
  }
  func.func @transform_12(%arg0: i32) -> (i32, i32) {
    %c0_i32 = arith.constant 0 : i32
    %c0_i32_0 = arith.constant 0 : i32
    %c0_i32_1 = arith.constant 0 : i32
    return %c0_i32, %c0_i32_0 : i32, i32
  }
  func.func @transform_13(%arg0: i32) -> (i32, i32) {
    %c0_i32 = arith.constant 0 : i32
    %c0_i32_0 = arith.constant 0 : i32
    %c0_i32_1 = arith.constant 0 : i32
    return %c0_i32, %c0_i32_0 : i32, i32
  }
  func.func @transform_14(%arg0: i32) -> (i32, i32, i32) {
    %c0_i32 = arith.constant 0 : i32
    %c0_i32_0 = arith.constant 0 : i32
    %c0_i32_1 = arith.constant 0 : i32
    return %arg0, %c0_i32, %c0_i32_0 : i32, i32, i32
  }
}

</mosaic_0001>

<llo_original>
// kernel: tpu_custom_call.1
$region0: #{tpu_custom_call.1}
  #allocation0 [shape = 'u32[]', space=smem, size = 0x4, offset = 0x4, fixed_abs, tag = 'smem constant byte address 0x4 - core index']
  #allocation1 [shape = 'u32[144,128]{1,0:T(1,128)}', space=vmem, size = 0x12000, scoped, tag = 'internal scratch']
  %s0 = inlined_call_operand.hbm [shape: f32[2,8,8], index: 0, kind: input, shape index: {}]
  %s1 = inlined_call_operand.hbm [shape: f32[2,8,32], index: 1, kind: input, shape index: {}]
  %s2 = inlined_call_operand.hbm [shape: f32[2,8,58], index: 2, kind: input, shape index: {}]
  %s3 = inlined_call_operand.vmem [shape: f32[32,128], index: 3, kind: input, shape index: {}]
  %s4 = inlined_call_operand.vmem [shape: f32[1,64], index: 4, kind: input, shape index: {}]
  %s5 = inlined_call_operand.vmem [shape: f32[64,96], index: 5, kind: input, shape index: {}]
  %s6 = inlined_call_operand.vmem [shape: f32[1,96], index: 6, kind: input, shape index: {}]
  %s7 = inlined_call_operand.vmem [shape: f32[32,32], index: 7, kind: input, shape index: {}]
  %s8 = inlined_call_operand.vmem [shape: f32[90,32], index: 8, kind: input, shape index: {}]
  %s9 = inlined_call_operand.hbm [shape: f32[1,32], index: 9, kind: input, shape index: {}]
  %s10 = inlined_call_operand.vmem [shape: f32[32,32], index: 10, kind: input, shape index: {}]
  %s11 = inlined_call_operand.vmem [shape: f32[1,32], index: 11, kind: input, shape index: {}]
  %s12 = inlined_call_operand.hbm [shape: f32[32,128], index: 12, kind: input, shape index: {}]
  %s13 = inlined_call_operand.vmem [shape: f32[1,128], index: 13, kind: input, shape index: {}]
  %s14 = inlined_call_operand.hbm [shape: f32[1,2,128], index: 14, kind: output, shape index: {}]
  %s15 = sld [smem:[#allocation0]]
  $region86: #{tpu_custom_call.1} parent=0
    _
  %s17 = ssub.s32 1, %s15
  %s18 = scalar_select 0, %s17, %s15
  $region1: #{tpu_custom_call.1} parent=0
    #allocation2 [shape = 'u8[8192]{0}', space=vmem, size = 0x2000, scoped, tag = 'input window, operand 0, single buffered']
    #allocation3 [shape = 's32[1]{0}', space=sflag, size = 0x4, scoped, tag = 'scoped memory for tpu_custom_call.1']
    #allocation4 [shape = 's32[1]{0}', space=sflag, size = 0x4, scoped, tag = 'scoped memory for tpu_custom_call.1']
    #allocation5 [shape = 'u8[8192]{0}', space=vmem, size = 0x2000, scoped, tag = 'input window, operand 1, single buffered']
    #allocation6 [shape = 's32[1]{0}', space=sflag, size = 0x4, scoped, tag = 'scoped memory for tpu_custom_call.1']
    #allocation7 [shape = 'u8[8192]{0}', space=vmem, size = 0x2000, scoped, tag = 'input window, operand 2, single buffered']
    #allocation8 [shape = 'u8[512]{0}', space=vmem, size = 0x400, scoped, tag = 'input window, operand 9, single buffered']
    #allocation9 [shape = 's32[1]{0}', space=sflag, size = 0x4, scoped, tag = 'scoped memory for tpu_custom_call.1']
    #allocation10 [shape = 'u8[16384]{0}', space=vmem, size = 0x4000, scoped, tag = 'input window, operand 12, single buffered']
    #allocation11 [shape = 'u8[1024]{0}', space=vmem, size = 0x400, scoped, tag = 'output window, operand 0, single buffered']
    %19 = vsyncpa [#allocation3], 0
    %20 = vsyncpa [#allocation6], 0
    %21 = vsyncpa [#allocation9], 0
    %22 = vsyncpa [#allocation4], 0
    // Predicated region
    $region2: #{tpu_custom_call.1} parent=1 // pred_check
      _
    $region3: #{tpu_custom_call.1} parent=1 // pred_check_branch
      %24 = sbr.rel (0) target = $region5
    $region4: #{tpu_custom_call.1} parent=1 // pred_region
      %s26 = ssub.s32 256, 256
      %27 = vsyncadd [#allocation3], %s26
      %s28 = sshll.u32 [#allocation2], 4
      %s29 = int_to_ptr.vmem [resolvable:$true] %s28
      %34 = dma.hbm_to_vmem [thread:$0]  %s0, 256, %s29, [#allocation3], 128, 128, 8
    $region5: #{tpu_custom_call.1} parent=1 // pred_fallthru
      _
    // Predicated region
    $region6: #{tpu_custom_call.1} parent=1 // pred_check
      _
    $region7: #{tpu_custom_call.1} parent=1 // pred_check_branch
      %36 = sbr.rel (0) target = $region9
    $region8: #{tpu_custom_call.1} parent=1 // pred_region
      %s38 = ssub.s32 256, 256
      %39 = vsyncadd [#allocation6], %s38
      %s40 = sshll.u32 [#allocation5], 4
      %s41 = int_to_ptr.vmem [resolvable:$true] %s40
      %46 = dma.hbm_to_vmem [thread:$0]  %s1, 256, %s41, [#allocation6], 128, 128, 8
    $region9: #{tpu_custom_call.1} parent=1 // pred_fallthru
      _
    // Predicated region
    $region10: #{tpu_custom_call.1} parent=1 // pred_check
      _
    $region11: #{tpu_custom_call.1} parent=1 // pred_check_branch
      %48 = sbr.rel (0) target = $region13
    $region12: #{tpu_custom_call.1} parent=1 // pred_region
      %s50 = ssub.s32 256, 256
      %51 = vsyncadd [#allocation6], %s50
      %s52 = sshll.u32 [#allocation7], 4
      %s53 = int_to_ptr.vmem [resolvable:$true] %s52
      %58 = dma.hbm_to_vmem [thread:$0]  %s2, 256, %s53, [#allocation6], 128, 128, 8
    $region13: #{tpu_custom_call.1} parent=1 // pred_fallthru
      _
    // Predicated region
    $region14: #{tpu_custom_call.1} parent=1 // pred_check
      _
    $region15: #{tpu_custom_call.1} parent=1 // pred_check_branch
      %60 = sbr.rel (0) target = $region17
    $region16: #{tpu_custom_call.1} parent=1 // pred_region
      _
    $region17: #{tpu_custom_call.1} parent=1 // pred_fallthru
      _
    // Predicated region
    $region18: #{tpu_custom_call.1} parent=1 // pred_check
      _
    $region19: #{tpu_custom_call.1} parent=1 // pred_check_branch
      %62 = sbr.rel (0) target = $region21
    $region20: #{tpu_custom_call.1} parent=1 // pred_region
      _
    $region21: #{tpu_custom_call.1} parent=1 // pred_fallthru
      _
    // Predicated region
    $region22: #{tpu_custom_call.1} parent=1 // pred_check
      _
    $region23: #{tpu_custom_call.1} parent=1 // pred_check_branch
      %64 = sbr.rel (0) target = $region25
    $region24: #{tpu_custom_call.1} parent=1 // pred_region
      _
    $region25: #{tpu_custom_call.1} parent=1 // pred_fallthru
      _
    // Predicated region
    $region26: #{tpu_custom_call.1} parent=1 // pred_check
      _
    $region27: #{tpu_custom_call.1} parent=1 // pred_check_branch
      %66 = sbr.rel (0) target = $region29
    $region28: #{tpu_custom_call.1} parent=1 // pred_region
      _
    $region29: #{tpu_custom_call.1} parent=1 // pred_fallthru
      _
    // Predicated region
    $region30: #{tpu_custom_call.1} parent=1 // pred_check
      _
    $region31: #{tpu_custom_call.1} parent=1 // pred_check_branch
      %68 = sbr.rel (0) target = $region33
    $region32: #{tpu_custom_call.1} parent=1 // pred_region
      _
    $region33: #{tpu_custom_call.1} parent=1 // pred_fallthru
      _
    // Predicated region
    $region34: #{tpu_custom_call.1} parent=1 // pred_check
      _
    $region35: #{tpu_custom_call.1} parent=1 // pred_check_branch
      %70 = sbr.rel (0) target = $region37
    $region36: #{tpu_custom_call.1} parent=1 // pred_region
      _
    $region37: #{tpu_custom_call.1} parent=1 // pred_fallthru
      _
    // Predicated region
    $region38: #{tpu_custom_call.1} parent=1 // pred_check
      _
    $region39: #{tpu_custom_call.1} parent=1 // pred_check_branch
      %72 = sbr.rel (0) target = $region41
    $region40: #{tpu_custom_call.1} parent=1 // pred_region
      %s74 = ssub.s32 16, 16
      %75 = vsyncadd [#allocation9], %s74
      %s77 = sshll.u32 [#allocation8], 4
      %s78 = int_to_ptr.vmem [resolvable:$true] %s77
      %80 = dma.hbm_to_vmem [thread:$0]  %s9, 16, %s78, [#allocation9]
    $region41: #{tpu_custom_call.1} parent=1 // pred_fallthru
      _
    // Predicated region
    $region42: #{tpu_custom_call.1} parent=1 // pred_check
      _
    $region43: #{tpu_custom_call.1} parent=1 // pred_check_branch
      %82 = sbr.rel (0) target = $region45
    $region44: #{tpu_custom_call.1} parent=1 // pred_region
      _
    $region45: #{tpu_custom_call.1} parent=1 // pred_fallthru
      _
    // Predicated region
    $region46: #{tpu_custom_call.1} parent=1 // pred_check
      _
    $region47: #{tpu_custom_call.1} parent=1 // pred_check_branch
      %84 = sbr.rel (0) target = $region49
    $region48: #{tpu_custom_call.1} parent=1 // pred_region
      _
    $region49: #{tpu_custom_call.1} parent=1 // pred_fallthru
      _
    // Predicated region
    $region50: #{tpu_custom_call.1} parent=1 // pred_check
      _
    $region51: #{tpu_custom_call.1} parent=1 // pred_check_branch
      %86 = sbr.rel (0) target = $region53
    $region52: #{tpu_custom_call.1} parent=1 // pred_region
      %s88 = ssub.s32 512, 512
      %89 = vsyncadd [#allocation9], %s88
      %s90 = sshll.u32 [#allocation10], 4
      %s91 = int_to_ptr.vmem [resolvable:$true] %s90
      %96 = dma.hbm_to_vmem [thread:$0]  %s12, 512, %s91, [#allocation9], 128, 128, 8
    $region53: #{tpu_custom_call.1} parent=1 // pred_fallthru
      _
    // Predicated region
    $region54: #{tpu_custom_call.1} parent=1 // pred_check
      _
    $region55: #{tpu_custom_call.1} parent=1 // pred_check_branch
      %98 = sbr.rel (0) target = $region57
    $region56: #{tpu_custom_call.1} parent=1 // pred_region
      _
    $region57: #{tpu_custom_call.1} parent=1 // pred_fallthru
      _
    // Predicated region
    $region58: #{tpu_custom_call.1} parent=1 // pred_check
      _
    $region59: #{tpu_custom_call.1} parent=1 // pred_check_branch
      %100 = sbr.rel (0) target = $region61
    $region60: #{tpu_custom_call.1} parent=1 // pred_region
      %101 = dma.done [#allocation3], 256
    $region61: #{tpu_custom_call.1} parent=1 // pred_fallthru
      _
    // Predicated region
    $region62: #{tpu_custom_call.1} parent=1 // pred_check
      _
    $region63: #{tpu_custom_call.1} parent=1 // pred_check_branch
      %103 = sbr.rel (0) target = $region65
    $region64: #{tpu_custom_call.1} parent=1 // pred_region
      %104 = dma.done [#allocation6], 256
    $region65: #{tpu_custom_call.1} parent=1 // pred_fallthru
      _
    // Predicated region
    $region66: #{tpu_custom_call.1} parent=1 // pred_check
      _
    $region67: #{tpu_custom_call.1} parent=1 // pred_check_branch
      %106 = sbr.rel (0) target = $region69
    $region68: #{tpu_custom_call.1} parent=1 // pred_region
      %107 = dma.done [#allocation6], 256
    $region69: #{tpu_custom_call.1} parent=1 // pred_fallthru
      _
    // Predicated region
    $region70: #{tpu_custom_call.1} parent=1 // pred_check
      _
    $region71: #{tpu_custom_call.1} parent=1 // pred_check_branch
      %109 = sbr.rel (0) target = $region73
    $region72: #{tpu_custom_call.1} parent=1 // pred_region
      %110 = dma.done [#allocation9], 16
    $region73: #{tpu_custom_call.1} parent=1 // pred_fallthru
      _
    // Predicated region
    $region74: #{tpu_custom_call.1} parent=1 // pred_check
      _
    $region75: #{tpu_custom_call.1} parent=1 // pred_check_branch
      %112 = sbr.rel (0) target = $region77
    $region76: #{tpu_custom_call.1} parent=1 // pred_region
      %113 = dma.done [#allocation9], 512
    $region77: #{tpu_custom_call.1} parent=1 // pred_fallthru
      _
    %v114 = vld [vmem:[%s3] sm:$0xff]
    %v115 = vld [vmem:[%s3 + $0x8] sm:$0xff]
    %v116 = vld [vmem:[%s3 + $0x10] sm:$0xff]
    %v117 = vld [vmem:[%s3 + $0x18] sm:$0xff]
    %v118 = vld [vmem:[%s5] sm:$0xff]
    %v119 = vld [vmem:[%s5 + $0x8] sm:$0xff]
    %v120 = vld [vmem:[%s5 + $0x10] sm:$0xff]
    %v121 = vld [vmem:[%s5 + $0x18] sm:$0xff]
    %v122 = vld [vmem:[%s5 + $0x20] sm:$0xff]
    %v123 = vld [vmem:[%s5 + $0x28] sm:$0xff]
    %v124 = vld [vmem:[%s5 + $0x30] sm:$0xff]
    %v125 = vld [vmem:[%s5 + $0x38] sm:$0xff]
    %v126 = vld [vmem:[%s7] sm:$0xff]
    %v127 = vld [vmem:[%s7 + $0x8] sm:$0xff]
    %v128 = vld [vmem:[%s7 + $0x10] sm:$0xff]
    %v129 = vld [vmem:[%s7 + $0x18] sm:$0xff]
    %v130 = vld [vmem:[%s4] sm:$0x1]
    %v131 = vld [vmem:[%s6] sm:$0x1]
    %v132 = vld [vmem:[#allocation2] sm:$0xff]
    %v133 = vld [vmem:[#allocation2 + $0x8] sm:$0xff]
    %134 = vxpose.xlu0.b32.start [1/16] %v132, 128
    %135 = vxpose.xlu0.b32.cont [2/16] 0.0, 128
    %136 = vxpose.xlu0.b32.cont [3/16] 0.0, 128
    %137 = vxpose.xlu0.b32.cont [4/16] 0.0, 128
    %138 = vxpose.xlu0.b32.cont [5/16] 0.0, 128
    %139 = vxpose.xlu0.b32.cont [6/16] 0.0, 128
    %140 = vxpose.xlu0.b32.cont [7/16] 0.0, 128
    %141 = vxpose.xlu0.b32.cont [8/16] 0.0, 128
    %142 = vxpose.xlu0.b32.cont [9/16] 0.0, 128
    %143 = vxpose.xlu0.b32.cont [10/16] 0.0, 128
    %144 = vxpose.xlu0.b32.cont [11/16] 0.0, 128
    %145 = vxpose.xlu0.b32.cont [12/16] 0.0, 128
    %146 = vxpose.xlu0.b32.cont [13/16] 0.0, 128
    %147 = vxpose.xlu0.b32.cont [14/16] 0.0, 128
    %148 = vxpose.xlu0.b32.cont [15/16] 0.0, 128
    %149 = vxpose.xlu0.b32.end [16/16] 0.0, 128
    %v150 = vpop.trf.xlu0
    %v151 = vpop.trf.xlu0
    %v152 = vpop.trf.xlu0
    %v153 = vpop.trf.xlu0
    %v154 = vpop.trf.xlu0
    %v155 = vpop.trf.xlu0
    %v156 = vpop.trf.xlu0
    %v157 = vpop.trf.xlu0
    %v158 = vpop.trf.xlu0
    %v159 = vpop.trf.xlu0
    %v160 = vpop.trf.xlu0
    %v161 = vpop.trf.xlu0
    %v162 = vpop.trf.xlu0
    %v163 = vpop.trf.xlu0
    %v164 = vpop.trf.xlu0
    %v165 = vpop.trf.xlu0
    %166 = vxpose.xlu0.b32.start [1/16] %v133, 128
    %167 = vxpose.xlu0.b32.cont [2/16] 0.0, 128
    %168 = vxpose.xlu0.b32.cont [3/16] 0.0, 128
    %169 = vxpose.xlu0.b32.cont [4/16] 0.0, 128
    %170 = vxpose.xlu0.b32.cont [5/16] 0.0, 128
    %171 = vxpose.xlu0.b32.cont [6/16] 0.0, 128
    %172 = vxpose.xlu0.b32.cont [7/16] 0.0, 128
    %173 = vxpose.xlu0.b32.cont [8/16] 0.0, 128
    %174 = vxpose.xlu0.b32.cont [9/16] 0.0, 128
    %175 = vxpose.xlu0.b32.cont [10/16] 0.0, 128
    %176 = vxpose.xlu0.b32.cont [11/16] 0.0, 128
    %177 = vxpose.xlu0.b32.cont [12/16] 0.0, 128
    %178 = vxpose.xlu0.b32.cont [13/16] 0.0, 128
    %179 = vxpose.xlu0.b32.cont [14/16] 0.0, 128
    %180 = vxpose.xlu0.b32.cont [15/16] 0.0, 128
    %181 = vxpose.xlu0.b32.end [16/16] 0.0, 128
    %v182 = vpop.trf.xlu0
    %v183 = vpop.trf.xlu0
    %v184 = vpop.trf.xlu0
    %v185 = vpop.trf.xlu0
    %v186 = vpop.trf.xlu0
    %v187 = vpop.trf.xlu0
    %v188 = vpop.trf.xlu0
    %v189 = vpop.trf.xlu0
    %v190 = vpop.trf.xlu0
    %v191 = vpop.trf.xlu0
    %v192 = vpop.trf.xlu0
    %v193 = vpop.trf.xlu0
    %v194 = vpop.trf.xlu0
    %v195 = vpop.trf.xlu0
    %v196 = vpop.trf.xlu0
    %v197 = vpop.trf.xlu0
    %v198 = vlaneseq
    %v199 = vshrl.u32 %v198, 7
    %v200 = vsub.s32 0, %v199
    %v201 = vrot.slane %v150, %v200
    %203 = vbcast.lane.b32.xlu0 %v201, 256
    %v204 = vpop.permute.xlu0 %203
    %v205 = vlaneseq
    %v206 = vshrl.u32 %v205, 7
    %v207 = vsub.s32 1, %v206
    %v208 = vrot.slane %v150, %v207
    %210 = vbcast.lane.b32.xlu0 %v208, 256
    %v211 = vpop.permute.xlu0 %210
    %v212 = vlaneseq
    %v213 = vshrl.u32 %v212, 7
    %v214 = vsub.s32 2, %v213
    %v215 = vrot.slane %v150, %v214
    %217 = vbcast.lane.b32.xlu0 %v215, 256
    %v218 = vpop.permute.xlu0 %217
    %v219 = vlaneseq
    %v220 = vshrl.u32 %v219, 7
    %v221 = vsub.s32 3, %v220
    %v222 = vrot.slane %v150, %v221
    %224 = vbcast.lane.b32.xlu0 %v222, 256
    %v225 = vpop.permute.xlu0 %224
    %v226 = vlaneseq
    %v227 = vshrl.u32 %v226, 7
    %v228 = vsub.s32 4, %v227
    %v229 = vrot.slane %v150, %v228
    %231 = vbcast.lane.b32.xlu0 %v229, 256
    %v232 = vpop.permute.xlu0 %231
    %v233 = vlaneseq
    %v234 = vshrl.u32 %v233, 7
    %v235 = vsub.s32 5, %v234
    %v236 = vrot.slane %v150, %v235
    %238 = vbcast.lane.b32.xlu0 %v236, 256
    %v239 = vpop.permute.xlu0 %238
    %v240 = vlaneseq
    %v241 = vshrl.u32 %v240, 7
    %v242 = vsub.s32 6, %v241
    %v243 = vrot.slane %v150, %v242
    %245 = vbcast.lane.b32.xlu0 %v243, 256
    %v246 = vpop.permute.xlu0 %245
    %v247 = vlaneseq
    %v248 = vshrl.u32 %v247, 7
    %v249 = vsub.s32 7, %v248
    %v250 = vrot.slane %v150, %v249
    %252 = vbcast.lane.b32.xlu0 %v250, 256
    %v253 = vpop.permute.xlu0 %252
    %v254 = vlaneseq
    %v255 = vshrl.u32 %v254, 7
    %v256 = vsub.s32 0, %v255
    %v257 = vrot.slane %v182, %v256
    %259 = vbcast.lane.b32.xlu0 %v257, 256
    %v260 = vpop.permute.xlu0 %259
    %v261 = vlaneseq
    %v262 = vshrl.u32 %v261, 7
    %v263 = vsub.s32 1, %v262
    %v264 = vrot.slane %v182, %v263
    %266 = vbcast.lane.b32.xlu0 %v264, 256
    %v267 = vpop.permute.xlu0 %266
    %v268 = vlaneseq
    %v269 = vshrl.u32 %v268, 7
    %v270 = vsub.s32 2, %v269
    %v271 = vrot.slane %v182, %v270
    %273 = vbcast.lane.b32.xlu0 %v271, 256
    %v274 = vpop.permute.xlu0 %273
    %v275 = vlaneseq
    %v276 = vshrl.u32 %v275, 7
    %v277 = vsub.s32 3, %v276
    %v278 = vrot.slane %v182, %v277
    %280 = vbcast.lane.b32.xlu0 %v278, 256
    %v281 = vpop.permute.xlu0 %280
    %v282 = vlaneseq
    %v283 = vshrl.u32 %v282, 7
    %v284 = vsub.s32 4, %v283
    %v285 = vrot.slane %v182, %v284
    %287 = vbcast.lane.b32.xlu0 %v285, 256
    %v288 = vpop.permute.xlu0 %287
    %v289 = vlaneseq
    %v290 = vshrl.u32 %v289, 7
    %v291 = vsub.s32 5, %v290
    %v292 = vrot.slane %v182, %v291
    %294 = vbcast.lane.b32.xlu0 %v292, 256
    %v295 = vpop.permute.xlu0 %294
    %v296 = vlaneseq
    %v297 = vshrl.u32 %v296, 7
    %v298 = vsub.s32 6, %v297
    %v299 = vrot.slane %v182, %v298
    %301 = vbcast.lane.b32.xlu0 %v299, 256
    %v302 = vpop.permute.xlu0 %301
    %v303 = vlaneseq
    %v304 = vshrl.u32 %v303, 7
    %v305 = vsub.s32 7, %v304
    %v306 = vrot.slane %v182, %v305
    %308 = vbcast.lane.b32.xlu0 %v306, 256
    %v309 = vpop.permute.xlu0 %308
    %v310 = vlaneseq
    %v311 = vshrl.u32 %v310, 7
    %v312 = vsub.s32 0, %v311
    %v313 = vrot.slane %v132, %v312
    %315 = vbcast.lane.b32.xlu0 %v313, 256
    %v316 = vpop.permute.xlu0 %315
    %v317 = vlaneseq
    %v318 = vshrl.u32 %v317, 7
    %v319 = vsub.s32 1, %v318
    %v320 = vrot.slane %v132, %v319
    %322 = vbcast.lane.b32.xlu0 %v320, 256
    %v323 = vpop.permute.xlu0 %322
    %v324 = vlaneseq
    %v325 = vshrl.u32 %v324, 7
    %v326 = vsub.s32 2, %v325
    %v327 = vrot.slane %v132, %v326
    %329 = vbcast.lane.b32.xlu0 %v327, 256
    %v330 = vpop.permute.xlu0 %329
    %v331 = vlaneseq
    %v332 = vshrl.u32 %v331, 7
    %v333 = vsub.s32 3, %v332
    %v334 = vrot.slane %v132, %v333
    %336 = vbcast.lane.b32.xlu0 %v334, 256
    %v337 = vpop.permute.xlu0 %336
    %v338 = vlaneseq
    %v339 = vshrl.u32 %v338, 7
    %v340 = vsub.s32 4, %v339
    %v341 = vrot.slane %v132, %v340
    %343 = vbcast.lane.b32.xlu0 %v341, 256
    %v344 = vpop.permute.xlu0 %343
    %v345 = vlaneseq
    %v346 = vshrl.u32 %v345, 7
    %v347 = vsub.s32 5, %v346
    %v348 = vrot.slane %v132, %v347
    %350 = vbcast.lane.b32.xlu0 %v348, 256
    %v351 = vpop.permute.xlu0 %350
    %v352 = vlaneseq
    %v353 = vshrl.u32 %v352, 7
    %v354 = vsub.s32 6, %v353
    %v355 = vrot.slane %v132, %v354
    %357 = vbcast.lane.b32.xlu0 %v355, 256
    %v358 = vpop.permute.xlu0 %357
    %v359 = vlaneseq
    %v360 = vshrl.u32 %v359, 7
    %v361 = vsub.s32 7, %v360
    %v362 = vrot.slane %v132, %v361
    %364 = vbcast.lane.b32.xlu0 %v362, 256
    %v365 = vpop.permute.xlu0 %364
    %v366 = vlaneseq
    %v367 = vshrl.u32 %v366, 7
    %v368 = vsub.s32 0, %v367
    %v369 = vrot.slane %v133, %v368
    %371 = vbcast.lane.b32.xlu0 %v369, 256
    %v372 = vpop.permute.xlu0 %371
    %v373 = vlaneseq
    %v374 = vshrl.u32 %v373, 7
    %v375 = vsub.s32 1, %v374
    %v376 = vrot.slane %v133, %v375
    %378 = vbcast.lane.b32.xlu0 %v376, 256
    %v379 = vpop.permute.xlu0 %378
    %v380 = vlaneseq
    %v381 = vshrl.u32 %v380, 7
    %v382 = vsub.s32 2, %v381
    %v383 = vrot.slane %v133, %v382
    %385 = vbcast.lane.b32.xlu0 %v383, 256
    %v386 = vpop.permute.xlu0 %385
    %v387 = vlaneseq
    %v388 = vshrl.u32 %v387, 7
    %v389 = vsub.s32 3, %v388
    %v390 = vrot.slane %v133, %v389
    %392 = vbcast.lane.b32.xlu0 %v390, 256
    %v393 = vpop.permute.xlu0 %392
    %v394 = vlaneseq
    %v395 = vshrl.u32 %v394, 7
    %v396 = vsub.s32 4, %v395
    %v397 = vrot.slane %v133, %v396
    %399 = vbcast.lane.b32.xlu0 %v397, 256
    %v400 = vpop.permute.xlu0 %399
    %v401 = vlaneseq
    %v402 = vshrl.u32 %v401, 7
    %v403 = vsub.s32 5, %v402
    %v404 = vrot.slane %v133, %v403
    %406 = vbcast.lane.b32.xlu0 %v404, 256
    %v407 = vpop.permute.xlu0 %406
    %v408 = vlaneseq
    %v409 = vshrl.u32 %v408, 7
    %v410 = vsub.s32 6, %v409
    %v411 = vrot.slane %v133, %v410
    %413 = vbcast.lane.b32.xlu0 %v411, 256
    %v414 = vpop.permute.xlu0 %413
    %v415 = vlaneseq
    %v416 = vshrl.u32 %v415, 7
    %v417 = vsub.s32 7, %v416
    %v418 = vrot.slane %v133, %v417
    %420 = vbcast.lane.b32.xlu0 %v418, 256
    %v421 = vpop.permute.xlu0 %420
    %v422 = vld [vmem:[#allocation5] sm:$0xff]
    %v423 = vld [vmem:[#allocation5 + $0x8] sm:$0xff]
    %vm424 = vcmask 261120
    %v426 = vsel %vm424, %v422, 0
    %v429 = vsel %vm424, %v423, 0
    %431 = vmatprep.subr.mxu0 0.0
    %432 = vmatpush1.msra.mxu0 %v114
    %433 = vmatprep.subr.mxu0 0.0
    %434 = vmatpush1.msra.mxu0 %v115
    %435 = vmatprep.subr.mxu0 0.0
    %436 = vmatpush1.msra.mxu0 %v116
    %437 = vmatprep.subr.mxu0 0.0
    %438 = vmatpush1.msra.mxu0 %v117
    %439 = vmatprep.subr.mxu0 0.0
    %440 = vmatpush1.msra.mxu0 0.0
    %441 = vmatprep.subr.mxu0 0.0
    %442 = vmatpush1.msra.mxu0 0.0
    %443 = vmatprep.subr.mxu0 0.0
    %444 = vmatpush1.msra.mxu0 0.0
    %445 = vmatprep.subr.mxu0 0.0
    %446 = vmatpush1.msra.mxu0 0.0
    %447 = vmatprep.subr.mxu0 0.0
    %448 = vmatpush1.msra.mxu0 0.0
    %449 = vmatprep.subr.mxu0 0.0
    %450 = vmatpush1.msra.mxu0 0.0
    %451 = vmatprep.subr.mxu0 0.0
    %452 = vmatpush1.msra.mxu0 0.0
    %453 = vmatprep.subr.mxu0 0.0
    %454 = vmatpush1.msra.mxu0 0.0
    %455 = vmatprep.subr.mxu0 0.0
    %456 = vmatpush1.msra.mxu0 0.0
    %457 = vmatprep.subr.mxu0 0.0
    %458 = vmatpush1.msra.mxu0 0.0
    %459 = vmatprep.subr.mxu0 0.0
    %460 = vmatpush1.msra.mxu0 0.0
    %461 = vmatprep.subr.mxu0 0.0
    %462 = vmatpush1.msra.mxu0 0.0
    %463 = vmatprep.subr.mxu0 0.0
    %464 = vmatpush1.msra.mxu0 0.0
    %465 = vmatprep.subr.mxu0 0.0
    %466 = vmatpush1.msra.mxu0 0.0
    %467 = vmatprep.subr.mxu0 0.0
    %468 = vmatpush1.msra.mxu0 0.0
    %469 = vmatprep.subr.mxu0 0.0
    %470 = vmatpush1.msra.mxu0 0.0
    %471 = vmatprep.subr.mxu0 0.0
    %472 = vmatpush1.msra.mxu0 0.0
    %473 = vmatprep.subr.mxu0 0.0
    %474 = vmatpush1.msra.mxu0 0.0
    %475 = vmatprep.subr.mxu0 0.0
    %476 = vmatpush1.msra.mxu0 0.0
    %477 = vmatprep.subr.mxu0 0.0
    %478 = vmatpush1.msra.mxu0 0.0
    %479 = vmatprep.subr.mxu0 0.0
    %480 = vmatpush1.msra.mxu0 0.0
    %481 = vmatprep.subr.mxu0 0.0
    %482 = vmatpush1.msra.mxu0 0.0
    %483 = vmatprep.subr.mxu0 0.0
    %484 = vmatpush1.msra.mxu0 0.0
    %485 = vmatprep.subr.mxu0 0.0
    %486 = vmatpush1.msra.mxu0 0.0
    %487 = vmatprep.subr.mxu0 0.0
    %488 = vmatpush1.msra.mxu0 0.0
    %489 = vmatprep.subr.mxu0 0.0
    %490 = vmatpush1.msra.mxu0 0.0
    %491 = vmatprep.subr.mxu0 0.0
    %492 = vmatpush1.msra.mxu0 0.0
    %493 = vmatprep.subr.mxu0 0.0
    %494 = vmatpush1.msra.mxu0 0.0
    %495 = vmatprep.mubr.f32.mxu0 0.0
    %496 = vmatmul.mubr.f32.gmra.mrb[0].mxu0 %v426
    %v497 = vpop.f32.mrb[0].mxu0
    %v498 = vadd.f32 0.0, %v497
    %v499 = vpop.f32.mrb[0].mxu0
    %500 = vmatprep.mubr.f32.mxu0 0.0
    %501 = vmatmul.mubr.f32.gmra.mrb[0].mxu0 %v429
    %v502 = vpop.f32.mrb[0].mxu0
    %v503 = vadd.f32 0.0, %v502
    %v504 = vpop.f32.mrb[0].mxu0
    %505 = vdwg.mxu0
    %v507 = vlaneseq
    %v508 = vshrl.u32 %v507, 7
    %v509 = vsub.s32 0, %v508
    %v510 = vrot.slane %v130, %v509
    %v512 = vadd.f32 %v498, %v510
    %v513 = vadd.f32 %v503, %v510
    %v516 = vcombine.high %v512, %v512
    %v518 = vunpack.c.l.s4 1966171168
    %v519 = vunpack.c.0.s8 %v518
    %v520 = vlaneseq
    %v521 = vshrl.u32 %v520, 7
    %v522 = vsub.s32 %v519, %v521
    %v523 = vrot.slane %v512, %v522
    %v525 = vunpack.c.l.s4 1966171168
    %v526 = vunpack.c.0.s8 %v525
    %v527 = vlaneseq
    %v528 = vshrl.u32 %v527, 7
    %v529 = vsub.s32 %v526, %v528
    %v530 = vrot.slane %v516, %v529
    %v531 = vcombine.high %v523, %v523
    %v532 = vcombine.high %v530, %v530
    %v534 = vunpack.c.l.s4 1966171168
    %v535 = vunpack.c.0.s8 %v534
    %v536 = vlaneseq
    %v537 = vshrl.u32 %v536, 7
    %v538 = vsub.s32 %v535, %v537
    %v539 = vrot.slane %v523, %v538
    %v541 = vunpack.c.l.s4 1966171168
    %v542 = vunpack.c.0.s8 %v541
    %v543 = vlaneseq
    %v544 = vshrl.u32 %v543, 7
    %v545 = vsub.s32 %v542, %v544
    %v546 = vrot.slane %v530, %v545
    %v548 = vunpack.c.l.s4 1966171168
    %v549 = vunpack.c.0.s8 %v548
    %v550 = vlaneseq
    %v551 = vshrl.u32 %v550, 7
    %v552 = vsub.s32 %v549, %v551
    %v553 = vrot.slane %v531, %v552
    %v555 = vunpack.c.l.s4 1966171168
    %v556 = vunpack.c.0.s8 %v555
    %v557 = vlaneseq
    %v558 = vshrl.u32 %v557, 7
    %v559 = vsub.s32 %v556, %v558
    %v560 = vrot.slane %v532, %v559
    %v561 = vcombine.high %v539, %v539
    %v562 = vcombine.high %v546, %v546
    %v563 = vcombine.high %v553, %v553
    %v564 = vcombine.high %v560, %v560
    %v565 = vcombine.high %v513, %v513
    %v567 = vunpack.c.l.s4 1966171168
    %v568 = vunpack.c.0.s8 %v567
    %v569 = vlaneseq
    %v570 = vshrl.u32 %v569, 7
    %v571 = vsub.s32 %v568, %v570
    %v572 = vrot.slane %v513, %v571
    %v574 = vunpack.c.l.s4 1966171168
    %v575 = vunpack.c.0.s8 %v574
    %v576 = vlaneseq
    %v577 = vshrl.u32 %v576, 7
    %v578 = vsub.s32 %v575, %v577
    %v579 = vrot.slane %v565, %v578
    %v580 = vcombine.high %v572, %v572
    %v581 = vcombine.high %v579, %v579
    %v583 = vunpack.c.l.s4 1966171168
    %v584 = vunpack.c.0.s8 %v583
    %v585 = vlaneseq
    %v586 = vshrl.u32 %v585, 7
    %v587 = vsub.s32 %v584, %v586
    %v588 = vrot.slane %v572, %v587
    %v590 = vunpack.c.l.s4 1966171168
    %v591 = vunpack.c.0.s8 %v590
    %v592 = vlaneseq
    %v593 = vshrl.u32 %v592, 7
    %v594 = vsub.s32 %v591, %v593
    %v595 = vrot.slane %v579, %v594
    %v597 = vunpack.c.l.s4 1966171168
    %v598 = vunpack.c.0.s8 %v597
    %v599 = vlaneseq
    %v600 = vshrl.u32 %v599, 7
    %v601 = vsub.s32 %v598, %v600
    %v602 = vrot.slane %v580, %v601
    %v604 = vunpack.c.l.s4 1966171168
    %v605 = vunpack.c.0.s8 %v604
    %v606 = vlaneseq
    %v607 = vshrl.u32 %v606, 7
    %v608 = vsub.s32 %v605, %v607
    %v609 = vrot.slane %v581, %v608
    %v610 = vcombine.high %v588, %v588
    %v611 = vcombine.high %v595, %v595
    %v612 = vcombine.high %v602, %v602
    %v613 = vcombine.high %v609, %v609
    %v614 = vlaneseq
    %v615 = vshrl.u32 %v614, 7
    %v616 = vsub.s32 0, %v615
    %v617 = vrot.slane %v539, %v616
    %v618 = vlaneseq
    %v619 = vshrl.u32 %v618, 7
    %v620 = vsub.s32 0, %v619
    %v621 = vrot.slane %v553, %v620
    %v622 = vlaneseq
    %v623 = vshrl.u32 %v622, 7
    %v624 = vsub.s32 0, %v623
    %v625 = vrot.slane %v561, %v624
    %v626 = vlaneseq
    %v627 = vshrl.u32 %v626, 7
    %v628 = vsub.s32 0, %v627
    %v629 = vrot.slane %v563, %v628
    %v630 = vlaneseq
    %v631 = vshrl.u32 %v630, 7
    %v632 = vsub.s32 0, %v631
    %v633 = vrot.slane %v546, %v632
    %v634 = vlaneseq
    %v635 = vshrl.u32 %v634, 7
    %v636 = vsub.s32 0, %v635
    %v637 = vrot.slane %v560, %v636
    %v638 = vlaneseq
    %v639 = vshrl.u32 %v638, 7
    %v640 = vsub.s32 0, %v639
    %v641 = vrot.slane %v562, %v640
    %v642 = vlaneseq
    %v643 = vshrl.u32 %v642, 7
    %v644 = vsub.s32 0, %v643
    %v645 = vrot.slane %v564, %v644
    %v646 = vlaneseq
    %v647 = vshrl.u32 %v646, 7
    %v648 = vsub.s32 0, %v647
    %v649 = vrot.slane %v588, %v648
    %v650 = vlaneseq
    %v651 = vshrl.u32 %v650, 7
    %v652 = vsub.s32 0, %v651
    %v653 = vrot.slane %v602, %v652
    %v654 = vlaneseq
    %v655 = vshrl.u32 %v654, 7
    %v656 = vsub.s32 0, %v655
    %v657 = vrot.slane %v610, %v656
    %v658 = vlaneseq
    %v659 = vshrl.u32 %v658, 7
    %v660 = vsub.s32 0, %v659
    %v661 = vrot.slane %v612, %v660
    %v662 = vlaneseq
    %v663 = vshrl.u32 %v662, 7
    %v664 = vsub.s32 0, %v663
    %v665 = vrot.slane %v595, %v664
    %v666 = vlaneseq
    %v667 = vshrl.u32 %v666, 7
    %v668 = vsub.s32 0, %v667
    %v669 = vrot.slane %v609, %v668
    %v670 = vlaneseq
    %v671 = vshrl.u32 %v670, 7
    %v672 = vsub.s32 0, %v671
    %v673 = vrot.slane %v611, %v672
    %v674 = vlaneseq
    %v675 = vshrl.u32 %v674, 7
    %v676 = vsub.s32 0, %v675
    %v677 = vrot.slane %v613, %v676
    %v694 = vmul.f32 %v204, %v617
    %v695 = vmul.f32 %v211, %v621
    %v696 = vmul.f32 %v218, %v625
    %v697 = vmul.f32 %v225, %v629
    %v698 = vmul.f32 %v232, %v633
    %v699 = vmul.f32 %v239, %v637
    %v700 = vmul.f32 %v246, %v641
    %v701 = vmul.f32 %v253, %v645
    %v702 = vmul.f32 %v260, %v649
    %v703 = vmul.f32 %v267, %v653
    %v704 = vmul.f32 %v274, %v657
    %v705 = vmul.f32 %v281, %v661
    %v706 = vmul.f32 %v288, %v665
    %v707 = vmul.f32 %v295, %v669
    %v708 = vmul.f32 %v302, %v673
    %v709 = vmul.f32 %v309, %v677
    %v710 = vsel %vm424, %v694, 0.0
    %v711 = vsel %vm424, %v695, 0.0
    %v712 = vadd.f32 %v710, %v711
    %v713 = vsel %vm424, %v696, 0.0
    %v714 = vadd.f32 %v712, %v713
    %v715 = vsel %vm424, %v697, 0.0
    %v716 = vadd.f32 %v714, %v715
    %v717 = vsel %vm424, %v698, 0.0
    %v718 = vadd.f32 %v716, %v717
    %v719 = vsel %vm424, %v699, 0.0
    %v720 = vadd.f32 %v718, %v719
    %v721 = vsel %vm424, %v700, 0.0
    %v722 = vadd.f32 %v720, %v721
    %v723 = vsel %vm424, %v701, 0.0
    %v724 = vadd.f32 %v722, %v723
    %v725 = vsel %vm424, %v702, 0.0
    %v726 = vsel %vm424, %v703, 0.0
    %v727 = vadd.f32 %v725, %v726
    %v728 = vsel %vm424, %v704, 0.0
    %v729 = vadd.f32 %v727, %v728
    %v730 = vsel %vm424, %v705, 0.0
    %v731 = vadd.f32 %v729, %v730
    %v732 = vsel %vm424, %v706, 0.0
    %v733 = vadd.f32 %v731, %v732
    %v734 = vsel %vm424, %v707, 0.0
    %v735 = vadd.f32 %v733, %v734
    %v736 = vsel %vm424, %v708, 0.0
    %v737 = vadd.f32 %v735, %v736
    %v738 = vsel %vm424, %v709, 0.0
    %v739 = vadd.f32 %v737, %v738
    %v740 = vmul.f32 %v316, %v617
    %v741 = vmul.f32 %v323, %v621
    %v742 = vmul.f32 %v330, %v625
    %v743 = vmul.f32 %v337, %v629
    %v744 = vmul.f32 %v344, %v633
    %v745 = vmul.f32 %v351, %v637
    %v746 = vmul.f32 %v358, %v641
    %v747 = vmul.f32 %v365, %v645
    %v748 = vmul.f32 %v372, %v649
    %v749 = vmul.f32 %v379, %v653
    %v750 = vmul.f32 %v386, %v657
    %v751 = vmul.f32 %v393, %v661
    %v752 = vmul.f32 %v400, %v665
    %v753 = vmul.f32 %v407, %v669
    %v754 = vmul.f32 %v414, %v673
    %v755 = vmul.f32 %v421, %v677
    %vm756 = vcmask 523520
    %v757 = vsel %vm756, %v740, 0.0
    %v758 = vsel %vm756, %v741, 0.0
    %v759 = vadd.f32 %v757, %v758
    %v760 = vsel %vm756, %v742, 0.0
    %v761 = vadd.f32 %v759, %v760
    %v762 = vsel %vm756, %v743, 0.0
    %v763 = vadd.f32 %v761, %v762
    %v764 = vsel %vm756, %v744, 0.0
    %v765 = vadd.f32 %v763, %v764
    %v766 = vsel %vm756, %v745, 0.0
    %v767 = vadd.f32 %v765, %v766
    %v768 = vsel %vm756, %v746, 0.0
    %v769 = vadd.f32 %v767, %v768
    %v770 = vsel %vm756, %v747, 0.0
    %v771 = vadd.f32 %v769, %v770
    %v772 = vsel %vm756, %v748, 0.0
    %v773 = vsel %vm756, %v749, 0.0
    %v774 = vadd.f32 %v772, %v773
    %v775 = vsel %vm756, %v750, 0.0
    %v776 = vadd.f32 %v774, %v775
    %v777 = vsel %vm756, %v751, 0.0
    %v778 = vadd.f32 %v776, %v777
    %v779 = vsel %vm756, %v752, 0.0
    %v780 = vadd.f32 %v778, %v779
    %v781 = vsel %vm756, %v753, 0.0
    %v782 = vadd.f32 %v780, %v781
    %v783 = vsel %vm756, %v754, 0.0
    %v784 = vadd.f32 %v782, %v783
    %v785 = vsel %vm756, %v755, 0.0
    %v786 = vadd.f32 %v784, %v785
    %v787 = vsel %vm424, %v724, %v771
    %v788 = vsel %vm424, %v739, %v786
    %v790 = vlaneseq
    %v791 = vshrl.u32 %v790, 7
    %v792 = vsub.s32 0, %v791
    %v793 = vrot.slane %v131, %v792
    %vm795 = vcmask 523264
    %v797 = vsel %vm795, %v787, 0
    %v800 = vsel %vm795, %v788, 0
    %802 = vmatprep.subr.mxu0 0.0
    %803 = vmatpush1.msra.mxu0 %v118
    %804 = vmatprep.subr.mxu0 0.0
    %805 = vmatpush1.msra.mxu0 %v119
    %806 = vmatprep.subr.mxu0 0.0
    %807 = vmatpush1.msra.mxu0 %v120
    %808 = vmatprep.subr.mxu0 0.0
    %809 = vmatpush1.msra.mxu0 %v121
    %810 = vmatprep.subr.mxu0 0.0
    %811 = vmatpush1.msra.mxu0 %v122
    %812 = vmatprep.subr.mxu0 0.0
    %813 = vmatpush1.msra.mxu0 %v123
    %814 = vmatprep.subr.mxu0 0.0
    %815 = vmatpush1.msra.mxu0 %v124
    %816 = vmatprep.subr.mxu0 0.0
    %817 = vmatpush1.msra.mxu0 %v125
    %818 = vmatprep.subr.mxu0 0.0
    %819 = vmatpush1.msra.mxu0 0.0
    %820 = vmatprep.subr.mxu0 0.0
    %821 = vmatpush1.msra.mxu0 0.0
    %822 = vmatprep.subr.mxu0 0.0
    %823 = vmatpush1.msra.mxu0 0.0
    %824 = vmatprep.subr.mxu0 0.0
    %825 = vmatpush1.msra.mxu0 0.0
    %826 = vmatprep.subr.mxu0 0.0
    %827 = vmatpush1.msra.mxu0 0.0
    %828 = vmatprep.subr.mxu0 0.0
    %829 = vmatpush1.msra.mxu0 0.0
    %830 = vmatprep.subr.mxu0 0.0
    %831 = vmatpush1.msra.mxu0 0.0
    %832 = vmatprep.subr.mxu0 0.0
    %833 = vmatpush1.msra.mxu0 0.0
    %834 = vmatprep.subr.mxu0 0.0
    %835 = vmatpush1.msra.mxu0 0.0
    %836 = vmatprep.subr.mxu0 0.0
    %837 = vmatpush1.msra.mxu0 0.0
    %838 = vmatprep.subr.mxu0 0.0
    %839 = vmatpush1.msra.mxu0 0.0
    %840 = vmatprep.subr.mxu0 0.0
    %841 = vmatpush1.msra.mxu0 0.0
    %842 = vmatprep.subr.mxu0 0.0
    %843 = vmatpush1.msra.mxu0 0.0
    %844 = vmatprep.subr.mxu0 0.0
    %845 = vmatpush1.msra.mxu0 0.0
    %846 = vmatprep.subr.mxu0 0.0
    %847 = vmatpush1.msra.mxu0 0.0
    %848 = vmatprep.subr.mxu0 0.0
    %849 = vmatpush1.msra.mxu0 0.0
    %850 = vmatprep.subr.mxu0 0.0
    %851 = vmatpush1.msra.mxu0 0.0
    %852 = vmatprep.subr.mxu0 0.0
    %853 = vmatpush1.msra.mxu0 0.0
    %854 = vmatprep.subr.mxu0 0.0
    %855 = vmatpush1.msra.mxu0 0.0
    %856 = vmatprep.subr.mxu0 0.0
    %857 = vmatpush1.msra.mxu0 0.0
    %858 = vmatprep.subr.mxu0 0.0
    %859 = vmatpush1.msra.mxu0 0.0
    %860 = vmatprep.subr.mxu0 0.0
    %861 = vmatpush1.msra.mxu0 0.0
    %862 = vmatprep.subr.mxu0 0.0
    %863 = vmatpush1.msra.mxu0 0.0
    %864 = vmatprep.subr.mxu0 0.0
    %865 = vmatpush1.msra.mxu0 0.0
    %866 = vmatprep.mubr.f32.mxu0 0.0
    %867 = vmatmul.mubr.f32.gmra.mrb[0].mxu0 %v797
    %v868 = vpop.f32.mrb[0].mxu0
    %v869 = vadd.f32 %v793, %v868
    %v870 = vpop.f32.mrb[0].mxu0
    %871 = vmatprep.mubr.f32.mxu0 0.0
    %872 = vmatmul.mubr.f32.gmra.mrb[0].mxu0 %v800
    %v873 = vpop.f32.mrb[0].mxu0
    %v874 = vadd.f32 %v793, %v873
    %v875 = vpop.f32.mrb[0].mxu0
    %876 = vdwg.mxu0
    %879 = vrot.lane.b32.xlu0 %v498, 64
    %v880 = vpop.permute.xlu0 %879
    %881 = vrot.lane.b32.xlu0 %v503, 64
    %v882 = vpop.permute.xlu0 %881
    %v885 = vadd.f32 %v869, %v880
    %v886 = vadd.f32 %v874, %v882
    %v887 = vxor.u32 %v885, 2147483648
    %v888 = vxor.u32 %v886, 2147483648
    %v889 = vmul.f32 %v887, 1.442695
    %v890 = vpow.pop %v889
    %v891 = vmul.f32 %v888, 1.442695
    %v892 = vpow.pop %v891
    %v893 = vadd.f32 %v890, 1.0
    %v894 = vadd.f32 %v892, 1.0
    %v895 = vrcp.pop %v893
    %v896 = vmul.f32 1.0, %v895
    %v897 = vrcp.pop %v894
    %v898 = vmul.f32 1.0, %v897
    %v899 = vmul.f32 %v896, %v422
    %v900 = vmul.f32 %v898, %v423
    %v902 = vsel %vm424, %v899, 0
    %v905 = vsel %vm424, %v900, 0
    %907 = vmatprep.subr.mxu0 0.0
    %908 = vmatpush1.msra.mxu0 %v126
    %909 = vmatprep.subr.mxu0 0.0
    %910 = vmatpush1.msra.mxu0 %v127
    %911 = vmatprep.subr.mxu0 0.0
    %912 = vmatpush1.msra.mxu0 %v128
    %913 = vmatprep.subr.mxu0 0.0
    %914 = vmatpush1.msra.mxu0 %v129
    %915 = vmatprep.subr.mxu0 0.0
    %916 = vmatpush1.msra.mxu0 0.0
    %917 = vmatprep.subr.mxu0 0.0
    %918 = vmatpush1.msra.mxu0 0.0
    %919 = vmatprep.subr.mxu0 0.0
    %920 = vmatpush1.msra.mxu0 0.0
    %921 = vmatprep.subr.mxu0 0.0
    %922 = vmatpush1.msra.mxu0 0.0
    %923 = vmatprep.subr.mxu0 0.0
    %924 = vmatpush1.msra.mxu0 0.0
    %925 = vmatprep.subr.mxu0 0.0
    %926 = vmatpush1.msra.mxu0 0.0
    %927 = vmatprep.subr.mxu0 0.0
    %928 = vmatpush1.msra.mxu0 0.0
    %929 = vmatprep.subr.mxu0 0.0
    %930 = vmatpush1.msra.mxu0 0.0
    %931 = vmatprep.subr.mxu0 0.0
    %932 = vmatpush1.msra.mxu0 0.0
    %933 = vmatprep.subr.mxu0 0.0
    %934 = vmatpush1.msra.mxu0 0.0
    %935 = vmatprep.subr.mxu0 0.0
    %936 = vmatpush1.msra.mxu0 0.0
    %937 = vmatprep.subr.mxu0 0.0
    %938 = vmatpush1.msra.mxu0 0.0
    %939 = vmatprep.subr.mxu0 0.0
    %940 = vmatpush1.msra.mxu0 0.0
    %941 = vmatprep.subr.mxu0 0.0
    %942 = vmatpush1.msra.mxu0 0.0
    %943 = vmatprep.subr.mxu0 0.0
    %944 = vmatpush1.msra.mxu0 0.0
    %945 = vmatprep.subr.mxu0 0.0
    %946 = vmatpush1.msra.mxu0 0.0
    %947 = vmatprep.subr.mxu0 0.0
    %948 = vmatpush1.msra.mxu0 0.0
    %949 = vmatprep.subr.mxu0 0.0
    %950 = vmatpush1.msra.mxu0 0.0
    %951 = vmatprep.subr.mxu0 0.0
    %952 = vmatpush1.msra.mxu0 0.0
    %953 = vmatprep.subr.mxu0 0.0
    %954 = vmatpush1.msra.mxu0 0.0
    %955 = vmatprep.subr.mxu0 0.0
    %956 = vmatpush1.msra.mxu0 0.0
    %957 = vmatprep.subr.mxu0 0.0
    %958 = vmatpush1.msra.mxu0 0.0
    %959 = vmatprep.subr.mxu0 0.0
    %960 = vmatpush1.msra.mxu0 0.0
    %961 = vmatprep.subr.mxu0 0.0
    %962 = vmatpush1.msra.mxu0 0.0
    %963 = vmatprep.subr.mxu0 0.0
    %964 = vmatpush1.msra.mxu0 0.0
    %965 = vmatprep.subr.mxu0 0.0
    %966 = vmatpush1.msra.mxu0 0.0
    %967 = vmatprep.subr.mxu0 0.0
    %968 = vmatpush1.msra.mxu0 0.0
    %969 = vmatprep.subr.mxu0 0.0
    %970 = vmatpush1.msra.mxu0 0.0
    %971 = vmatprep.mubr.f32.mxu0 0.0
    %972 = vmatmul.mubr.f32.gmra.mrb[0].mxu0 %v902
    %v973 = vpop.f32.mrb[0].mxu0
    %v974 = vadd.f32 0.0, %v973
    %v975 = vpop.f32.mrb[0].mxu0
    %976 = vmatprep.mubr.f32.mxu0 0.0
    %977 = vmatmul.mubr.f32.gmra.mrb[0].mxu0 %v905
    %v978 = vpop.f32.mrb[0].mxu0
    %v979 = vadd.f32 0.0, %v978
    %v980 = vpop.f32.mrb[0].mxu0
    %981 = vdwg.mxu0
    %984 = vrot.lane.b32.xlu0 %v974, 64
    %v985 = vpop.permute.xlu0 %984
    %986 = vrot.lane.b32.xlu0 %v979, 64
    %v987 = vpop.permute.xlu0 %986
    %v990 = vadd.f32 %v869, %v985
    %v991 = vadd.f32 %v874, %v987
    %v992 = vtanh.pop %v990
    %v993 = vtanh.pop %v991
    %v994 = vsub.f32 1.0, %v896
    %v995 = vsub.f32 1.0, %v898
    %996 = vrot.lane.b32.xlu0 %v422, 32
    %v997 = vpop.permute.xlu0 %996
    %998 = vrot.lane.b32.xlu0 %v423, 32
    %v999 = vpop.permute.xlu0 %998
    %v1002 = vmul.f32 %v994, %v997
    %v1003 = vmul.f32 %v995, %v999
    %1006 = vrot.lane.b32.xlu0 %v992, 96
    %v1007 = vpop.permute.xlu0 %1006
    %1008 = vrot.lane.b32.xlu0 %v993, 96
    %v1009 = vpop.permute.xlu0 %1008
    %v1012 = vmul.f32 %v896, %v1007
    %v1013 = vmul.f32 %v898, %v1009
    %v1014 = vadd.f32 %v1002, %v1012
    %v1015 = vadd.f32 %v1003, %v1013
    %1018 = vrot.lane.b32.xlu0 %v1014, 96
    %v1019 = vpop.permute.xlu0 %1018
    %1020 = vrot.lane.b32.xlu0 %v1015, 96
    %v1021 = vpop.permute.xlu0 %1020
    %v1022 = vsel %vm424, %v1019, 0
    %v1024 = vsel %vm424, %v1021, 0
    %1026 = vmatprep.subr.mxu0 0.0
    %1027 = vmatpush1.msra.mxu0 %v114
    %1028 = vmatprep.subr.mxu0 0.0
    %1029 = vmatpush1.msra.mxu0 %v115
    %1030 = vmatprep.subr.mxu0 0.0
    %1031 = vmatpush1.msra.mxu0 %v116
    %1032 = vmatprep.subr.mxu0 0.0
    %1033 = vmatpush1.msra.mxu0 %v117
    %1034 = vmatprep.subr.mxu0 0.0
    %1035 = vmatpush1.msra.mxu0 0.0
    %1036 = vmatprep.subr.mxu0 0.0
    %1037 = vmatpush1.msra.mxu0 0.0
    %1038 = vmatprep.subr.mxu0 0.0
    %1039 = vmatpush1.msra.mxu0 0.0
    %1040 = vmatprep.subr.mxu0 0.0
    %1041 = vmatpush1.msra.mxu0 0.0
    %1042 = vmatprep.subr.mxu0 0.0
    %1043 = vmatpush1.msra.mxu0 0.0
    %1044 = vmatprep.subr.mxu0 0.0
    %1045 = vmatpush1.msra.mxu0 0.0
    %1046 = vmatprep.subr.mxu0 0.0
    %1047 = vmatpush1.msra.mxu0 0.0
    %1048 = vmatprep.subr.mxu0 0.0
    %1049 = vmatpush1.msra.mxu0 0.0
    %1050 = vmatprep.subr.mxu0 0.0
    %1051 = vmatpush1.msra.mxu0 0.0
    %1052 = vmatprep.subr.mxu0 0.0
    %1053 = vmatpush1.msra.mxu0 0.0
    %1054 = vmatprep.subr.mxu0 0.0
    %1055 = vmatpush1.msra.mxu0 0.0
    %1056 = vmatprep.subr.mxu0 0.0
    %1057 = vmatpush1.msra.mxu0 0.0
    %1058 = vmatprep.subr.mxu0 0.0
    %1059 = vmatpush1.msra.mxu0 0.0
    %1060 = vmatprep.subr.mxu0 0.0
    %1061 = vmatpush1.msra.mxu0 0.0
    %1062 = vmatprep.subr.mxu0 0.0
    %1063 = vmatpush1.msra.mxu0 0.0
    %1064 = vmatprep.subr.mxu0 0.0
    %1065 = vmatpush1.msra.mxu0 0.0
    %1066 = vmatprep.subr.mxu0 0.0
    %1067 = vmatpush1.msra.mxu0 0.0
    %1068 = vmatprep.subr.mxu0 0.0
    %1069 = vmatpush1.msra.mxu0 0.0
    %1070 = vmatprep.subr.mxu0 0.0
    %1071 = vmatpush1.msra.mxu0 0.0
    %1072 = vmatprep.subr.mxu0 0.0
    %1073 = vmatpush1.msra.mxu0 0.0
    %1074 = vmatprep.subr.mxu0 0.0
    %1075 = vmatpush1.msra.mxu0 0.0
    %1076 = vmatprep.subr.mxu0 0.0
    %1077 = vmatpush1.msra.mxu0 0.0
    %1078 = vmatprep.subr.mxu0 0.0
    %1079 = vmatpush1.msra.mxu0 0.0
    %1080 = vmatprep.subr.mxu0 0.0
    %1081 = vmatpush1.msra.mxu0 0.0
    %1082 = vmatprep.subr.mxu0 0.0
    %1083 = vmatpush1.msra.mxu0 0.0
    %1084 = vmatprep.subr.mxu0 0.0
    %1085 = vmatpush1.msra.mxu0 0.0
    %1086 = vmatprep.subr.mxu0 0.0
    %1087 = vmatpush1.msra.mxu0 0.0
    %1088 = vmatprep.subr.mxu0 0.0
    %1089 = vmatpush1.msra.mxu0 0.0
    %1090 = vmatprep.mubr.f32.mxu0 0.0
    %1091 = vmatmul.mubr.f32.gmra.mrb[0].mxu0 %v1022
    %v1092 = vpop.f32.mrb[0].mxu0
    %v1093 = vadd.f32 0.0, %v1092
    %v1094 = vpop.f32.mrb[0].mxu0
    %1095 = vmatprep.mubr.f32.mxu0 0.0
    %1096 = vmatmul.mubr.f32.gmra.mrb[0].mxu0 %v1024
    %v1097 = vpop.f32.mrb[0].mxu0
    %v1098 = vadd.f32 0.0, %v1097
    %v1099 = vpop.f32.mrb[0].mxu0
    %1100 = vdwg.mxu0
    %v1101 = vadd.f32 %v1093, %v510
    %v1102 = vadd.f32 %v1098, %v510
    %v1105 = vcombine.high %v1101, %v1101
    %v1107 = vunpack.c.l.s4 1966171168
    %v1108 = vunpack.c.0.s8 %v1107
    %v1109 = vlaneseq
    %v1110 = vshrl.u32 %v1109, 7
    %v1111 = vsub.s32 %v1108, %v1110
    %v1112 = vrot.slane %v1101, %v1111
    %v1114 = vunpack.c.l.s4 1966171168
    %v1115 = vunpack.c.0.s8 %v1114
    %v1116 = vlaneseq
    %v1117 = vshrl.u32 %v1116, 7
    %v1118 = vsub.s32 %v1115, %v1117
    %v1119 = vrot.slane %v1105, %v1118
    %v1120 = vcombine.high %v1112, %v1112
    %v1121 = vcombine.high %v1119, %v1119
    %v1123 = vunpack.c.l.s4 1966171168
    %v1124 = vunpack.c.0.s8 %v1123
    %v1125 = vlaneseq
    %v1126 = vshrl.u32 %v1125, 7
    %v1127 = vsub.s32 %v1124, %v1126
    %v1128 = vrot.slane %v1112, %v1127
    %v1130 = vunpack.c.l.s4 1966171168
    %v1131 = vunpack.c.0.s8 %v1130
    %v1132 = vlaneseq
    %v1133 = vshrl.u32 %v1132, 7
    %v1134 = vsub.s32 %v1131, %v1133
    %v1135 = vrot.slane %v1119, %v1134
    %v1137 = vunpack.c.l.s4 1966171168
    %v1138 = vunpack.c.0.s8 %v1137
    %v1139 = vlaneseq
    %v1140 = vshrl.u32 %v1139, 7
    %v1141 = vsub.s32 %v1138, %v1140
    %v1142 = vrot.slane %v1120, %v1141
    %v1144 = vunpack.c.l.s4 1966171168
    %v1145 = vunpack.c.0.s8 %v1144
    %v1146 = vlaneseq
    %v1147 = vshrl.u32 %v1146, 7
    %v1148 = vsub.s32 %v1145, %v1147
    %v1149 = vrot.slane %v1121, %v1148
    %v1150 = vcombine.high %v1128, %v1128
    %v1151 = vcombine.high %v1135, %v1135
    %v1152 = vcombine.high %v1142, %v1142
    %v1153 = vcombine.high %v1149, %v1149
    %v1154 = vcombine.high %v1102, %v1102
    %v1156 = vunpack.c.l.s4 1966171168
    %v1157 = vunpack.c.0.s8 %v1156
    %v1158 = vlaneseq
    %v1159 = vshrl.u32 %v1158, 7
    %v1160 = vsub.s32 %v1157, %v1159
    %v1161 = vrot.slane %v1102, %v1160
    %v1163 = vunpack.c.l.s4 1966171168
    %v1164 = vunpack.c.0.s8 %v1163
    %v1165 = vlaneseq
    %v1166 = vshrl.u32 %v1165, 7
    %v1167 = vsub.s32 %v1164, %v1166
    %v1168 = vrot.slane %v1154, %v1167
    %v1169 = vcombine.high %v1161, %v1161
    %v1170 = vcombine.high %v1168, %v1168
    %v1172 = vunpack.c.l.s4 1966171168
    %v1173 = vunpack.c.0.s8 %v1172
    %v1174 = vlaneseq
    %v1175 = vshrl.u32 %v1174, 7
    %v1176 = vsub.s32 %v1173, %v1175
    %v1177 = vrot.slane %v1161, %v1176
    %v1179 = vunpack.c.l.s4 1966171168
    %v1180 = vunpack.c.0.s8 %v1179
    %v1181 = vlaneseq
    %v1182 = vshrl.u32 %v1181, 7
    %v1183 = vsub.s32 %v1180, %v1182
    %v1184 = vrot.slane %v1168, %v1183
    %v1186 = vunpack.c.l.s4 1966171168
    %v1187 = vunpack.c.0.s8 %v1186
    %v1188 = vlaneseq
    %v1189 = vshrl.u32 %v1188, 7
    %v1190 = vsub.s32 %v1187, %v1189
    %v1191 = vrot.slane %v1169, %v1190
    %v1193 = vunpack.c.l.s4 1966171168
    %v1194 = vunpack.c.0.s8 %v1193
    %v1195 = vlaneseq
    %v1196 = vshrl.u32 %v1195, 7
    %v1197 = vsub.s32 %v1194, %v1196
    %v1198 = vrot.slane %v1170, %v1197
    %v1199 = vcombine.high %v1177, %v1177
    %v1200 = vcombine.high %v1184, %v1184
    %v1201 = vcombine.high %v1191, %v1191
    %v1202 = vcombine.high %v1198, %v1198
    %v1203 = vlaneseq
    %v1204 = vshrl.u32 %v1203, 7
    %v1205 = vsub.s32 0, %v1204
    %v1206 = vrot.slane %v1128, %v1205
    %v1207 = vlaneseq
    %v1208 = vshrl.u32 %v1207, 7
    %v1209 = vsub.s32 0, %v1208
    %v1210 = vrot.slane %v1142, %v1209
    %v1211 = vlaneseq
    %v1212 = vshrl.u32 %v1211, 7
    %v1213 = vsub.s32 0, %v1212
    %v1214 = vrot.slane %v1150, %v1213
    %v1215 = vlaneseq
    %v1216 = vshrl.u32 %v1215, 7
    %v1217 = vsub.s32 0, %v1216
    %v1218 = vrot.slane %v1152, %v1217
    %v1219 = vlaneseq
    %v1220 = vshrl.u32 %v1219, 7
    %v1221 = vsub.s32 0, %v1220
    %v1222 = vrot.slane %v1135, %v1221
    %v1223 = vlaneseq
    %v1224 = vshrl.u32 %v1223, 7
    %v1225 = vsub.s32 0, %v1224
    %v1226 = vrot.slane %v1149, %v1225
    %v1227 = vlaneseq
    %v1228 = vshrl.u32 %v1227, 7
    %v1229 = vsub.s32 0, %v1228
    %v1230 = vrot.slane %v1151, %v1229
    %v1231 = vlaneseq
    %v1232 = vshrl.u32 %v1231, 7
    %v1233 = vsub.s32 0, %v1232
    %v1234 = vrot.slane %v1153, %v1233
    %v1235 = vlaneseq
    %v1236 = vshrl.u32 %v1235, 7
    %v1237 = vsub.s32 0, %v1236
    %v1238 = vrot.slane %v1177, %v1237
    %v1239 = vlaneseq
    %v1240 = vshrl.u32 %v1239, 7
    %v1241 = vsub.s32 0, %v1240
    %v1242 = vrot.slane %v1191, %v1241
    %v1243 = vlaneseq
    %v1244 = vshrl.u32 %v1243, 7
    %v1245 = vsub.s32 0, %v1244
    %v1246 = vrot.slane %v1199, %v1245
    %v1247 = vlaneseq
    %v1248 = vshrl.u32 %v1247, 7
    %v1249 = vsub.s32 0, %v1248
    %v1250 = vrot.slane %v1201, %v1249
    %v1251 = vlaneseq
    %v1252 = vshrl.u32 %v1251, 7
    %v1253 = vsub.s32 0, %v1252
    %v1254 = vrot.slane %v1184, %v1253
    %v1255 = vlaneseq
    %v1256 = vshrl.u32 %v1255, 7
    %v1257 = vsub.s32 0, %v1256
    %v1258 = vrot.slane %v1198, %v1257
    %v1259 = vlaneseq
    %v1260 = vshrl.u32 %v1259, 7
    %v1261 = vsub.s32 0, %v1260
    %v1262 = vrot.slane %v1200, %v1261
    %v1263 = vlaneseq
    %v1264 = vshrl.u32 %v1263, 7
    %v1265 = vsub.s32 0, %v1264
    %v1266 = vrot.slane %v1202, %v1265
    %v1283 = vmul.f32 %v204, %v1206
    %v1284 = vmul.f32 %v211, %v1210
    %v1285 = vmul.f32 %v218, %v1214
    %v1286 = vmul.f32 %v225, %v1218
    %v1287 = vmul.f32 %v232, %v1222
    %v1288 = vmul.f32 %v239, %v1226
    %v1289 = vmul.f32 %v246, %v1230
    %v1290 = vmul.f32 %v253, %v1234
    %v1291 = vmul.f32 %v260, %v1238
    %v1292 = vmul.f32 %v267, %v1242
    %v1293 = vmul.f32 %v274, %v1246
    %v1294 = vmul.f32 %v281, %v1250
    %v1295 = vmul.f32 %v288, %v1254
    %v1296 = vmul.f32 %v295, %v1258
    %v1297 = vmul.f32 %v302, %v1262
    %v1298 = vmul.f32 %v309, %v1266
    %v1299 = vsel %vm424, %v1283, 0.0
    %v1300 = vsel %vm424, %v1284, 0.0
    %v1301 = vadd.f32 %v1299, %v1300
    %v1302 = vsel %vm424, %v1285, 0.0
    %v1303 = vadd.f32 %v1301, %v1302
    %v1304 = vsel %vm424, %v1286, 0.0
    %v1305 = vadd.f32 %v1303, %v1304
    %v1306 = vsel %vm424, %v1287, 0.0
    %v1307 = vadd.f32 %v1305, %v1306
    %v1308 = vsel %vm424, %v1288, 0.0
    %v1309 = vadd.f32 %v1307, %v1308
    %v1310 = vsel %vm424, %v1289, 0.0
    %v1311 = vadd.f32 %v1309, %v1310
    %v1312 = vsel %vm424, %v1290, 0.0
    %v1313 = vadd.f32 %v1311, %v1312
    %v1314 = vsel %vm424, %v1291, 0.0
    %v1315 = vsel %vm424, %v1292, 0.0
    %v1316 = vadd.f32 %v1314, %v1315
    %v1317 = vsel %vm424, %v1293, 0.0
    %v1318 = vadd.f32 %v1316, %v1317
    %v1319 = vsel %vm424, %v1294, 0.0
    %v1320 = vadd.f32 %v1318, %v1319
    %v1321 = vsel %vm424, %v1295, 0.0
    %v1322 = vadd.f32 %v1320, %v1321
    %v1323 = vsel %vm424, %v1296, 0.0
    %v1324 = vadd.f32 %v1322, %v1323
    %v1325 = vsel %vm424, %v1297, 0.0
    %v1326 = vadd.f32 %v1324, %v1325
    %v1327 = vsel %vm424, %v1298, 0.0
    %v1328 = vadd.f32 %v1326, %v1327
    %v1329 = vmul.f32 %v316, %v1206
    %v1330 = vmul.f32 %v323, %v1210
    %v1331 = vmul.f32 %v330, %v1214
    %v1332 = vmul.f32 %v337, %v1218
    %v1333 = vmul.f32 %v344, %v1222
    %v1334 = vmul.f32 %v351, %v1226
    %v1335 = vmul.f32 %v358, %v1230
    %v1336 = vmul.f32 %v365, %v1234
    %v1337 = vmul.f32 %v372, %v1238
    %v1338 = vmul.f32 %v379, %v1242
    %v1339 = vmul.f32 %v386, %v1246
    %v1340 = vmul.f32 %v393, %v1250
    %v1341 = vmul.f32 %v400, %v1254
    %v1342 = vmul.f32 %v407, %v1258
    %v1343 = vmul.f32 %v414, %v1262
    %v1344 = vmul.f32 %v421, %v1266
    %v1345 = vsel %vm756, %v1329, 0.0
    %v1346 = vsel %vm756, %v1330, 0.0
    %v1347 = vadd.f32 %v1345, %v1346
    %v1348 = vsel %vm756, %v1331, 0.0
    %v1349 = vadd.f32 %v1347, %v1348
    %v1350 = vsel %vm756, %v1332, 0.0
    %v1351 = vadd.f32 %v1349, %v1350
    %v1352 = vsel %vm756, %v1333, 0.0
    %v1353 = vadd.f32 %v1351, %v1352
    %v1354 = vsel %vm756, %v1334, 0.0
    %v1355 = vadd.f32 %v1353, %v1354
    %v1356 = vsel %vm756, %v1335, 0.0
    %v1357 = vadd.f32 %v1355, %v1356
    %v1358 = vsel %vm756, %v1336, 0.0
    %v1359 = vadd.f32 %v1357, %v1358
    %v1360 = vsel %vm756, %v1337, 0.0
    %v1361 = vsel %vm756, %v1338, 0.0
    %v1362 = vadd.f32 %v1360, %v1361
    %v1363 = vsel %vm756, %v1339, 0.0
    %v1364 = vadd.f32 %v1362, %v1363
    %v1365 = vsel %vm756, %v1340, 0.0
    %v1366 = vadd.f32 %v1364, %v1365
    %v1367 = vsel %vm756, %v1341, 0.0
    %v1368 = vadd.f32 %v1366, %v1367
    %v1369 = vsel %vm756, %v1342, 0.0
    %v1370 = vadd.f32 %v1368, %v1369
    %v1371 = vsel %vm756, %v1343, 0.0
    %v1372 = vadd.f32 %v1370, %v1371
    %v1373 = vsel %vm756, %v1344, 0.0
    %v1374 = vadd.f32 %v1372, %v1373
    %v1375 = vsel %vm424, %v1313, %v1359
    %v1376 = vsel %vm424, %v1328, %v1374
    %v1378 = vsel %vm795, %v1375, 0
    %v1381 = vsel %vm795, %v1376, 0
    %1383 = vmatprep.subr.mxu0 0.0
    %1384 = vmatpush1.msra.mxu0 %v118
    %1385 = vmatprep.subr.mxu0 0.0
    %1386 = vmatpush1.msra.mxu0 %v119
    %1387 = vmatprep.subr.mxu0 0.0
    %1388 = vmatpush1.msra.mxu0 %v120
    %1389 = vmatprep.subr.mxu0 0.0
    %1390 = vmatpush1.msra.mxu0 %v121
    %1391 = vmatprep.subr.mxu0 0.0
    %1392 = vmatpush1.msra.mxu0 %v122
    %1393 = vmatprep.subr.mxu0 0.0
    %1394 = vmatpush1.msra.mxu0 %v123
    %1395 = vmatprep.subr.mxu0 0.0
    %1396 = vmatpush1.msra.mxu0 %v124
    %1397 = vmatprep.subr.mxu0 0.0
    %1398 = vmatpush1.msra.mxu0 %v125
    %1399 = vmatprep.subr.mxu0 0.0
    %1400 = vmatpush1.msra.mxu0 0.0
    %1401 = vmatprep.subr.mxu0 0.0
    %1402 = vmatpush1.msra.mxu0 0.0
    %1403 = vmatprep.subr.mxu0 0.0
    %1404 = vmatpush1.msra.mxu0 0.0
    %1405 = vmatprep.subr.mxu0 0.0
    %1406 = vmatpush1.msra.mxu0 0.0
    %1407 = vmatprep.subr.mxu0 0.0
    %1408 = vmatpush1.msra.mxu0 0.0
    %1409 = vmatprep.subr.mxu0 0.0
    %1410 = vmatpush1.msra.mxu0 0.0
    %1411 = vmatprep.subr.mxu0 0.0
    %1412 = vmatpush1.msra.mxu0 0.0
    %1413 = vmatprep.subr.mxu0 0.0
    %1414 = vmatpush1.msra.mxu0 0.0
    %1415 = vmatprep.subr.mxu0 0.0
    %1416 = vmatpush1.msra.mxu0 0.0
    %1417 = vmatprep.subr.mxu0 0.0
    %1418 = vmatpush1.msra.mxu0 0.0
    %1419 = vmatprep.subr.mxu0 0.0
    %1420 = vmatpush1.msra.mxu0 0.0
    %1421 = vmatprep.subr.mxu0 0.0
    %1422 = vmatpush1.msra.mxu0 0.0
    %1423 = vmatprep.subr.mxu0 0.0
    %1424 = vmatpush1.msra.mxu0 0.0
    %1425 = vmatprep.subr.mxu0 0.0
    %1426 = vmatpush1.msra.mxu0 0.0
    %1427 = vmatprep.subr.mxu0 0.0
    %1428 = vmatpush1.msra.mxu0 0.0
    %1429 = vmatprep.subr.mxu0 0.0
    %1430 = vmatpush1.msra.mxu0 0.0
    %1431 = vmatprep.subr.mxu0 0.0
    %1432 = vmatpush1.msra.mxu0 0.0
    %1433 = vmatprep.subr.mxu0 0.0
    %1434 = vmatpush1.msra.mxu0 0.0
    %1435 = vmatprep.subr.mxu0 0.0
    %1436 = vmatpush1.msra.mxu0 0.0
    %1437 = vmatprep.subr.mxu0 0.0
    %1438 = vmatpush1.msra.mxu0 0.0
    %1439 = vmatprep.subr.mxu0 0.0
    %1440 = vmatpush1.msra.mxu0 0.0
    %1441 = vmatprep.subr.mxu0 0.0
    %1442 = vmatpush1.msra.mxu0 0.0
    %1443 = vmatprep.subr.mxu0 0.0
    %1444 = vmatpush1.msra.mxu0 0.0
    %1445 = vmatprep.subr.mxu0 0.0
    %1446 = vmatpush1.msra.mxu0 0.0
    %1447 = vmatprep.mubr.f32.mxu0 0.0
    %1448 = vmatmul.mubr.f32.gmra.mrb[0].mxu0 %v1378
    %v1449 = vpop.f32.mrb[0].mxu0
    %v1450 = vadd.f32 %v793, %v1449
    %v1451 = vpop.f32.mrb[0].mxu0
    %1452 = vmatprep.mubr.f32.mxu0 0.0
    %1453 = vmatmul.mubr.f32.gmra.mrb[0].mxu0 %v1381
    %v1454 = vpop.f32.mrb[0].mxu0
    %v1455 = vadd.f32 %v793, %v1454
    %v1456 = vpop.f32.mrb[0].mxu0
    %1457 = vdwg.mxu0
    %1460 = vrot.lane.b32.xlu0 %v1093, 64
    %v1461 = vpop.permute.xlu0 %1460
    %1462 = vrot.lane.b32.xlu0 %v1098, 64
    %v1463 = vpop.permute.xlu0 %1462
    %v1466 = vadd.f32 %v1450, %v1461
    %v1467 = vadd.f32 %v1455, %v1463
    %v1468 = vxor.u32 %v1466, 2147483648
    %v1469 = vxor.u32 %v1467, 2147483648
    %v1470 = vmul.f32 %v1468, 1.442695
    %v1471 = vpow.pop %v1470
    %v1472 = vmul.f32 %v1469, 1.442695
    %v1473 = vpow.pop %v1472
    %v1474 = vadd.f32 %v1471, 1.0
    %v1475 = vadd.f32 %v1473, 1.0
    %v1476 = vrcp.pop %v1474
    %v1477 = vmul.f32 1.0, %v1476
    %v1478 = vrcp.pop %v1475
    %v1479 = vmul.f32 1.0, %v1478
    %v1482 = vmul.f32 %v1477, %v1019
    %v1483 = vmul.f32 %v1479, %v1021
    %v1485 = vsel %vm424, %v1482, 0
    %v1488 = vsel %vm424, %v1483, 0
    %1490 = vmatprep.subr.mxu0 0.0
    %1491 = vmatpush1.msra.mxu0 %v126
    %1492 = vmatprep.subr.mxu0 0.0
    %1493 = vmatpush1.msra.mxu0 %v127
    %1494 = vmatprep.subr.mxu0 0.0
    %1495 = vmatpush1.msra.mxu0 %v128
    %1496 = vmatprep.subr.mxu0 0.0
    %1497 = vmatpush1.msra.mxu0 %v129
    %1498 = vmatprep.subr.mxu0 0.0
    %1499 = vmatpush1.msra.mxu0 0.0
    %1500 = vmatprep.subr.mxu0 0.0
    %1501 = vmatpush1.msra.mxu0 0.0
    %1502 = vmatprep.subr.mxu0 0.0
    %1503 = vmatpush1.msra.mxu0 0.0
    %1504 = vmatprep.subr.mxu0 0.0
    %1505 = vmatpush1.msra.mxu0 0.0
    %1506 = vmatprep.subr.mxu0 0.0
    %1507 = vmatpush1.msra.mxu0 0.0
    %1508 = vmatprep.subr.mxu0 0.0
    %1509 = vmatpush1.msra.mxu0 0.0
    %1510 = vmatprep.subr.mxu0 0.0
    %1511 = vmatpush1.msra.mxu0 0.0
    %1512 = vmatprep.subr.mxu0 0.0
    %1513 = vmatpush1.msra.mxu0 0.0
    %1514 = vmatprep.subr.mxu0 0.0
    %1515 = vmatpush1.msra.mxu0 0.0
    %1516 = vmatprep.subr.mxu0 0.0
    %1517 = vmatpush1.msra.mxu0 0.0
    %1518 = vmatprep.subr.mxu0 0.0
    %1519 = vmatpush1.msra.mxu0 0.0
    %1520 = vmatprep.subr.mxu0 0.0
    %1521 = vmatpush1.msra.mxu0 0.0
    %1522 = vmatprep.subr.mxu0 0.0
    %1523 = vmatpush1.msra.mxu0 0.0
    %1524 = vmatprep.subr.mxu0 0.0
    %1525 = vmatpush1.msra.mxu0 0.0
    %1526 = vmatprep.subr.mxu0 0.0
    %1527 = vmatpush1.msra.mxu0 0.0
    %1528 = vmatprep.subr.mxu0 0.0
    %1529 = vmatpush1.msra.mxu0 0.0
    %1530 = vmatprep.subr.mxu0 0.0
    %1531 = vmatpush1.msra.mxu0 0.0
    %1532 = vmatprep.subr.mxu0 0.0
    %1533 = vmatpush1.msra.mxu0 0.0
    %1534 = vmatprep.subr.mxu0 0.0
    %1535 = vmatpush1.msra.mxu0 0.0
    %1536 = vmatprep.subr.mxu0 0.0
    %1537 = vmatpush1.msra.mxu0 0.0
    %1538 = vmatprep.subr.mxu0 0.0
    %1539 = vmatpush1.msra.mxu0 0.0
    %1540 = vmatprep.subr.mxu0 0.0
    %1541 = vmatpush1.msra.mxu0 0.0
    %1542 = vmatprep.subr.mxu0 0.0
    %1543 = vmatpush1.msra.mxu0 0.0
    %1544 = vmatprep.subr.mxu0 0.0
    %1545 = vmatpush1.msra.mxu0 0.0
    %1546 = vmatprep.subr.mxu0 0.0
    %1547 = vmatpush1.msra.mxu0 0.0
    %1548 = vmatprep.subr.mxu0 0.0
    %1549 = vmatpush1.msra.mxu0 0.0
    %1550 = vmatprep.subr.mxu0 0.0
    %1551 = vmatpush1.msra.mxu0 0.0
    %1552 = vmatprep.subr.mxu0 0.0
    %1553 = vmatpush1.msra.mxu0 0.0
    %1554 = vmatprep.mubr.f32.mxu0 0.0
    %1555 = vmatmul.mubr.f32.gmra.mrb[0].mxu0 %v1485
    %v1556 = vpop.f32.mrb[0].mxu0
    %v1557 = vadd.f32 0.0, %v1556
    %v1558 = vpop.f32.mrb[0].mxu0
    %1559 = vmatprep.mubr.f32.mxu0 0.0
    %1560 = vmatmul.mubr.f32.gmra.mrb[0].mxu0 %v1488
    %v1561 = vpop.f32.mrb[0].mxu0
    %v1562 = vadd.f32 0.0, %v1561
    %v1563 = vpop.f32.mrb[0].mxu0
    %1564 = vdwg.mxu0
    %1567 = vrot.lane.b32.xlu0 %v1557, 64
    %v1568 = vpop.permute.xlu0 %1567
    %1569 = vrot.lane.b32.xlu0 %v1562, 64
    %v1570 = vpop.permute.xlu0 %1569
    %v1573 = vadd.f32 %v1450, %v1568
    %v1574 = vadd.f32 %v1455, %v1570
    %v1575 = vtanh.pop %v1573
    %v1576 = vtanh.pop %v1574
    %v1577 = vsub.f32 1.0, %v1477
    %v1578 = vsub.f32 1.0, %v1479
    %v1579 = vmul.f32 %v1577, %v1014
    %v1580 = vmul.f32 %v1578, %v1015
    %1583 = vrot.lane.b32.xlu0 %v1575, 96
    %v1584 = vpop.permute.xlu0 %1583
    %1585 = vrot.lane.b32.xlu0 %v1576, 96
    %v1586 = vpop.permute.xlu0 %1585
    %v1589 = vmul.f32 %v1477, %v1584
    %v1590 = vmul.f32 %v1479, %v1586
    %v1591 = vadd.f32 %v1579, %v1589
    %v1592 = vadd.f32 %v1580, %v1590
    %1595 = vrot.lane.b32.xlu0 %v1591, 96
    %v1596 = vpop.permute.xlu0 %1595
    %1597 = vrot.lane.b32.xlu0 %v1592, 96
    %v1598 = vpop.permute.xlu0 %1597
    %v1599 = vsel %vm424, %v1596, 0
    %v1601 = vsel %vm424, %v1598, 0
    %1603 = vmatprep.subr.mxu0 0.0
    %1604 = vmatpush1.msra.mxu0 %v114
    %1605 = vmatprep.subr.mxu0 0.0
    %1606 = vmatpush1.msra.mxu0 %v115
    %1607 = vmatprep.subr.mxu0 0.0
    %1608 = vmatpush1.msra.mxu0 %v116
    %1609 = vmatprep.subr.mxu0 0.0
    %1610 = vmatpush1.msra.mxu0 %v117
    %1611 = vmatprep.subr.mxu0 0.0
    %1612 = vmatpush1.msra.mxu0 0.0
    %1613 = vmatprep.subr.mxu0 0.0
    %1614 = vmatpush1.msra.mxu0 0.0
    %1615 = vmatprep.subr.mxu0 0.0
    %1616 = vmatpush1.msra.mxu0 0.0
    %1617 = vmatprep.subr.mxu0 0.0
    %1618 = vmatpush1.msra.mxu0 0.0
    %1619 = vmatprep.subr.mxu0 0.0
    %1620 = vmatpush1.msra.mxu0 0.0
    %1621 = vmatprep.subr.mxu0 0.0
    %1622 = vmatpush1.msra.mxu0 0.0
    %1623 = vmatprep.subr.mxu0 0.0
    %1624 = vmatpush1.msra.mxu0 0.0
    %1625 = vmatprep.subr.mxu0 0.0
    %1626 = vmatpush1.msra.mxu0 0.0
    %1627 = vmatprep.subr.mxu0 0.0
    %1628 = vmatpush1.msra.mxu0 0.0
    %1629 = vmatprep.subr.mxu0 0.0
    %1630 = vmatpush1.msra.mxu0 0.0
    %1631 = vmatprep.subr.mxu0 0.0
    %1632 = vmatpush1.msra.mxu0 0.0
    %1633 = vmatprep.subr.mxu0 0.0
    %1634 = vmatpush1.msra.mxu0 0.0
    %1635 = vmatprep.subr.mxu0 0.0
    %1636 = vmatpush1.msra.mxu0 0.0
    %1637 = vmatprep.subr.mxu0 0.0
    %1638 = vmatpush1.msra.mxu0 0.0
    %1639 = vmatprep.subr.mxu0 0.0
    %1640 = vmatpush1.msra.mxu0 0.0
    %1641 = vmatprep.subr.mxu0 0.0
    %1642 = vmatpush1.msra.mxu0 0.0
    %1643 = vmatprep.subr.mxu0 0.0
    %1644 = vmatpush1.msra.mxu0 0.0
    %1645 = vmatprep.subr.mxu0 0.0
    %1646 = vmatpush1.msra.mxu0 0.0
    %1647 = vmatprep.subr.mxu0 0.0
    %1648 = vmatpush1.msra.mxu0 0.0
    %1649 = vmatprep.subr.mxu0 0.0
    %1650 = vmatpush1.msra.mxu0 0.0
    %1651 = vmatprep.subr.mxu0 0.0
    %1652 = vmatpush1.msra.mxu0 0.0
    %1653 = vmatprep.subr.mxu0 0.0
    %1654 = vmatpush1.msra.mxu0 0.0
    %1655 = vmatprep.subr.mxu0 0.0
    %1656 = vmatpush1.msra.mxu0 0.0
    %1657 = vmatprep.subr.mxu0 0.0
    %1658 = vmatpush1.msra.mxu0 0.0
    %1659 = vmatprep.subr.mxu0 0.0
    %1660 = vmatpush1.msra.mxu0 0.0
    %1661 = vmatprep.subr.mxu0 0.0
    %1662 = vmatpush1.msra.mxu0 0.0
    %1663 = vmatprep.subr.mxu0 0.0
    %1664 = vmatpush1.msra.mxu0 0.0
    %1665 = vmatprep.subr.mxu0 0.0
    %1666 = vmatpush1.msra.mxu0 0.0
    %1667 = vmatprep.mubr.f32.mxu0 0.0
    %1668 = vmatmul.mubr.f32.gmra.mrb[0].mxu0 %v1599
    %v1669 = vpop.f32.mrb[0].mxu0
    %v1670 = vadd.f32 0.0, %v1669
    %v1671 = vpop.f32.mrb[0].mxu0
    %1672 = vmatprep.mubr.f32.mxu0 0.0
    %1673 = vmatmul.mubr.f32.gmra.mrb[0].mxu0 %v1601
    %v1674 = vpop.f32.mrb[0].mxu0
    %v1675 = vadd.f32 0.0, %v1674
    %v1676 = vpop.f32.mrb[0].mxu0
    %1677 = vdwg.mxu0
    %v1678 = vadd.f32 %v1670, %v510
    %v1679 = vadd.f32 %v1675, %v510
    %v1682 = vcombine.high %v1678, %v1678
    %v1684 = vunpack.c.l.s4 1966171168
    %v1685 = vunpack.c.0.s8 %v1684
    %v1686 = vlaneseq
    %v1687 = vshrl.u32 %v1686, 7
    %v1688 = vsub.s32 %v1685, %v1687
    %v1689 = vrot.slane %v1678, %v1688
    %v1691 = vunpack.c.l.s4 1966171168
    %v1692 = vunpack.c.0.s8 %v1691
    %v1693 = vlaneseq
    %v1694 = vshrl.u32 %v1693, 7
    %v1695 = vsub.s32 %v1692, %v1694
    %v1696 = vrot.slane %v1682, %v1695
    %v1697 = vcombine.high %v1689, %v1689
    %v1698 = vcombine.high %v1696, %v1696
    %v1700 = vunpack.c.l.s4 1966171168
    %v1701 = vunpack.c.0.s8 %v1700
    %v1702 = vlaneseq
    %v1703 = vshrl.u32 %v1702, 7
    %v1704 = vsub.s32 %v1701, %v1703
    %v1705 = vrot.slane %v1689, %v1704
    %v1707 = vunpack.c.l.s4 1966171168
    %v1708 = vunpack.c.0.s8 %v1707
    %v1709 = vlaneseq
    %v1710 = vshrl.u32 %v1709, 7
    %v1711 = vsub.s32 %v1708, %v1710
    %v1712 = vrot.slane %v1696, %v1711
    %v1714 = vunpack.c.l.s4 1966171168
    %v1715 = vunpack.c.0.s8 %v1714
    %v1716 = vlaneseq
    %v1717 = vshrl.u32 %v1716, 7
    %v1718 = vsub.s32 %v1715, %v1717
    %v1719 = vrot.slane %v1697, %v1718
    %v1721 = vunpack.c.l.s4 1966171168
    %v1722 = vunpack.c.0.s8 %v1721
    %v1723 = vlaneseq
    %v1724 = vshrl.u32 %v1723, 7
    %v1725 = vsub.s32 %v1722, %v1724
    %v1726 = vrot.slane %v1698, %v1725
    %v1727 = vcombine.high %v1705, %v1705
    %v1728 = vcombine.high %v1712, %v1712
    %v1729 = vcombine.high %v1719, %v1719
    %v1730 = vcombine.high %v1726, %v1726
    %v1731 = vcombine.high %v1679, %v1679
    %v1733 = vunpack.c.l.s4 1966171168
    %v1734 = vunpack.c.0.s8 %v1733
    %v1735 = vlaneseq
    %v1736 = vshrl.u32 %v1735, 7
    %v1737 = vsub.s32 %v1734, %v1736
    %v1738 = vrot.slane %v1679, %v1737
    %v1740 = vunpack.c.l.s4 1966171168
    %v1741 = vunpack.c.0.s8 %v1740
    %v1742 = vlaneseq
    %v1743 = vshrl.u32 %v1742, 7
    %v1744 = vsub.s32 %v1741, %v1743
    %v1745 = vrot.slane %v1731, %v1744
    %v1746 = vcombine.high %v1738, %v1738
    %v1747 = vcombine.high %v1745, %v1745
    %v1749 = vunpack.c.l.s4 1966171168
    %v1750 = vunpack.c.0.s8 %v1749
    %v1751 = vlaneseq
    %v1752 = vshrl.u32 %v1751, 7
    %v1753 = vsub.s32 %v1750, %v1752
    %v1754 = vrot.slane %v1738, %v1753
    %v1756 = vunpack.c.l.s4 1966171168
    %v1757 = vunpack.c.0.s8 %v1756
    %v1758 = vlaneseq
    %v1759 = vshrl.u32 %v1758, 7
    %v1760 = vsub.s32 %v1757, %v1759
    %v1761 = vrot.slane %v1745, %v1760
    %v1763 = vunpack.c.l.s4 1966171168
    %v1764 = vunpack.c.0.s8 %v1763
    %v1765 = vlaneseq
    %v1766 = vshrl.u32 %v1765, 7
    %v1767 = vsub.s32 %v1764, %v1766
    %v1768 = vrot.slane %v1746, %v1767
    %v1770 = vunpack.c.l.s4 1966171168
    %v1771 = vunpack.c.0.s8 %v1770
    %v1772 = vlaneseq
    %v1773 = vshrl.u32 %v1772, 7
    %v1774 = vsub.s32 %v1771, %v1773
    %v1775 = vrot.slane %v1747, %v1774
    %v1776 = vcombine.high %v1754, %v1754
    %v1777 = vcombine.high %v1761, %v1761
    %v1778 = vcombine.high %v1768, %v1768
    %v1779 = vcombine.high %v1775, %v1775
    %v1780 = vlaneseq
    %v1781 = vshrl.u32 %v1780, 7
    %v1782 = vsub.s32 0, %v1781
    %v1783 = vrot.slane %v1705, %v1782
    %v1784 = vlaneseq
    %v1785 = vshrl.u32 %v1784, 7
    %v1786 = vsub.s32 0, %v1785
    %v1787 = vrot.slane %v1719, %v1786
    %v1788 = vlaneseq
    %v1789 = vshrl.u32 %v1788, 7
    %v1790 = vsub.s32 0, %v1789
    %v1791 = vrot.slane %v1727, %v1790
    %v1792 = vlaneseq
    %v1793 = vshrl.u32 %v1792, 7
    %v1794 = vsub.s32 0, %v1793
    %v1795 = vrot.slane %v1729, %v1794
    %v1796 = vlaneseq
    %v1797 = vshrl.u32 %v1796, 7
    %v1798 = vsub.s32 0, %v1797
    %v1799 = vrot.slane %v1712, %v1798
    %v1800 = vlaneseq
    %v1801 = vshrl.u32 %v1800, 7
    %v1802 = vsub.s32 0, %v1801
    %v1803 = vrot.slane %v1726, %v1802
    %v1804 = vlaneseq
    %v1805 = vshrl.u32 %v1804, 7
    %v1806 = vsub.s32 0, %v1805
    %v1807 = vrot.slane %v1728, %v1806
    %v1808 = vlaneseq
    %v1809 = vshrl.u32 %v1808, 7
    %v1810 = vsub.s32 0, %v1809
    %v1811 = vrot.slane %v1730, %v1810
    %v1812 = vlaneseq
    %v1813 = vshrl.u32 %v1812, 7
    %v1814 = vsub.s32 0, %v1813
    %v1815 = vrot.slane %v1754, %v1814
    %v1816 = vlaneseq
    %v1817 = vshrl.u32 %v1816, 7
    %v1818 = vsub.s32 0, %v1817
    %v1819 = vrot.slane %v1768, %v1818
    %v1820 = vlaneseq
    %v1821 = vshrl.u32 %v1820, 7
    %v1822 = vsub.s32 0, %v1821
    %v1823 = vrot.slane %v1776, %v1822
    %v1824 = vlaneseq
    %v1825 = vshrl.u32 %v1824, 7
    %v1826 = vsub.s32 0, %v1825
    %v1827 = vrot.slane %v1778, %v1826
    %v1828 = vlaneseq
    %v1829 = vshrl.u32 %v1828, 7
    %v1830 = vsub.s32 0, %v1829
    %v1831 = vrot.slane %v1761, %v1830
    %v1832 = vlaneseq
    %v1833 = vshrl.u32 %v1832, 7
    %v1834 = vsub.s32 0, %v1833
    %v1835 = vrot.slane %v1775, %v1834
    %v1836 = vlaneseq
    %v1837 = vshrl.u32 %v1836, 7
    %v1838 = vsub.s32 0, %v1837
    %v1839 = vrot.slane %v1777, %v1838
    %v1840 = vlaneseq
    %v1841 = vshrl.u32 %v1840, 7
    %v1842 = vsub.s32 0, %v1841
    %v1843 = vrot.slane %v1779, %v1842
    %v1860 = vmul.f32 %v204, %v1783
    %v1861 = vmul.f32 %v211, %v1787
    %v1862 = vmul.f32 %v218, %v1791
    %v1863 = vmul.f32 %v225, %v1795
    %v1864 = vmul.f32 %v232, %v1799
    %v1865 = vmul.f32 %v239, %v1803
    %v1866 = vmul.f32 %v246, %v1807
    %v1867 = vmul.f32 %v253, %v1811
    %v1868 = vmul.f32 %v260, %v1815
    %v1869 = vmul.f32 %v267, %v1819
    %v1870 = vmul.f32 %v274, %v1823
    %v1871 = vmul.f32 %v281, %v1827
    %v1872 = vmul.f32 %v288, %v1831
    %v1873 = vmul.f32 %v295, %v1835
    %v1874 = vmul.f32 %v302, %v1839
    %v1875 = vmul.f32 %v309, %v1843
    %v1876 = vsel %vm424, %v1860, 0.0
    %v1877 = vsel %vm424, %v1861, 0.0
    %v1878 = vadd.f32 %v1876, %v1877
    %v1879 = vsel %vm424, %v1862, 0.0
    %v1880 = vadd.f32 %v1878, %v1879
    %v1881 = vsel %vm424, %v1863, 0.0
    %v1882 = vadd.f32 %v1880, %v1881
    %v1883 = vsel %vm424, %v1864, 0.0
    %v1884 = vadd.f32 %v1882, %v1883
    %v1885 = vsel %vm424, %v1865, 0.0
    %v1886 = vadd.f32 %v1884, %v1885
    %v1887 = vsel %vm424, %v1866, 0.0
    %v1888 = vadd.f32 %v1886, %v1887
    %v1889 = vsel %vm424, %v1867, 0.0
    %v1890 = vadd.f32 %v1888, %v1889
    %v1891 = vsel %vm424, %v1868, 0.0
    %v1892 = vsel %vm424, %v1869, 0.0
    %v1893 = vadd.f32 %v1891, %v1892
    %v1894 = vsel %vm424, %v1870, 0.0
    %v1895 = vadd.f32 %v1893, %v1894
    %v1896 = vsel %vm424, %v1871, 0.0
    %v1897 = vadd.f32 %v1895, %v1896
    %v1898 = vsel %vm424, %v1872, 0.0
    %v1899 = vadd.f32 %v1897, %v1898
    %v1900 = vsel %vm424, %v1873, 0.0
    %v1901 = vadd.f32 %v1899, %v1900
    %v1902 = vsel %vm424, %v1874, 0.0
    %v1903 = vadd.f32 %v1901, %v1902
    %v1904 = vsel %vm424, %v1875, 0.0
    %v1905 = vadd.f32 %v1903, %v1904
    %v1906 = vmul.f32 %v316, %v1783
    %v1907 = vmul.f32 %v323, %v1787
    %v1908 = vmul.f32 %v330, %v1791
    %v1909 = vmul.f32 %v337, %v1795
    %v1910 = vmul.f32 %v344, %v1799
    %v1911 = vmul.f32 %v351, %v1803
    %v1912 = vmul.f32 %v358, %v1807
    %v1913 = vmul.f32 %v365, %v1811
    %v1914 = vmul.f32 %v372, %v1815
    %v1915 = vmul.f32 %v379, %v1819
    %v1916 = vmul.f32 %v386, %v1823
    %v1917 = vmul.f32 %v393, %v1827
    %v1918 = vmul.f32 %v400, %v1831
    %v1919 = vmul.f32 %v407, %v1835
    %v1920 = vmul.f32 %v414, %v1839
    %v1921 = vmul.f32 %v421, %v1843
    %v1922 = vsel %vm756, %v1906, 0.0
    %v1923 = vsel %vm756, %v1907, 0.0
    %v1924 = vadd.f32 %v1922, %v1923
    %v1925 = vsel %vm756, %v1908, 0.0
    %v1926 = vadd.f32 %v1924, %v1925
    %v1927 = vsel %vm756, %v1909, 0.0
    %v1928 = vadd.f32 %v1926, %v1927
    %v1929 = vsel %vm756, %v1910, 0.0
    %v1930 = vadd.f32 %v1928, %v1929
    %v1931 = vsel %vm756, %v1911, 0.0
    %v1932 = vadd.f32 %v1930, %v1931
    %v1933 = vsel %vm756, %v1912, 0.0
    %v1934 = vadd.f32 %v1932, %v1933
    %v1935 = vsel %vm756, %v1913, 0.0
    %v1936 = vadd.f32 %v1934, %v1935
    %v1937 = vsel %vm756, %v1914, 0.0
    %v1938 = vsel %vm756, %v1915, 0.0
    %v1939 = vadd.f32 %v1937, %v1938
    %v1940 = vsel %vm756, %v1916, 0.0
    %v1941 = vadd.f32 %v1939, %v1940
    %v1942 = vsel %vm756, %v1917, 0.0
    %v1943 = vadd.f32 %v1941, %v1942
    %v1944 = vsel %vm756, %v1918, 0.0
    %v1945 = vadd.f32 %v1943, %v1944
    %v1946 = vsel %vm756, %v1919, 0.0
    %v1947 = vadd.f32 %v1945, %v1946
    %v1948 = vsel %vm756, %v1920, 0.0
    %v1949 = vadd.f32 %v1947, %v1948
    %v1950 = vsel %vm756, %v1921, 0.0
    %v1951 = vadd.f32 %v1949, %v1950
    %v1952 = vsel %vm424, %v1890, %v1936
    %v1953 = vsel %vm424, %v1905, %v1951
    %v1955 = vsel %vm795, %v1952, 0
    %v1958 = vsel %vm795, %v1953, 0
    %1960 = vmatprep.subr.mxu0 0.0
    %1961 = vmatpush1.msra.mxu0 %v118
    %1962 = vmatprep.subr.mxu0 0.0
    %1963 = vmatpush1.msra.mxu0 %v119
    %1964 = vmatprep.subr.mxu0 0.0
    %1965 = vmatpush1.msra.mxu0 %v120
    %1966 = vmatprep.subr.mxu0 0.0
    %1967 = vmatpush1.msra.mxu0 %v121
    %1968 = vmatprep.subr.mxu0 0.0
    %1969 = vmatpush1.msra.mxu0 %v122
    %1970 = vmatprep.subr.mxu0 0.0
    %1971 = vmatpush1.msra.mxu0 %v123
    %1972 = vmatprep.subr.mxu0 0.0
    %1973 = vmatpush1.msra.mxu0 %v124
    %1974 = vmatprep.subr.mxu0 0.0
    %1975 = vmatpush1.msra.mxu0 %v125
    %1976 = vmatprep.subr.mxu0 0.0
    %1977 = vmatpush1.msra.mxu0 0.0
    %1978 = vmatprep.subr.mxu0 0.0
    %1979 = vmatpush1.msra.mxu0 0.0
    %1980 = vmatprep.subr.mxu0 0.0
    %1981 = vmatpush1.msra.mxu0 0.0
    %1982 = vmatprep.subr.mxu0 0.0
    %1983 = vmatpush1.msra.mxu0 0.0
    %1984 = vmatprep.subr.mxu0 0.0
    %1985 = vmatpush1.msra.mxu0 0.0
    %1986 = vmatprep.subr.mxu0 0.0
    %1987 = vmatpush1.msra.mxu0 0.0
    %1988 = vmatprep.subr.mxu0 0.0
    %1989 = vmatpush1.msra.mxu0 0.0
    %1990 = vmatprep.subr.mxu0 0.0
    %1991 = vmatpush1.msra.mxu0 0.0
    %1992 = vmatprep.subr.mxu0 0.0
    %1993 = vmatpush1.msra.mxu0 0.0
    %1994 = vmatprep.subr.mxu0 0.0
    %1995 = vmatpush1.msra.mxu0 0.0
    %1996 = vmatprep.subr.mxu0 0.0
    %1997 = vmatpush1.msra.mxu0 0.0
    %1998 = vmatprep.subr.mxu0 0.0
    %1999 = vmatpush1.msra.mxu0 0.0
    %2000 = vmatprep.subr.mxu0 0.0
    %2001 = vmatpush1.msra.mxu0 0.0
    %2002 = vmatprep.subr.mxu0 0.0
    %2003 = vmatpush1.msra.mxu0 0.0
    %2004 = vmatprep.subr.mxu0 0.0
    %2005 = vmatpush1.msra.mxu0 0.0
    %2006 = vmatprep.subr.mxu0 0.0
    %2007 = vmatpush1.msra.mxu0 0.0
    %2008 = vmatprep.subr.mxu0 0.0
    %2009 = vmatpush1.msra.mxu0 0.0
    %2010 = vmatprep.subr.mxu0 0.0
    %2011 = vmatpush1.msra.mxu0 0.0
    %2012 = vmatprep.subr.mxu0 0.0
    %2013 = vmatpush1.msra.mxu0 0.0
    %2014 = vmatprep.subr.mxu0 0.0
    %2015 = vmatpush1.msra.mxu0 0.0
    %2016 = vmatprep.subr.mxu0 0.0
    %2017 = vmatpush1.msra.mxu0 0.0
    %2018 = vmatprep.subr.mxu0 0.0
    %2019 = vmatpush1.msra.mxu0 0.0
    %2020 = vmatprep.subr.mxu0 0.0
    %2021 = vmatpush1.msra.mxu0 0.0
    %2022 = vmatprep.subr.mxu0 0.0
    %2023 = vmatpush1.msra.mxu0 0.0
    %2024 = vmatprep.mubr.f32.mxu0 0.0
    %2025 = vmatmul.mubr.f32.gmra.mrb[0].mxu0 %v1955
    %v2026 = vpop.f32.mrb[0].mxu0
    %v2027 = vadd.f32 %v793, %v2026
    %v2028 = vpop.f32.mrb[0].mxu0
    %2029 = vmatprep.mubr.f32.mxu0 0.0
    %2030 = vmatmul.mubr.f32.gmra.mrb[0].mxu0 %v1958
    %v2031 = vpop.f32.mrb[0].mxu0
    %v2032 = vadd.f32 %v793, %v2031
    %v2033 = vpop.f32.mrb[0].mxu0
    %2034 = vdwg.mxu0
    %2037 = vrot.lane.b32.xlu0 %v1670, 64
    %v2038 = vpop.permute.xlu0 %2037
    %2039 = vrot.lane.b32.xlu0 %v1675, 64
    %v2040 = vpop.permute.xlu0 %2039
    %v2043 = vadd.f32 %v2027, %v2038
    %v2044 = vadd.f32 %v2032, %v2040
    %v2045 = vxor.u32 %v2043, 2147483648
    %v2046 = vxor.u32 %v2044, 2147483648
    %v2047 = vmul.f32 %v2045, 1.442695
    %v2048 = vpow.pop %v2047
    %v2049 = vmul.f32 %v2046, 1.442695
    %v2050 = vpow.pop %v2049
    %v2051 = vadd.f32 %v2048, 1.0
    %v2052 = vadd.f32 %v2050, 1.0
    %v2053 = vrcp.pop %v2051
    %v2054 = vmul.f32 1.0, %v2053
    %v2055 = vrcp.pop %v2052
    %v2056 = vmul.f32 1.0, %v2055
    %v2059 = vmul.f32 %v2054, %v1596
    %v2060 = vmul.f32 %v2056, %v1598
    %v2062 = vsel %vm424, %v2059, 0
    %v2065 = vsel %vm424, %v2060, 0
    %2067 = vmatprep.subr.mxu0 0.0
    %2068 = vmatpush1.msra.mxu0 %v126
    %2069 = vmatprep.subr.mxu0 0.0
    %2070 = vmatpush1.msra.mxu0 %v127
    %2071 = vmatprep.subr.mxu0 0.0
    %2072 = vmatpush1.msra.mxu0 %v128
    %2073 = vmatprep.subr.mxu0 0.0
    %2074 = vmatpush1.msra.mxu0 %v129
    %2075 = vmatprep.subr.mxu0 0.0
    %2076 = vmatpush1.msra.mxu0 0.0
    %2077 = vmatprep.subr.mxu0 0.0
    %2078 = vmatpush1.msra.mxu0 0.0
    %2079 = vmatprep.subr.mxu0 0.0
    %2080 = vmatpush1.msra.mxu0 0.0
    %2081 = vmatprep.subr.mxu0 0.0
    %2082 = vmatpush1.msra.mxu0 0.0
    %2083 = vmatprep.subr.mxu0 0.0
    %2084 = vmatpush1.msra.mxu0 0.0
    %2085 = vmatprep.subr.mxu0 0.0
    %2086 = vmatpush1.msra.mxu0 0.0
    %2087 = vmatprep.subr.mxu0 0.0
    %2088 = vmatpush1.msra.mxu0 0.0
    %2089 = vmatprep.subr.mxu0 0.0
    %2090 = vmatpush1.msra.mxu0 0.0
    %2091 = vmatprep.subr.mxu0 0.0
    %2092 = vmatpush1.msra.mxu0 0.0
    %2093 = vmatprep.subr.mxu0 0.0
    %2094 = vmatpush1.msra.mxu0 0.0
    %2095 = vmatprep.subr.mxu0 0.0
    %2096 = vmatpush1.msra.mxu0 0.0
    %2097 = vmatprep.subr.mxu0 0.0
    %2098 = vmatpush1.msra.mxu0 0.0
    %2099 = vmatprep.subr.mxu0 0.0
    %2100 = vmatpush1.msra.mxu0 0.0
    %2101 = vmatprep.subr.mxu0 0.0
    %2102 = vmatpush1.msra.mxu0 0.0
    %2103 = vmatprep.subr.mxu0 0.0
    %2104 = vmatpush1.msra.mxu0 0.0
    %2105 = vmatprep.subr.mxu0 0.0
    %2106 = vmatpush1.msra.mxu0 0.0
    %2107 = vmatprep.subr.mxu0 0.0
    %2108 = vmatpush1.msra.mxu0 0.0
    %2109 = vmatprep.subr.mxu0 0.0
    %2110 = vmatpush1.msra.mxu0 0.0
    %2111 = vmatprep.subr.mxu0 0.0
    %2112 = vmatpush1.msra.mxu0 0.0
    %2113 = vmatprep.subr.mxu0 0.0
    %2114 = vmatpush1.msra.mxu0 0.0
    %2115 = vmatprep.subr.mxu0 0.0
    %2116 = vmatpush1.msra.mxu0 0.0
    %2117 = vmatprep.subr.mxu0 0.0
    %2118 = vmatpush1.msra.mxu0 0.0
    %2119 = vmatprep.subr.mxu0 0.0
    %2120 = vmatpush1.msra.mxu0 0.0
    %2121 = vmatprep.subr.mxu0 0.0
    %2122 = vmatpush1.msra.mxu0 0.0
    %2123 = vmatprep.subr.mxu0 0.0
    %2124 = vmatpush1.msra.mxu0 0.0
    %2125 = vmatprep.subr.mxu0 0.0
    %2126 = vmatpush1.msra.mxu0 0.0
    %2127 = vmatprep.subr.mxu0 0.0
    %2128 = vmatpush1.msra.mxu0 0.0
    %2129 = vmatprep.subr.mxu0 0.0
    %2130 = vmatpush1.msra.mxu0 0.0
    %2131 = vmatprep.mubr.f32.mxu0 0.0
    %2132 = vmatmul.mubr.f32.gmra.mrb[0].mxu0 %v2062
    %v2133 = vpop.f32.mrb[0].mxu0
    %v2134 = vadd.f32 0.0, %v2133
    %v2135 = vpop.f32.mrb[0].mxu0
    %2136 = vmatprep.mubr.f32.mxu0 0.0
    %2137 = vmatmul.mubr.f32.gmra.mrb[0].mxu0 %v2065
    %v2138 = vpop.f32.mrb[0].mxu0
    %v2139 = vadd.f32 0.0, %v2138
    %v2140 = vpop.f32.mrb[0].mxu0
    %2141 = vdwg.mxu0
    %2144 = vrot.lane.b32.xlu0 %v2134, 64
    %v2145 = vpop.permute.xlu0 %2144
    %2146 = vrot.lane.b32.xlu0 %v2139, 64
    %v2147 = vpop.permute.xlu0 %2146
    %v2150 = vadd.f32 %v2027, %v2145
    %v2151 = vadd.f32 %v2032, %v2147
    %v2152 = vtanh.pop %v2150
    %v2153 = vtanh.pop %v2151
    %v2154 = vsub.f32 1.0, %v2054
    %v2155 = vsub.f32 1.0, %v2056
    %v2156 = vmul.f32 %v2154, %v1591
    %v2157 = vmul.f32 %v2155, %v1592
    %2160 = vrot.lane.b32.xlu0 %v2152, 96
    %v2161 = vpop.permute.xlu0 %2160
    %2162 = vrot.lane.b32.xlu0 %v2153, 96
    %v2163 = vpop.permute.xlu0 %2162
    %v2166 = vmul.f32 %v2054, %v2161
    %v2167 = vmul.f32 %v2056, %v2163
    %v2168 = vadd.f32 %v2156, %v2166
    %v2169 = vadd.f32 %v2157, %v2167
    %2172 = vrot.lane.b32.xlu0 %v2168, 96
    %v2173 = vpop.permute.xlu0 %2172
    %2174 = vrot.lane.b32.xlu0 %v2169, 96
    %v2175 = vpop.permute.xlu0 %2174
    %v2176 = vsel %vm424, %v2173, 0
    %v2178 = vsel %vm424, %v2175, 0
    %2180 = vmatprep.subr.mxu0 0.0
    %2181 = vmatpush1.msra.mxu0 %v114
    %2182 = vmatprep.subr.mxu0 0.0
    %2183 = vmatpush1.msra.mxu0 %v115
    %2184 = vmatprep.subr.mxu0 0.0
    %2185 = vmatpush1.msra.mxu0 %v116
    %2186 = vmatprep.subr.mxu0 0.0
    %2187 = vmatpush1.msra.mxu0 %v117
    %2188 = vmatprep.subr.mxu0 0.0
    %2189 = vmatpush1.msra.mxu0 0.0
    %2190 = vmatprep.subr.mxu0 0.0
    %2191 = vmatpush1.msra.mxu0 0.0
    %2192 = vmatprep.subr.mxu0 0.0
    %2193 = vmatpush1.msra.mxu0 0.0
    %2194 = vmatprep.subr.mxu0 0.0
    %2195 = vmatpush1.msra.mxu0 0.0
    %2196 = vmatprep.subr.mxu0 0.0
    %2197 = vmatpush1.msra.mxu0 0.0
    %2198 = vmatprep.subr.mxu0 0.0
    %2199 = vmatpush1.msra.mxu0 0.0
    %2200 = vmatprep.subr.mxu0 0.0
    %2201 = vmatpush1.msra.mxu0 0.0
    %2202 = vmatprep.subr.mxu0 0.0
    %2203 = vmatpush1.msra.mxu0 0.0
    %2204 = vmatprep.subr.mxu0 0.0
    %2205 = vmatpush1.msra.mxu0 0.0
    %2206 = vmatprep.subr.mxu0 0.0
    %2207 = vmatpush1.msra.mxu0 0.0
    %2208 = vmatprep.subr.mxu0 0.0
    %2209 = vmatpush1.msra.mxu0 0.0
    %2210 = vmatprep.subr.mxu0 0.0
    %2211 = vmatpush1.msra.mxu0 0.0
    %2212 = vmatprep.subr.mxu0 0.0
    %2213 = vmatpush1.msra.mxu0 0.0
    %2214 = vmatprep.subr.mxu0 0.0
    %2215 = vmatpush1.msra.mxu0 0.0
    %2216 = vmatprep.subr.mxu0 0.0
    %2217 = vmatpush1.msra.mxu0 0.0
    %2218 = vmatprep.subr.mxu0 0.0
    %2219 = vmatpush1.msra.mxu0 0.0
    %2220 = vmatprep.subr.mxu0 0.0
    %2221 = vmatpush1.msra.mxu0 0.0
    %2222 = vmatprep.subr.mxu0 0.0
    %2223 = vmatpush1.msra.mxu0 0.0
    %2224 = vmatprep.subr.mxu0 0.0
    %2225 = vmatpush1.msra.mxu0 0.0
    %2226 = vmatprep.subr.mxu0 0.0
    %2227 = vmatpush1.msra.mxu0 0.0
    %2228 = vmatprep.subr.mxu0 0.0
    %2229 = vmatpush1.msra.mxu0 0.0
    %2230 = vmatprep.subr.mxu0 0.0
    %2231 = vmatpush1.msra.mxu0 0.0
    %2232 = vmatprep.subr.mxu0 0.0
    %2233 = vmatpush1.msra.mxu0 0.0
    %2234 = vmatprep.subr.mxu0 0.0
    %2235 = vmatpush1.msra.mxu0 0.0
    %2236 = vmatprep.subr.mxu0 0.0
    %2237 = vmatpush1.msra.mxu0 0.0
    %2238 = vmatprep.subr.mxu0 0.0
    %2239 = vmatpush1.msra.mxu0 0.0
    %2240 = vmatprep.subr.mxu0 0.0
    %2241 = vmatpush1.msra.mxu0 0.0
    %2242 = vmatprep.subr.mxu0 0.0
    %2243 = vmatpush1.msra.mxu0 0.0
    %2244 = vmatprep.mubr.f32.mxu0 0.0
    %2245 = vmatmul.mubr.f32.gmra.mrb[0].mxu0 %v2176
    %v2246 = vpop.f32.mrb[0].mxu0
    %v2247 = vadd.f32 0.0, %v2246
    %v2248 = vpop.f32.mrb[0].mxu0
    %2249 = vmatprep.mubr.f32.mxu0 0.0
    %2250 = vmatmul.mubr.f32.gmra.mrb[0].mxu0 %v2178
    %v2251 = vpop.f32.mrb[0].mxu0
    %v2252 = vadd.f32 0.0, %v2251
    %v2253 = vpop.f32.mrb[0].mxu0
    %2254 = vdwg.mxu0
    %v2255 = vadd.f32 %v2247, %v510
    %v2256 = vadd.f32 %v2252, %v510
    %v2259 = vcombine.high %v2255, %v2255
    %v2261 = vunpack.c.l.s4 1966171168
    %v2262 = vunpack.c.0.s8 %v2261
    %v2263 = vlaneseq
    %v2264 = vshrl.u32 %v2263, 7
    %v2265 = vsub.s32 %v2262, %v2264
    %v2266 = vrot.slane %v2255, %v2265
    %v2268 = vunpack.c.l.s4 1966171168
    %v2269 = vunpack.c.0.s8 %v2268
    %v2270 = vlaneseq
    %v2271 = vshrl.u32 %v2270, 7
    %v2272 = vsub.s32 %v2269, %v2271
    %v2273 = vrot.slane %v2259, %v2272
    %v2274 = vcombine.high %v2266, %v2266
    %v2275 = vcombine.high %v2273, %v2273
    %v2277 = vunpack.c.l.s4 1966171168
    %v2278 = vunpack.c.0.s8 %v2277
    %v2279 = vlaneseq
    %v2280 = vshrl.u32 %v2279, 7
    %v2281 = vsub.s32 %v2278, %v2280
    %v2282 = vrot.slane %v2266, %v2281
    %v2284 = vunpack.c.l.s4 1966171168
    %v2285 = vunpack.c.0.s8 %v2284
    %v2286 = vlaneseq
    %v2287 = vshrl.u32 %v2286, 7
    %v2288 = vsub.s32 %v2285, %v2287
    %v2289 = vrot.slane %v2273, %v2288
    %v2291 = vunpack.c.l.s4 1966171168
    %v2292 = vunpack.c.0.s8 %v2291
    %v2293 = vlaneseq
    %v2294 = vshrl.u32 %v2293, 7
    %v2295 = vsub.s32 %v2292, %v2294
    %v2296 = vrot.slane %v2274, %v2295
    %v2298 = vunpack.c.l.s4 1966171168
    %v2299 = vunpack.c.0.s8 %v2298
    %v2300 = vlaneseq
    %v2301 = vshrl.u32 %v2300, 7
    %v2302 = vsub.s32 %v2299, %v2301
    %v2303 = vrot.slane %v2275, %v2302
    %v2304 = vcombine.high %v2282, %v2282
    %v2305 = vcombine.high %v2289, %v2289
    %v2306 = vcombine.high %v2296, %v2296
    %v2307 = vcombine.high %v2303, %v2303
    %v2308 = vcombine.high %v2256, %v2256
    %v2310 = vunpack.c.l.s4 1966171168
    %v2311 = vunpack.c.0.s8 %v2310
    %v2312 = vlaneseq
    %v2313 = vshrl.u32 %v2312, 7
    %v2314 = vsub.s32 %v2311, %v2313
    %v2315 = vrot.slane %v2256, %v2314
    %v2317 = vunpack.c.l.s4 1966171168
    %v2318 = vunpack.c.0.s8 %v2317
    %v2319 = vlaneseq
    %v2320 = vshrl.u32 %v2319, 7
    %v2321 = vsub.s32 %v2318, %v2320
    %v2322 = vrot.slane %v2308, %v2321
    %v2323 = vcombine.high %v2315, %v2315
    %v2324 = vcombine.high %v2322, %v2322
    %v2326 = vunpack.c.l.s4 1966171168
    %v2327 = vunpack.c.0.s8 %v2326
    %v2328 = vlaneseq
    %v2329 = vshrl.u32 %v2328, 7
    %v2330 = vsub.s32 %v2327, %v2329
    %v2331 = vrot.slane %v2315, %v2330
    %v2333 = vunpack.c.l.s4 1966171168
    %v2334 = vunpack.c.0.s8 %v2333
    %v2335 = vlaneseq
    %v2336 = vshrl.u32 %v2335, 7
    %v2337 = vsub.s32 %v2334, %v2336
    %v2338 = vrot.slane %v2322, %v2337
    %v2340 = vunpack.c.l.s4 1966171168
    %v2341 = vunpack.c.0.s8 %v2340
    %v2342 = vlaneseq
    %v2343 = vshrl.u32 %v2342, 7
    %v2344 = vsub.s32 %v2341, %v2343
    %v2345 = vrot.slane %v2323, %v2344
    %v2347 = vunpack.c.l.s4 1966171168
    %v2348 = vunpack.c.0.s8 %v2347
    %v2349 = vlaneseq
    %v2350 = vshrl.u32 %v2349, 7
    %v2351 = vsub.s32 %v2348, %v2350
    %v2352 = vrot.slane %v2324, %v2351
    %v2353 = vcombine.high %v2331, %v2331
    %v2354 = vcombine.high %v2338, %v2338
    %v2355 = vcombine.high %v2345, %v2345
    %v2356 = vcombine.high %v2352, %v2352
    %v2357 = vlaneseq
    %v2358 = vshrl.u32 %v2357, 7
    %v2359 = vsub.s32 0, %v2358
    %v2360 = vrot.slane %v2282, %v2359
    %v2361 = vlaneseq
    %v2362 = vshrl.u32 %v2361, 7
    %v2363 = vsub.s32 0, %v2362
    %v2364 = vrot.slane %v2296, %v2363
    %v2365 = vlaneseq
    %v2366 = vshrl.u32 %v2365, 7
    %v2367 = vsub.s32 0, %v2366
    %v2368 = vrot.slane %v2304, %v2367
    %v2369 = vlaneseq
    %v2370 = vshrl.u32 %v2369, 7
    %v2371 = vsub.s32 0, %v2370
    %v2372 = vrot.slane %v2306, %v2371
    %v2373 = vlaneseq
    %v2374 = vshrl.u32 %v2373, 7
    %v2375 = vsub.s32 0, %v2374
    %v2376 = vrot.slane %v2289, %v2375
    %v2377 = vlaneseq
    %v2378 = vshrl.u32 %v2377, 7
    %v2379 = vsub.s32 0, %v2378
    %v2380 = vrot.slane %v2303, %v2379
    %v2381 = vlaneseq
    %v2382 = vshrl.u32 %v2381, 7
    %v2383 = vsub.s32 0, %v2382
    %v2384 = vrot.slane %v2305, %v2383
    %v2385 = vlaneseq
    %v2386 = vshrl.u32 %v2385, 7
    %v2387 = vsub.s32 0, %v2386
    %v2388 = vrot.slane %v2307, %v2387
    %v2389 = vlaneseq
    %v2390 = vshrl.u32 %v2389, 7
    %v2391 = vsub.s32 0, %v2390
    %v2392 = vrot.slane %v2331, %v2391
    %v2393 = vlaneseq
    %v2394 = vshrl.u32 %v2393, 7
    %v2395 = vsub.s32 0, %v2394
    %v2396 = vrot.slane %v2345, %v2395
    %v2397 = vlaneseq
    %v2398 = vshrl.u32 %v2397, 7
    %v2399 = vsub.s32 0, %v2398
    %v2400 = vrot.slane %v2353, %v2399
    %v2401 = vlaneseq
    %v2402 = vshrl.u32 %v2401, 7
    %v2403 = vsub.s32 0, %v2402
    %v2404 = vrot.slane %v2355, %v2403
    %v2405 = vlaneseq
    %v2406 = vshrl.u32 %v2405, 7
    %v2407 = vsub.s32 0, %v2406
    %v2408 = vrot.slane %v2338, %v2407
    %v2409 = vlaneseq
    %v2410 = vshrl.u32 %v2409, 7
    %v2411 = vsub.s32 0, %v2410
    %v2412 = vrot.slane %v2352, %v2411
    %v2413 = vlaneseq
    %v2414 = vshrl.u32 %v2413, 7
    %v2415 = vsub.s32 0, %v2414
    %v2416 = vrot.slane %v2354, %v2415
    %v2417 = vlaneseq
    %v2418 = vshrl.u32 %v2417, 7
    %v2419 = vsub.s32 0, %v2418
    %v2420 = vrot.slane %v2356, %v2419
    %v2437 = vmul.f32 %v204, %v2360
    %v2438 = vmul.f32 %v211, %v2364
    %v2439 = vmul.f32 %v218, %v2368
    %v2440 = vmul.f32 %v225, %v2372
    %v2441 = vmul.f32 %v232, %v2376
    %v2442 = vmul.f32 %v239, %v2380
    %v2443 = vmul.f32 %v246, %v2384
    %v2444 = vmul.f32 %v253, %v2388
    %v2445 = vmul.f32 %v260, %v2392
    %v2446 = vmul.f32 %v267, %v2396
    %v2447 = vmul.f32 %v274, %v2400
    %v2448 = vmul.f32 %v281, %v2404
    %v2449 = vmul.f32 %v288, %v2408
    %v2450 = vmul.f32 %v295, %v2412
    %v2451 = vmul.f32 %v302, %v2416
    %v2452 = vmul.f32 %v309, %v2420
    %v2453 = vsel %vm424, %v2437, 0.0
    %v2454 = vsel %vm424, %v2438, 0.0
    %v2455 = vadd.f32 %v2453, %v2454
    %v2456 = vsel %vm424, %v2439, 0.0
    %v2457 = vadd.f32 %v2455, %v2456
    %v2458 = vsel %vm424, %v2440, 0.0
    %v2459 = vadd.f32 %v2457, %v2458
    %v2460 = vsel %vm424, %v2441, 0.0
    %v2461 = vadd.f32 %v2459, %v2460
    %v2462 = vsel %vm424, %v2442, 0.0
    %v2463 = vadd.f32 %v2461, %v2462
    %v2464 = vsel %vm424, %v2443, 0.0
    %v2465 = vadd.f32 %v2463, %v2464
    %v2466 = vsel %vm424, %v2444, 0.0
    %v2467 = vadd.f32 %v2465, %v2466
    %v2468 = vsel %vm424, %v2445, 0.0
    %v2469 = vsel %vm424, %v2446, 0.0
    %v2470 = vadd.f32 %v2468, %v2469
    %v2471 = vsel %vm424, %v2447, 0.0
    %v2472 = vadd.f32 %v2470, %v2471
    %v2473 = vsel %vm424, %v2448, 0.0
    %v2474 = vadd.f32 %v2472, %v2473
    %v2475 = vsel %vm424, %v2449, 0.0
    %v2476 = vadd.f32 %v2474, %v2475
    %v2477 = vsel %vm424, %v2450, 0.0
    %v2478 = vadd.f32 %v2476, %v2477
    %v2479 = vsel %vm424, %v2451, 0.0
    %v2480 = vadd.f32 %v2478, %v2479
    %v2481 = vsel %vm424, %v2452, 0.0
    %v2482 = vadd.f32 %v2480, %v2481
    %v2483 = vmul.f32 %v316, %v2360
    %v2484 = vmul.f32 %v323, %v2364
    %v2485 = vmul.f32 %v330, %v2368
    %v2486 = vmul.f32 %v337, %v2372
    %v2487 = vmul.f32 %v344, %v2376
    %v2488 = vmul.f32 %v351, %v2380
    %v2489 = vmul.f32 %v358, %v2384
    %v2490 = vmul.f32 %v365, %v2388
    %v2491 = vmul.f32 %v372, %v2392
    %v2492 = vmul.f32 %v379, %v2396
    %v2493 = vmul.f32 %v386, %v2400
    %v2494 = vmul.f32 %v393, %v2404
    %v2495 = vmul.f32 %v400, %v2408
    %v2496 = vmul.f32 %v407, %v2412
    %v2497 = vmul.f32 %v414, %v2416
    %v2498 = vmul.f32 %v421, %v2420
    %v2499 = vsel %vm756, %v2483, 0.0
    %v2500 = vsel %vm756, %v2484, 0.0
    %v2501 = vadd.f32 %v2499, %v2500
    %v2502 = vsel %vm756, %v2485, 0.0
    %v2503 = vadd.f32 %v2501, %v2502
    %v2504 = vsel %vm756, %v2486, 0.0
    %v2505 = vadd.f32 %v2503, %v2504
    %v2506 = vsel %vm756, %v2487, 0.0
    %v2507 = vadd.f32 %v2505, %v2506
    %v2508 = vsel %vm756, %v2488, 0.0
    %v2509 = vadd.f32 %v2507, %v2508
    %v2510 = vsel %vm756, %v2489, 0.0
    %v2511 = vadd.f32 %v2509, %v2510
    %v2512 = vsel %vm756, %v2490, 0.0
    %v2513 = vadd.f32 %v2511, %v2512
    %v2514 = vsel %vm756, %v2491, 0.0
    %v2515 = vsel %vm756, %v2492, 0.0
    %v2516 = vadd.f32 %v2514, %v2515
    %v2517 = vsel %vm756, %v2493, 0.0
    %v2518 = vadd.f32 %v2516, %v2517
    %v2519 = vsel %vm756, %v2494, 0.0
    %v2520 = vadd.f32 %v2518, %v2519
    %v2521 = vsel %vm756, %v2495, 0.0
    %v2522 = vadd.f32 %v2520, %v2521
    %v2523 = vsel %vm756, %v2496, 0.0
    %v2524 = vadd.f32 %v2522, %v2523
    %v2525 = vsel %vm756, %v2497, 0.0
    %v2526 = vadd.f32 %v2524, %v2525
    %v2527 = vsel %vm756, %v2498, 0.0
    %v2528 = vadd.f32 %v2526, %v2527
    %v2529 = vsel %vm424, %v2467, %v2513
    %v2530 = vsel %vm424, %v2482, %v2528
    %v2532 = vsel %vm795, %v2529, 0
    %v2535 = vsel %vm795, %v2530, 0
    %2537 = vmatprep.subr.mxu0 0.0
    %2538 = vmatpush1.msra.mxu0 %v118
    %2539 = vmatprep.subr.mxu0 0.0
    %2540 = vmatpush1.msra.mxu0 %v119
    %2541 = vmatprep.subr.mxu0 0.0
    %2542 = vmatpush1.msra.mxu0 %v120
    %2543 = vmatprep.subr.mxu0 0.0
    %2544 = vmatpush1.msra.mxu0 %v121
    %2545 = vmatprep.subr.mxu0 0.0
    %2546 = vmatpush1.msra.mxu0 %v122
    %2547 = vmatprep.subr.mxu0 0.0
    %2548 = vmatpush1.msra.mxu0 %v123
    %2549 = vmatprep.subr.mxu0 0.0
    %2550 = vmatpush1.msra.mxu0 %v124
    %2551 = vmatprep.subr.mxu0 0.0
    %2552 = vmatpush1.msra.mxu0 %v125
    %2553 = vmatprep.subr.mxu0 0.0
    %2554 = vmatpush1.msra.mxu0 0.0
    %2555 = vmatprep.subr.mxu0 0.0
    %2556 = vmatpush1.msra.mxu0 0.0
    %2557 = vmatprep.subr.mxu0 0.0
    %2558 = vmatpush1.msra.mxu0 0.0
    %2559 = vmatprep.subr.mxu0 0.0
    %2560 = vmatpush1.msra.mxu0 0.0
    %2561 = vmatprep.subr.mxu0 0.0
    %2562 = vmatpush1.msra.mxu0 0.0
    %2563 = vmatprep.subr.mxu0 0.0
    %2564 = vmatpush1.msra.mxu0 0.0
    %2565 = vmatprep.subr.mxu0 0.0
    %2566 = vmatpush1.msra.mxu0 0.0
    %2567 = vmatprep.subr.mxu0 0.0
    %2568 = vmatpush1.msra.mxu0 0.0
    %2569 = vmatprep.subr.mxu0 0.0
    %2570 = vmatpush1.msra.mxu0 0.0
    %2571 = vmatprep.subr.mxu0 0.0
    %2572 = vmatpush1.msra.mxu0 0.0
    %2573 = vmatprep.subr.mxu0 0.0
    %2574 = vmatpush1.msra.mxu0 0.0
    %2575 = vmatprep.subr.mxu0 0.0
    %2576 = vmatpush1.msra.mxu0 0.0
    %2577 = vmatprep.subr.mxu0 0.0
    %2578 = vmatpush1.msra.mxu0 0.0
    %2579 = vmatprep.subr.mxu0 0.0
    %2580 = vmatpush1.msra.mxu0 0.0
    %2581 = vmatprep.subr.mxu0 0.0
    %2582 = vmatpush1.msra.mxu0 0.0
    %2583 = vmatprep.subr.mxu0 0.0
    %2584 = vmatpush1.msra.mxu0 0.0
    %2585 = vmatprep.subr.mxu0 0.0
    %2586 = vmatpush1.msra.mxu0 0.0
    %2587 = vmatprep.subr.mxu0 0.0
    %2588 = vmatpush1.msra.mxu0 0.0
    %2589 = vmatprep.subr.mxu0 0.0
    %2590 = vmatpush1.msra.mxu0 0.0
    %2591 = vmatprep.subr.mxu0 0.0
    %2592 = vmatpush1.msra.mxu0 0.0
    %2593 = vmatprep.subr.mxu0 0.0
    %2594 = vmatpush1.msra.mxu0 0.0
    %2595 = vmatprep.subr.mxu0 0.0
    %2596 = vmatpush1.msra.mxu0 0.0
    %2597 = vmatprep.subr.mxu0 0.0
    %2598 = vmatpush1.msra.mxu0 0.0
    %2599 = vmatprep.subr.mxu0 0.0
    %2600 = vmatpush1.msra.mxu0 0.0
    %2601 = vmatprep.mubr.f32.mxu0 0.0
    %2602 = vmatmul.mubr.f32.gmra.mrb[0].mxu0 %v2532
    %v2603 = vpop.f32.mrb[0].mxu0
    %v2604 = vadd.f32 %v793, %v2603
    %v2605 = vpop.f32.mrb[0].mxu0
    %2606 = vmatprep.mubr.f32.mxu0 0.0
    %2607 = vmatmul.mubr.f32.gmra.mrb[0].mxu0 %v2535
    %v2608 = vpop.f32.mrb[0].mxu0
    %v2609 = vadd.f32 %v793, %v2608
    %v2610 = vpop.f32.mrb[0].mxu0
    %2611 = vdwg.mxu0
    %2614 = vrot.lane.b32.xlu0 %v2247, 64
    %v2615 = vpop.permute.xlu0 %2614
    %2616 = vrot.lane.b32.xlu0 %v2252, 64
    %v2617 = vpop.permute.xlu0 %2616
    %v2620 = vadd.f32 %v2604, %v2615
    %v2621 = vadd.f32 %v2609, %v2617
    %v2622 = vxor.u32 %v2620, 2147483648
    %v2623 = vxor.u32 %v2621, 2147483648
    %v2624 = vmul.f32 %v2622, 1.442695
    %v2625 = vpow.pop %v2624
    %v2626 = vmul.f32 %v2623, 1.442695
    %v2627 = vpow.pop %v2626
    %v2628 = vadd.f32 %v2625, 1.0
    %v2629 = vadd.f32 %v2627, 1.0
    %v2630 = vrcp.pop %v2628
    %v2631 = vmul.f32 1.0, %v2630
    %v2632 = vrcp.pop %v2629
    %v2633 = vmul.f32 1.0, %v2632
    %v2636 = vmul.f32 %v2631, %v2173
    %v2637 = vmul.f32 %v2633, %v2175
    %v2639 = vsel %vm424, %v2636, 0
    %v2642 = vsel %vm424, %v2637, 0
    %2644 = vmatprep.subr.mxu0 0.0
    %2645 = vmatpush1.msra.mxu0 %v126
    %2646 = vmatprep.subr.mxu0 0.0
    %2647 = vmatpush1.msra.mxu0 %v127
    %2648 = vmatprep.subr.mxu0 0.0
    %2649 = vmatpush1.msra.mxu0 %v128
    %2650 = vmatprep.subr.mxu0 0.0
    %2651 = vmatpush1.msra.mxu0 %v129
    %2652 = vmatprep.subr.mxu0 0.0
    %2653 = vmatpush1.msra.mxu0 0.0
    %2654 = vmatprep.subr.mxu0 0.0
    %2655 = vmatpush1.msra.mxu0 0.0
    %2656 = vmatprep.subr.mxu0 0.0
    %2657 = vmatpush1.msra.mxu0 0.0
    %2658 = vmatprep.subr.mxu0 0.0
    %2659 = vmatpush1.msra.mxu0 0.0
    %2660 = vmatprep.subr.mxu0 0.0
    %2661 = vmatpush1.msra.mxu0 0.0
    %2662 = vmatprep.subr.mxu0 0.0
    %2663 = vmatpush1.msra.mxu0 0.0
    %2664 = vmatprep.subr.mxu0 0.0
    %2665 = vmatpush1.msra.mxu0 0.0
    %2666 = vmatprep.subr.mxu0 0.0
    %2667 = vmatpush1.msra.mxu0 0.0
    %2668 = vmatprep.subr.mxu0 0.0
    %2669 = vmatpush1.msra.mxu0 0.0
    %2670 = vmatprep.subr.mxu0 0.0
    %2671 = vmatpush1.msra.mxu0 0.0
    %2672 = vmatprep.subr.mxu0 0.0
    %2673 = vmatpush1.msra.mxu0 0.0
    %2674 = vmatprep.subr.mxu0 0.0
    %2675 = vmatpush1.msra.mxu0 0.0
    %2676 = vmatprep.subr.mxu0 0.0
    %2677 = vmatpush1.msra.mxu0 0.0
    %2678 = vmatprep.subr.mxu0 0.0
    %2679 = vmatpush1.msra.mxu0 0.0
    %2680 = vmatprep.subr.mxu0 0.0
    %2681 = vmatpush1.msra.mxu0 0.0
    %2682 = vmatprep.subr.mxu0 0.0
    %2683 = vmatpush1.msra.mxu0 0.0
    %2684 = vmatprep.subr.mxu0 0.0
    %2685 = vmatpush1.msra.mxu0 0.0
    %2686 = vmatprep.subr.mxu0 0.0
    %2687 = vmatpush1.msra.mxu0 0.0
    %2688 = vmatprep.subr.mxu0 0.0
    %2689 = vmatpush1.msra.mxu0 0.0
    %2690 = vmatprep.subr.mxu0 0.0
    %2691 = vmatpush1.msra.mxu0 0.0
    %2692 = vmatprep.subr.mxu0 0.0
    %2693 = vmatpush1.msra.mxu0 0.0
    %2694 = vmatprep.subr.mxu0 0.0
    %2695 = vmatpush1.msra.mxu0 0.0
    %2696 = vmatprep.subr.mxu0 0.0
    %2697 = vmatpush1.msra.mxu0 0.0
    %2698 = vmatprep.subr.mxu0 0.0
    %2699 = vmatpush1.msra.mxu0 0.0
    %2700 = vmatprep.subr.mxu0 0.0
    %2701 = vmatpush1.msra.mxu0 0.0
    %2702 = vmatprep.subr.mxu0 0.0
    %2703 = vmatpush1.msra.mxu0 0.0
    %2704 = vmatprep.subr.mxu0 0.0
    %2705 = vmatpush1.msra.mxu0 0.0
    %2706 = vmatprep.subr.mxu0 0.0
    %2707 = vmatpush1.msra.mxu0 0.0
    %2708 = vmatprep.mubr.f32.mxu0 0.0
    %2709 = vmatmul.mubr.f32.gmra.mrb[0].mxu0 %v2639
    %v2710 = vpop.f32.mrb[0].mxu0
    %v2711 = vadd.f32 0.0, %v2710
    %v2712 = vpop.f32.mrb[0].mxu0
    %2713 = vmatprep.mubr.f32.mxu0 0.0
    %2714 = vmatmul.mubr.f32.gmra.mrb[0].mxu0 %v2642
    %v2715 = vpop.f32.mrb[0].mxu0
    %v2716 = vadd.f32 0.0, %v2715
    %v2717 = vpop.f32.mrb[0].mxu0
    %2718 = vdwg.mxu0
    %2721 = vrot.lane.b32.xlu0 %v2711, 64
    %v2722 = vpop.permute.xlu0 %2721
    %2723 = vrot.lane.b32.xlu0 %v2716, 64
    %v2724 = vpop.permute.xlu0 %2723
    %v2727 = vadd.f32 %v2604, %v2722
    %v2728 = vadd.f32 %v2609, %v2724
    %v2729 = vtanh.pop %v2727
    %v2730 = vtanh.pop %v2728
    %v2731 = vsub.f32 1.0, %v2631
    %v2732 = vsub.f32 1.0, %v2633
    %v2733 = vmul.f32 %v2731, %v2168
    %v2734 = vmul.f32 %v2732, %v2169
    %2737 = vrot.lane.b32.xlu0 %v2729, 96
    %v2738 = vpop.permute.xlu0 %2737
    %2739 = vrot.lane.b32.xlu0 %v2730, 96
    %v2740 = vpop.permute.xlu0 %2739
    %v2743 = vmul.f32 %v2631, %v2738
    %v2744 = vmul.f32 %v2633, %v2740
    %v2745 = vadd.f32 %v2733, %v2743
    %v2746 = vadd.f32 %v2734, %v2744
    %2749 = vrot.lane.b32.xlu0 %v2745, 96
    %v2750 = vpop.permute.xlu0 %2749
    %2751 = vrot.lane.b32.xlu0 %v2746, 96
    %v2752 = vpop.permute.xlu0 %2751
    %v2753 = vsel %vm424, %v2750, 0
    %v2755 = vsel %vm424, %v2752, 0
    %2757 = vmatprep.subr.mxu0 0.0
    %2758 = vmatpush1.msra.mxu0 %v114
    %2759 = vmatprep.subr.mxu0 0.0
    %2760 = vmatpush1.msra.mxu0 %v115
    %2761 = vmatprep.subr.mxu0 0.0
    %2762 = vmatpush1.msra.mxu0 %v116
    %2763 = vmatprep.subr.mxu0 0.0
    %2764 = vmatpush1.msra.mxu0 %v117
    %2765 = vmatprep.subr.mxu0 0.0
    %2766 = vmatpush1.msra.mxu0 0.0
    %2767 = vmatprep.subr.mxu0 0.0
    %2768 = vmatpush1.msra.mxu0 0.0
    %2769 = vmatprep.subr.mxu0 0.0
    %2770 = vmatpush1.msra.mxu0 0.0
    %2771 = vmatprep.subr.mxu0 0.0
    %2772 = vmatpush1.msra.mxu0 0.0
    %2773 = vmatprep.subr.mxu0 0.0
    %2774 = vmatpush1.msra.mxu0 0.0
    %2775 = vmatprep.subr.mxu0 0.0
    %2776 = vmatpush1.msra.mxu0 0.0
    %2777 = vmatprep.subr.mxu0 0.0
    %2778 = vmatpush1.msra.mxu0 0.0
    %2779 = vmatprep.subr.mxu0 0.0
    %2780 = vmatpush1.msra.mxu0 0.0
    %2781 = vmatprep.subr.mxu0 0.0
    %2782 = vmatpush1.msra.mxu0 0.0
    %2783 = vmatprep.subr.mxu0 0.0
    %2784 = vmatpush1.msra.mxu0 0.0
    %2785 = vmatprep.subr.mxu0 0.0
    %2786 = vmatpush1.msra.mxu0 0.0
    %2787 = vmatprep.subr.mxu0 0.0
    %2788 = vmatpush1.msra.mxu0 0.0
    %2789 = vmatprep.subr.mxu0 0.0
    %2790 = vmatpush1.msra.mxu0 0.0
    %2791 = vmatprep.subr.mxu0 0.0
    %2792 = vmatpush1.msra.mxu0 0.0
    %2793 = vmatprep.subr.mxu0 0.0
    %2794 = vmatpush1.msra.mxu0 0.0
    %2795 = vmatprep.subr.mxu0 0.0
    %2796 = vmatpush1.msra.mxu0 0.0
    %2797 = vmatprep.subr.mxu0 0.0
    %2798 = vmatpush1.msra.mxu0 0.0
    %2799 = vmatprep.subr.mxu0 0.0
    %2800 = vmatpush1.msra.mxu0 0.0
    %2801 = vmatprep.subr.mxu0 0.0
    %2802 = vmatpush1.msra.mxu0 0.0
    %2803 = vmatprep.subr.mxu0 0.0
    %2804 = vmatpush1.msra.mxu0 0.0
    %2805 = vmatprep.subr.mxu0 0.0
    %2806 = vmatpush1.msra.mxu0 0.0
    %2807 = vmatprep.subr.mxu0 0.0
    %2808 = vmatpush1.msra.mxu0 0.0
    %2809 = vmatprep.subr.mxu0 0.0
    %2810 = vmatpush1.msra.mxu0 0.0
    %2811 = vmatprep.subr.mxu0 0.0
    %2812 = vmatpush1.msra.mxu0 0.0
    %2813 = vmatprep.subr.mxu0 0.0
    %2814 = vmatpush1.msra.mxu0 0.0
    %2815 = vmatprep.subr.mxu0 0.0
    %2816 = vmatpush1.msra.mxu0 0.0
    %2817 = vmatprep.subr.mxu0 0.0
    %2818 = vmatpush1.msra.mxu0 0.0
    %2819 = vmatprep.subr.mxu0 0.0
    %2820 = vmatpush1.msra.mxu0 0.0
    %2821 = vmatprep.mubr.f32.mxu0 0.0
    %2822 = vmatmul.mubr.f32.gmra.mrb[0].mxu0 %v2753
    %v2823 = vpop.f32.mrb[0].mxu0
    %v2824 = vadd.f32 0.0, %v2823
    %v2825 = vpop.f32.mrb[0].mxu0
    %2826 = vmatprep.mubr.f32.mxu0 0.0
    %2827 = vmatmul.mubr.f32.gmra.mrb[0].mxu0 %v2755
    %v2828 = vpop.f32.mrb[0].mxu0
    %v2829 = vadd.f32 0.0, %v2828
    %v2830 = vpop.f32.mrb[0].mxu0
    %2831 = vdwg.mxu0
    %v2832 = vadd.f32 %v2824, %v510
    %v2833 = vadd.f32 %v2829, %v510
    %v2836 = vcombine.high %v2832, %v2832
    %v2838 = vunpack.c.l.s4 1966171168
    %v2839 = vunpack.c.0.s8 %v2838
    %v2840 = vlaneseq
    %v2841 = vshrl.u32 %v2840, 7
    %v2842 = vsub.s32 %v2839, %v2841
    %v2843 = vrot.slane %v2832, %v2842
    %v2845 = vunpack.c.l.s4 1966171168
    %v2846 = vunpack.c.0.s8 %v2845
    %v2847 = vlaneseq
    %v2848 = vshrl.u32 %v2847, 7
    %v2849 = vsub.s32 %v2846, %v2848
    %v2850 = vrot.slane %v2836, %v2849
    %v2851 = vcombine.high %v2843, %v2843
    %v2852 = vcombine.high %v2850, %v2850
    %v2854 = vunpack.c.l.s4 1966171168
    %v2855 = vunpack.c.0.s8 %v2854
    %v2856 = vlaneseq
    %v2857 = vshrl.u32 %v2856, 7
    %v2858 = vsub.s32 %v2855, %v2857
    %v2859 = vrot.slane %v2843, %v2858
    %v2861 = vunpack.c.l.s4 1966171168
    %v2862 = vunpack.c.0.s8 %v2861
    %v2863 = vlaneseq
    %v2864 = vshrl.u32 %v2863, 7
    %v2865 = vsub.s32 %v2862, %v2864
    %v2866 = vrot.slane %v2850, %v2865
    %v2868 = vunpack.c.l.s4 1966171168
    %v2869 = vunpack.c.0.s8 %v2868
    %v2870 = vlaneseq
    %v2871 = vshrl.u32 %v2870, 7
    %v2872 = vsub.s32 %v2869, %v2871
    %v2873 = vrot.slane %v2851, %v2872
    %v2875 = vunpack.c.l.s4 1966171168
    %v2876 = vunpack.c.0.s8 %v2875
    %v2877 = vlaneseq
    %v2878 = vshrl.u32 %v2877, 7
    %v2879 = vsub.s32 %v2876, %v2878
    %v2880 = vrot.slane %v2852, %v2879
    %v2881 = vcombine.high %v2859, %v2859
    %v2882 = vcombine.high %v2866, %v2866
    %v2883 = vcombine.high %v2873, %v2873
    %v2884 = vcombine.high %v2880, %v2880
    %v2885 = vcombine.high %v2833, %v2833
    %v2887 = vunpack.c.l.s4 1966171168
    %v2888 = vunpack.c.0.s8 %v2887
    %v2889 = vlaneseq
    %v2890 = vshrl.u32 %v2889, 7
    %v2891 = vsub.s32 %v2888, %v2890
    %v2892 = vrot.slane %v2833, %v2891
    %v2894 = vunpack.c.l.s4 1966171168
    %v2895 = vunpack.c.0.s8 %v2894
    %v2896 = vlaneseq
    %v2897 = vshrl.u32 %v2896, 7
    %v2898 = vsub.s32 %v2895, %v2897
    %v2899 = vrot.slane %v2885, %v2898
    %v2900 = vcombine.high %v2892, %v2892
    %v2901 = vcombine.high %v2899, %v2899
    %v2903 = vunpack.c.l.s4 1966171168
    %v2904 = vunpack.c.0.s8 %v2903
    %v2905 = vlaneseq
    %v2906 = vshrl.u32 %v2905, 7
    %v2907 = vsub.s32 %v2904, %v2906
    %v2908 = vrot.slane %v2892, %v2907
    %v2910 = vunpack.c.l.s4 1966171168
    %v2911 = vunpack.c.0.s8 %v2910
    %v2912 = vlaneseq
    %v2913 = vshrl.u32 %v2912, 7
    %v2914 = vsub.s32 %v2911, %v2913
    %v2915 = vrot.slane %v2899, %v2914
    %v2917 = vunpack.c.l.s4 1966171168
    %v2918 = vunpack.c.0.s8 %v2917
    %v2919 = vlaneseq
    %v2920 = vshrl.u32 %v2919, 7
    %v2921 = vsub.s32 %v2918, %v2920
    %v2922 = vrot.slane %v2900, %v2921
    %v2924 = vunpack.c.l.s4 1966171168
    %v2925 = vunpack.c.0.s8 %v2924
    %v2926 = vlaneseq
    %v2927 = vshrl.u32 %v2926, 7
    %v2928 = vsub.s32 %v2925, %v2927
    %v2929 = vrot.slane %v2901, %v2928
    %v2930 = vcombine.high %v2908, %v2908
    %v2931 = vcombine.high %v2915, %v2915
    %v2932 = vcombine.high %v2922, %v2922
    %v2933 = vcombine.high %v2929, %v2929
    %v2934 = vlaneseq
    %v2935 = vshrl.u32 %v2934, 7
    %v2936 = vsub.s32 0, %v2935
    %v2937 = vrot.slane %v2859, %v2936
    %v2938 = vlaneseq
    %v2939 = vshrl.u32 %v2938, 7
    %v2940 = vsub.s32 0, %v2939
    %v2941 = vrot.slane %v2873, %v2940
    %v2942 = vlaneseq
    %v2943 = vshrl.u32 %v2942, 7
    %v2944 = vsub.s32 0, %v2943
    %v2945 = vrot.slane %v2881, %v2944
    %v2946 = vlaneseq
    %v2947 = vshrl.u32 %v2946, 7
    %v2948 = vsub.s32 0, %v2947
    %v2949 = vrot.slane %v2883, %v2948
    %v2950 = vlaneseq
    %v2951 = vshrl.u32 %v2950, 7
    %v2952 = vsub.s32 0, %v2951
    %v2953 = vrot.slane %v2866, %v2952
    %v2954 = vlaneseq
    %v2955 = vshrl.u32 %v2954, 7
    %v2956 = vsub.s32 0, %v2955
    %v2957 = vrot.slane %v2880, %v2956
    %v2958 = vlaneseq
    %v2959 = vshrl.u32 %v2958, 7
    %v2960 = vsub.s32 0, %v2959
    %v2961 = vrot.slane %v2882, %v2960
    %v2962 = vlaneseq
    %v2963 = vshrl.u32 %v2962, 7
    %v2964 = vsub.s32 0, %v2963
    %v2965 = vrot.slane %v2884, %v2964
    %v2966 = vlaneseq
    %v2967 = vshrl.u32 %v2966, 7
    %v2968 = vsub.s32 0, %v2967
    %v2969 = vrot.slane %v2908, %v2968
    %v2970 = vlaneseq
    %v2971 = vshrl.u32 %v2970, 7
    %v2972 = vsub.s32 0, %v2971
    %v2973 = vrot.slane %v2922, %v2972
    %v2974 = vlaneseq
    %v2975 = vshrl.u32 %v2974, 7
    %v2976 = vsub.s32 0, %v2975
    %v2977 = vrot.slane %v2930, %v2976
    %v2978 = vlaneseq
    %v2979 = vshrl.u32 %v2978, 7
    %v2980 = vsub.s32 0, %v2979
    %v2981 = vrot.slane %v2932, %v2980
    %v2982 = vlaneseq
    %v2983 = vshrl.u32 %v2982, 7
    %v2984 = vsub.s32 0, %v2983
    %v2985 = vrot.slane %v2915, %v2984
    %v2986 = vlaneseq
    %v2987 = vshrl.u32 %v2986, 7
    %v2988 = vsub.s32 0, %v2987
    %v2989 = vrot.slane %v2929, %v2988
    %v2990 = vlaneseq
    %v2991 = vshrl.u32 %v2990, 7
    %v2992 = vsub.s32 0, %v2991
    %v2993 = vrot.slane %v2931, %v2992
    %v2994 = vlaneseq
    %v2995 = vshrl.u32 %v2994, 7
    %v2996 = vsub.s32 0, %v2995
    %v2997 = vrot.slane %v2933, %v2996
    %v3014 = vmul.f32 %v204, %v2937
    %v3015 = vmul.f32 %v211, %v2941
    %v3016 = vmul.f32 %v218, %v2945
    %v3017 = vmul.f32 %v225, %v2949
    %v3018 = vmul.f32 %v232, %v2953
    %v3019 = vmul.f32 %v239, %v2957
    %v3020 = vmul.f32 %v246, %v2961
    %v3021 = vmul.f32 %v253, %v2965
    %v3022 = vmul.f32 %v260, %v2969
    %v3023 = vmul.f32 %v267, %v2973
    %v3024 = vmul.f32 %v274, %v2977
    %v3025 = vmul.f32 %v281, %v2981
    %v3026 = vmul.f32 %v288, %v2985
    %v3027 = vmul.f32 %v295, %v2989
    %v3028 = vmul.f32 %v302, %v2993
    %v3029 = vmul.f32 %v309, %v2997
    %v3030 = vsel %vm424, %v3014, 0.0
    %v3031 = vsel %vm424, %v3015, 0.0
    %v3032 = vadd.f32 %v3030, %v3031
    %v3033 = vsel %vm424, %v3016, 0.0
    %v3034 = vadd.f32 %v3032, %v3033
    %v3035 = vsel %vm424, %v3017, 0.0
    %v3036 = vadd.f32 %v3034, %v3035
    %v3037 = vsel %vm424, %v3018, 0.0
    %v3038 = vadd.f32 %v3036, %v3037
    %v3039 = vsel %vm424, %v3019, 0.0
    %v3040 = vadd.f32 %v3038, %v3039
    %v3041 = vsel %vm424, %v3020, 0.0
    %v3042 = vadd.f32 %v3040, %v3041
    %v3043 = vsel %vm424, %v3021, 0.0
    %v3044 = vadd.f32 %v3042, %v3043
    %v3045 = vsel %vm424, %v3022, 0.0
    %v3046 = vsel %vm424, %v3023, 0.0
    %v3047 = vadd.f32 %v3045, %v3046
    %v3048 = vsel %vm424, %v3024, 0.0
    %v3049 = vadd.f32 %v3047, %v3048
    %v3050 = vsel %vm424, %v3025, 0.0
    %v3051 = vadd.f32 %v3049, %v3050
    %v3052 = vsel %vm424, %v3026, 0.0
    %v3053 = vadd.f32 %v3051, %v3052
    %v3054 = vsel %vm424, %v3027, 0.0
    %v3055 = vadd.f32 %v3053, %v3054
    %v3056 = vsel %vm424, %v3028, 0.0
    %v3057 = vadd.f32 %v3055, %v3056
    %v3058 = vsel %vm424, %v3029, 0.0
    %v3059 = vadd.f32 %v3057, %v3058
    %v3060 = vmul.f32 %v316, %v2937
    %v3061 = vmul.f32 %v323, %v2941
    %v3062 = vmul.f32 %v330, %v2945
    %v3063 = vmul.f32 %v337, %v2949
    %v3064 = vmul.f32 %v344, %v2953
    %v3065 = vmul.f32 %v351, %v2957
    %v3066 = vmul.f32 %v358, %v2961
    %v3067 = vmul.f32 %v365, %v2965
    %v3068 = vmul.f32 %v372, %v2969
    %v3069 = vmul.f32 %v379, %v2973
    %v3070 = vmul.f32 %v386, %v2977
    %v3071 = vmul.f32 %v393, %v2981
    %v3072 = vmul.f32 %v400, %v2985
    %v3073 = vmul.f32 %v407, %v2989
    %v3074 = vmul.f32 %v414, %v2993
    %v3075 = vmul.f32 %v421, %v2997
    %v3076 = vsel %vm756, %v3060, 0.0
    %v3077 = vsel %vm756, %v3061, 0.0
    %v3078 = vadd.f32 %v3076, %v3077
    %v3079 = vsel %vm756, %v3062, 0.0
    %v3080 = vadd.f32 %v3078, %v3079
    %v3081 = vsel %vm756, %v3063, 0.0
    %v3082 = vadd.f32 %v3080, %v3081
    %v3083 = vsel %vm756, %v3064, 0.0
    %v3084 = vadd.f32 %v3082, %v3083
    %v3085 = vsel %vm756, %v3065, 0.0
    %v3086 = vadd.f32 %v3084, %v3085
    %v3087 = vsel %vm756, %v3066, 0.0
    %v3088 = vadd.f32 %v3086, %v3087
    %v3089 = vsel %vm756, %v3067, 0.0
    %v3090 = vadd.f32 %v3088, %v3089
    %v3091 = vsel %vm756, %v3068, 0.0
    %v3092 = vsel %vm756, %v3069, 0.0
    %v3093 = vadd.f32 %v3091, %v3092
    %v3094 = vsel %vm756, %v3070, 0.0
    %v3095 = vadd.f32 %v3093, %v3094
    %v3096 = vsel %vm756, %v3071, 0.0
    %v3097 = vadd.f32 %v3095, %v3096
    %v3098 = vsel %vm756, %v3072, 0.0
    %v3099 = vadd.f32 %v3097, %v3098
    %v3100 = vsel %vm756, %v3073, 0.0
    %v3101 = vadd.f32 %v3099, %v3100
    %v3102 = vsel %vm756, %v3074, 0.0
    %v3103 = vadd.f32 %v3101, %v3102
    %v3104 = vsel %vm756, %v3075, 0.0
    %v3105 = vadd.f32 %v3103, %v3104
    %v3106 = vsel %vm424, %v3044, %v3090
    %v3107 = vsel %vm424, %v3059, %v3105
    %v3109 = vsel %vm795, %v3106, 0
    %v3112 = vsel %vm795, %v3107, 0
    %3114 = vmatprep.subr.mxu0 0.0
    %3115 = vmatpush1.msra.mxu0 %v118
    %3116 = vmatprep.subr.mxu0 0.0
    %3117 = vmatpush1.msra.mxu0 %v119
    %3118 = vmatprep.subr.mxu0 0.0
    %3119 = vmatpush1.msra.mxu0 %v120
    %3120 = vmatprep.subr.mxu0 0.0
    %3121 = vmatpush1.msra.mxu0 %v121
    %3122 = vmatprep.subr.mxu0 0.0
    %3123 = vmatpush1.msra.mxu0 %v122
    %3124 = vmatprep.subr.mxu0 0.0
    %3125 = vmatpush1.msra.mxu0 %v123
    %3126 = vmatprep.subr.mxu0 0.0
    %3127 = vmatpush1.msra.mxu0 %v124
    %3128 = vmatprep.subr.mxu0 0.0
    %3129 = vmatpush1.msra.mxu0 %v125
    %3130 = vmatprep.subr.mxu0 0.0
    %3131 = vmatpush1.msra.mxu0 0.0
    %3132 = vmatprep.subr.mxu0 0.0
    %3133 = vmatpush1.msra.mxu0 0.0
    %3134 = vmatprep.subr.mxu0 0.0
    %3135 = vmatpush1.msra.mxu0 0.0
    %3136 = vmatprep.subr.mxu0 0.0
    %3137 = vmatpush1.msra.mxu0 0.0
    %3138 = vmatprep.subr.mxu0 0.0
    %3139 = vmatpush1.msra.mxu0 0.0
    %3140 = vmatprep.subr.mxu0 0.0
    %3141 = vmatpush1.msra.mxu0 0.0
    %3142 = vmatprep.subr.mxu0 0.0
    %3143 = vmatpush1.msra.mxu0 0.0
    %3144 = vmatprep.subr.mxu0 0.0
    %3145 = vmatpush1.msra.mxu0 0.0
    %3146 = vmatprep.subr.mxu0 0.0
    %3147 = vmatpush1.msra.mxu0 0.0
    %3148 = vmatprep.subr.mxu0 0.0
    %3149 = vmatpush1.msra.mxu0 0.0
    %3150 = vmatprep.subr.mxu0 0.0
    %3151 = vmatpush1.msra.mxu0 0.0
    %3152 = vmatprep.subr.mxu0 0.0
    %3153 = vmatpush1.msra.mxu0 0.0
    %3154 = vmatprep.subr.mxu0 0.0
    %3155 = vmatpush1.msra.mxu0 0.0
    %3156 = vmatprep.subr.mxu0 0.0
    %3157 = vmatpush1.msra.mxu0 0.0
    %3158 = vmatprep.subr.mxu0 0.0
    %3159 = vmatpush1.msra.mxu0 0.0
    %3160 = vmatprep.subr.mxu0 0.0
    %3161 = vmatpush1.msra.mxu0 0.0
    %3162 = vmatprep.subr.mxu0 0.0
    %3163 = vmatpush1.msra.mxu0 0.0
    %3164 = vmatprep.subr.mxu0 0.0
    %3165 = vmatpush1.msra.mxu0 0.0
    %3166 = vmatprep.subr.mxu0 0.0
    %3167 = vmatpush1.msra.mxu0 0.0
    %3168 = vmatprep.subr.mxu0 0.0
    %3169 = vmatpush1.msra.mxu0 0.0
    %3170 = vmatprep.subr.mxu0 0.0
    %3171 = vmatpush1.msra.mxu0 0.0
    %3172 = vmatprep.subr.mxu0 0.0
    %3173 = vmatpush1.msra.mxu0 0.0
    %3174 = vmatprep.subr.mxu0 0.0
    %3175 = vmatpush1.msra.mxu0 0.0
    %3176 = vmatprep.subr.mxu0 0.0
    %3177 = vmatpush1.msra.mxu0 0.0
    %3178 = vmatprep.mubr.f32.mxu0 0.0
    %3179 = vmatmul.mubr.f32.gmra.mrb[0].mxu0 %v3109
    %v3180 = vpop.f32.mrb[0].mxu0
    %v3181 = vadd.f32 %v793, %v3180
    %v3182 = vpop.f32.mrb[0].mxu0
    %3183 = vmatprep.mubr.f32.mxu0 0.0
    %3184 = vmatmul.mubr.f32.gmra.mrb[0].mxu0 %v3112
    %v3185 = vpop.f32.mrb[0].mxu0
    %v3186 = vadd.f32 %v793, %v3185
    %v3187 = vpop.f32.mrb[0].mxu0
    %3188 = vdwg.mxu0
    %3191 = vrot.lane.b32.xlu0 %v2824, 64
    %v3192 = vpop.permute.xlu0 %3191
    %3193 = vrot.lane.b32.xlu0 %v2829, 64
    %v3194 = vpop.permute.xlu0 %3193
    %v3197 = vadd.f32 %v3181, %v3192
    %v3198 = vadd.f32 %v3186, %v3194
    %v3199 = vxor.u32 %v3197, 2147483648
    %v3200 = vxor.u32 %v3198, 2147483648
    %v3201 = vmul.f32 %v3199, 1.442695
    %v3202 = vpow.pop %v3201
    %v3203 = vmul.f32 %v3200, 1.442695
    %v3204 = vpow.pop %v3203
    %v3205 = vadd.f32 %v3202, 1.0
    %v3206 = vadd.f32 %v3204, 1.0
    %v3207 = vrcp.pop %v3205
    %v3208 = vmul.f32 1.0, %v3207
    %v3209 = vrcp.pop %v3206
    %v3210 = vmul.f32 1.0, %v3209
    %v3213 = vmul.f32 %v3208, %v2750
    %v3214 = vmul.f32 %v3210, %v2752
    %v3216 = vsel %vm424, %v3213, 0
    %v3219 = vsel %vm424, %v3214, 0
    %3221 = vmatprep.subr.mxu0 0.0
    %3222 = vmatpush1.msra.mxu0 %v126
    %3223 = vmatprep.subr.mxu0 0.0
    %3224 = vmatpush1.msra.mxu0 %v127
    %3225 = vmatprep.subr.mxu0 0.0
    %3226 = vmatpush1.msra.mxu0 %v128
    %3227 = vmatprep.subr.mxu0 0.0
    %3228 = vmatpush1.msra.mxu0 %v129
    %3229 = vmatprep.subr.mxu0 0.0
    %3230 = vmatpush1.msra.mxu0 0.0
    %3231 = vmatprep.subr.mxu0 0.0
    %3232 = vmatpush1.msra.mxu0 0.0
    %3233 = vmatprep.subr.mxu0 0.0
    %3234 = vmatpush1.msra.mxu0 0.0
    %3235 = vmatprep.subr.mxu0 0.0
    %3236 = vmatpush1.msra.mxu0 0.0
    %3237 = vmatprep.subr.mxu0 0.0
    %3238 = vmatpush1.msra.mxu0 0.0
    %3239 = vmatprep.subr.mxu0 0.0
    %3240 = vmatpush1.msra.mxu0 0.0
    %3241 = vmatprep.subr.mxu0 0.0
    %3242 = vmatpush1.msra.mxu0 0.0
    %3243 = vmatprep.subr.mxu0 0.0
    %3244 = vmatpush1.msra.mxu0 0.0
    %3245 = vmatprep.subr.mxu0 0.0
    %3246 = vmatpush1.msra.mxu0 0.0
    %3247 = vmatprep.subr.mxu0 0.0
    %3248 = vmatpush1.msra.mxu0 0.0
    %3249 = vmatprep.subr.mxu0 0.0
    %3250 = vmatpush1.msra.mxu0 0.0
    %3251 = vmatprep.subr.mxu0 0.0
    %3252 = vmatpush1.msra.mxu0 0.0
    %3253 = vmatprep.subr.mxu0 0.0
    %3254 = vmatpush1.msra.mxu0 0.0
    %3255 = vmatprep.subr.mxu0 0.0
    %3256 = vmatpush1.msra.mxu0 0.0
    %3257 = vmatprep.subr.mxu0 0.0
    %3258 = vmatpush1.msra.mxu0 0.0
    %3259 = vmatprep.subr.mxu0 0.0
    %3260 = vmatpush1.msra.mxu0 0.0
    %3261 = vmatprep.subr.mxu0 0.0
    %3262 = vmatpush1.msra.mxu0 0.0
    %3263 = vmatprep.subr.mxu0 0.0
    %3264 = vmatpush1.msra.mxu0 0.0
    %3265 = vmatprep.subr.mxu0 0.0
    %3266 = vmatpush1.msra.mxu0 0.0
    %3267 = vmatprep.subr.mxu0 0.0
    %3268 = vmatpush1.msra.mxu0 0.0
    %3269 = vmatprep.subr.mxu0 0.0
    %3270 = vmatpush1.msra.mxu0 0.0
    %3271 = vmatprep.subr.mxu0 0.0
    %3272 = vmatpush1.msra.mxu0 0.0
    %3273 = vmatprep.subr.mxu0 0.0
    %3274 = vmatpush1.msra.mxu0 0.0
    %3275 = vmatprep.subr.mxu0 0.0
    %3276 = vmatpush1.msra.mxu0 0.0
    %3277 = vmatprep.subr.mxu0 0.0
    %3278 = vmatpush1.msra.mxu0 0.0
    %3279 = vmatprep.subr.mxu0 0.0
    %3280 = vmatpush1.msra.mxu0 0.0
    %3281 = vmatprep.subr.mxu0 0.0
    %3282 = vmatpush1.msra.mxu0 0.0
    %3283 = vmatprep.subr.mxu0 0.0
    %3284 = vmatpush1.msra.mxu0 0.0
    %3285 = vmatprep.mubr.f32.mxu0 0.0
    %3286 = vmatmul.mubr.f32.gmra.mrb[0].mxu0 %v3216
    %v3287 = vpop.f32.mrb[0].mxu0
    %v3288 = vadd.f32 0.0, %v3287
    %v3289 = vpop.f32.mrb[0].mxu0
    %3290 = vmatprep.mubr.f32.mxu0 0.0
    %3291 = vmatmul.mubr.f32.gmra.mrb[0].mxu0 %v3219
    %v3292 = vpop.f32.mrb[0].mxu0
    %v3293 = vadd.f32 0.0, %v3292
    %v3294 = vpop.f32.mrb[0].mxu0
    %3295 = vdwg.mxu0
    %3298 = vrot.lane.b32.xlu0 %v3288, 64
    %v3299 = vpop.permute.xlu0 %3298
    %3300 = vrot.lane.b32.xlu0 %v3293, 64
    %v3301 = vpop.permute.xlu0 %3300
    %v3304 = vadd.f32 %v3181, %v3299
    %v3305 = vadd.f32 %v3186, %v3301
    %v3306 = vtanh.pop %v3304
    %v3307 = vtanh.pop %v3305
    %v3308 = vsub.f32 1.0, %v3208
    %v3309 = vsub.f32 1.0, %v3210
    %v3310 = vmul.f32 %v3308, %v2745
    %v3311 = vmul.f32 %v3309, %v2746
    %3314 = vrot.lane.b32.xlu0 %v3306, 96
    %v3315 = vpop.permute.xlu0 %3314
    %3316 = vrot.lane.b32.xlu0 %v3307, 96
    %v3317 = vpop.permute.xlu0 %3316
    %v3320 = vmul.f32 %v3208, %v3315
    %v3321 = vmul.f32 %v3210, %v3317
    %v3322 = vadd.f32 %v3310, %v3320
    %v3323 = vadd.f32 %v3311, %v3321
    %v3324 = vld [vmem:[#allocation7] sm:$0xff]
    %v3325 = vld [vmem:[#allocation7 + $0x8] sm:$0xff]
    %3328 = vrot.lane.b32.xlu0 %v3322, 96
    %v3329 = vpop.permute.xlu0 %3328
    %3330 = vrot.lane.b32.xlu0 %v3323, 96
    %v3331 = vpop.permute.xlu0 %3330
    %3336 = vrot.lane.b32.xlu0 %v3324, 32
    %v3337 = vpop.permute.xlu0 %3336
    %3338 = vrot.lane.b32.xlu0 %v3325, 32
    %v3339 = vpop.permute.xlu0 %3338
    %v3342 = vsel %vm424, %v3329, %v3337
    %v3343 = vsel %vm424, %v3331, %v3339
    %v3344 = vld [vmem:[%s8] sm:$0xff]
    %v3345 = vld [vmem:[%s8 + $0x8] sm:$0xff]
    %v3346 = vld [vmem:[%s8 + $0x10] sm:$0xff]
    %v3347 = vld [vmem:[%s8 + $0x18] sm:$0xff]
    %v3348 = vld [vmem:[%s8 + $0x20] sm:$0xff]
    %v3349 = vld [vmem:[%s8 + $0x28] sm:$0xff]
    %v3350 = vld [vmem:[%s8 + $0x30] sm:$0xff]
    %v3351 = vld [vmem:[%s8 + $0x38] sm:$0xff]
    %v3352 = vld [vmem:[%s8 + $0x40] sm:$0xff]
    %v3353 = vld [vmem:[%s8 + $0x48] sm:$0xff]
    %v3354 = vld [vmem:[%s8 + $0x50] sm:$0xff]
    %v3355 = vld [vmem:[%s8 + $0x58] sm:$0x3]
    %v3356 = vld [vmem:[#allocation8] sm:$0x1]
    %v3358 = vlaneseq
    %v3359 = vshrl.u32 %v3358, 7
    %v3360 = vsub.s32 0, %v3359
    %v3361 = vrot.slane %v3356, %v3360
    %vm3363 = vcmask 736256
    %v3365 = vsel %vm3363, %v3342, 0
    %v3368 = vsel %vm3363, %v3343, 0
    %vm3370 = vcmask 1041408
    %v3372 = vsel %vm3370, %v3355, 0
    %3374 = vmatprep.subr.mxu0 0.0
    %3375 = vmatpush1.msra.mxu0 %v3344
    %3376 = vmatprep.subr.mxu0 0.0
    %3377 = vmatpush1.msra.mxu0 %v3345
    %3378 = vmatprep.subr.mxu0 0.0
    %3379 = vmatpush1.msra.mxu0 %v3346
    %3380 = vmatprep.subr.mxu0 0.0
    %3381 = vmatpush1.msra.mxu0 %v3347
    %3382 = vmatprep.subr.mxu0 0.0
    %3383 = vmatpush1.msra.mxu0 %v3348
    %3384 = vmatprep.subr.mxu0 0.0
    %3385 = vmatpush1.msra.mxu0 %v3349
    %3386 = vmatprep.subr.mxu0 0.0
    %3387 = vmatpush1.msra.mxu0 %v3350
    %3388 = vmatprep.subr.mxu0 0.0
    %3389 = vmatpush1.msra.mxu0 %v3351
    %3390 = vmatprep.subr.mxu0 0.0
    %3391 = vmatpush1.msra.mxu0 %v3352
    %3392 = vmatprep.subr.mxu0 0.0
    %3393 = vmatpush1.msra.mxu0 %v3353
    %3394 = vmatprep.subr.mxu0 0.0
    %3395 = vmatpush1.msra.mxu0 %v3354
    %3396 = vmatprep.subr.mxu0 0.0
    %3397 = vmatpush1.msra.mxu0 %v3372
    %3398 = vmatprep.subr.mxu0 0.0
    %3399 = vmatpush1.msra.mxu0 0.0
    %3400 = vmatprep.subr.mxu0 0.0
    %3401 = vmatpush1.msra.mxu0 0.0
    %3402 = vmatprep.subr.mxu0 0.0
    %3403 = vmatpush1.msra.mxu0 0.0
    %3404 = vmatprep.subr.mxu0 0.0
    %3405 = vmatpush1.msra.mxu0 0.0
    %3406 = vmatprep.subr.mxu0 0.0
    %3407 = vmatpush1.msra.mxu0 0.0
    %3408 = vmatprep.subr.mxu0 0.0
    %3409 = vmatpush1.msra.mxu0 0.0
    %3410 = vmatprep.subr.mxu0 0.0
    %3411 = vmatpush1.msra.mxu0 0.0
    %3412 = vmatprep.subr.mxu0 0.0
    %3413 = vmatpush1.msra.mxu0 0.0
    %3414 = vmatprep.subr.mxu0 0.0
    %3415 = vmatpush1.msra.mxu0 0.0
    %3416 = vmatprep.subr.mxu0 0.0
    %3417 = vmatpush1.msra.mxu0 0.0
    %3418 = vmatprep.subr.mxu0 0.0
    %3419 = vmatpush1.msra.mxu0 0.0
    %3420 = vmatprep.subr.mxu0 0.0
    %3421 = vmatpush1.msra.mxu0 0.0
    %3422 = vmatprep.subr.mxu0 0.0
    %3423 = vmatpush1.msra.mxu0 0.0
    %3424 = vmatprep.subr.mxu0 0.0
    %3425 = vmatpush1.msra.mxu0 0.0
    %3426 = vmatprep.subr.mxu0 0.0
    %3427 = vmatpush1.msra.mxu0 0.0
    %3428 = vmatprep.subr.mxu0 0.0
    %3429 = vmatpush1.msra.mxu0 0.0
    %3430 = vmatprep.subr.mxu0 0.0
    %3431 = vmatpush1.msra.mxu0 0.0
    %3432 = vmatprep.subr.mxu0 0.0
    %3433 = vmatpush1.msra.mxu0 0.0
    %3434 = vmatprep.subr.mxu0 0.0
    %3435 = vmatpush1.msra.mxu0 0.0
    %3436 = vmatprep.subr.mxu0 0.0
    %3437 = vmatpush1.msra.mxu0 0.0
    %3438 = vmatprep.mubr.f32.mxu0 0.0
    %3439 = vmatmul.mubr.f32.gmra.mrb[0].mxu0 %v3365
    %v3440 = vpop.f32.mrb[0].mxu0
    %v3441 = vadd.f32 %v3361, %v3440
    %v3442 = vpop.f32.mrb[0].mxu0
    %3443 = vmatprep.mubr.f32.mxu0 0.0
    %3444 = vmatmul.mubr.f32.gmra.mrb[0].mxu0 %v3368
    %v3445 = vpop.f32.mrb[0].mxu0
    %v3446 = vadd.f32 %v3361, %v3445
    %v3447 = vpop.f32.mrb[0].mxu0
    %3448 = vdwg.mxu0
    %v3449 = vtanh.pop %v3441
    %v3450 = vtanh.pop %v3446
    %v3451 = vld [vmem:[%s10] sm:$0xff]
    %v3452 = vld [vmem:[%s10 + $0x8] sm:$0xff]
    %v3453 = vld [vmem:[%s10 + $0x10] sm:$0xff]
    %v3454 = vld [vmem:[%s10 + $0x18] sm:$0xff]
    %v3455 = vld [vmem:[%s11] sm:$0x1]
    %v3457 = vlaneseq
    %v3458 = vshrl.u32 %v3457, 7
    %v3459 = vsub.s32 0, %v3458
    %v3460 = vrot.slane %v3455, %v3459
    %v3463 = vsel %vm424, %v3449, 0
    %v3466 = vsel %vm424, %v3450, 0
    %3468 = vmatprep.subr.mxu0 0.0
    %3469 = vmatpush1.msra.mxu0 %v3451
    %3470 = vmatprep.subr.mxu0 0.0
    %3471 = vmatpush1.msra.mxu0 %v3452
    %3472 = vmatprep.subr.mxu0 0.0
    %3473 = vmatpush1.msra.mxu0 %v3453
    %3474 = vmatprep.subr.mxu0 0.0
    %3475 = vmatpush1.msra.mxu0 %v3454
    %3476 = vmatprep.subr.mxu0 0.0
    %3477 = vmatpush1.msra.mxu0 0.0
    %3478 = vmatprep.subr.mxu0 0.0
    %3479 = vmatpush1.msra.mxu0 0.0
    %3480 = vmatprep.subr.mxu0 0.0
    %3481 = vmatpush1.msra.mxu0 0.0
    %3482 = vmatprep.subr.mxu0 0.0
    %3483 = vmatpush1.msra.mxu0 0.0
    %3484 = vmatprep.subr.mxu0 0.0
    %3485 = vmatpush1.msra.mxu0 0.0
    %3486 = vmatprep.subr.mxu0 0.0
    %3487 = vmatpush1.msra.mxu0 0.0
    %3488 = vmatprep.subr.mxu0 0.0
    %3489 = vmatpush1.msra.mxu0 0.0
    %3490 = vmatprep.subr.mxu0 0.0
    %3491 = vmatpush1.msra.mxu0 0.0
    %3492 = vmatprep.subr.mxu0 0.0
    %3493 = vmatpush1.msra.mxu0 0.0
    %3494 = vmatprep.subr.mxu0 0.0
    %3495 = vmatpush1.msra.mxu0 0.0
    %3496 = vmatprep.subr.mxu0 0.0
    %3497 = vmatpush1.msra.mxu0 0.0
    %3498 = vmatprep.subr.mxu0 0.0
    %3499 = vmatpush1.msra.mxu0 0.0
    %3500 = vmatprep.subr.mxu0 0.0
    %3501 = vmatpush1.msra.mxu0 0.0
    %3502 = vmatprep.subr.mxu0 0.0
    %3503 = vmatpush1.msra.mxu0 0.0
    %3504 = vmatprep.subr.mxu0 0.0
    %3505 = vmatpush1.msra.mxu0 0.0
    %3506 = vmatprep.subr.mxu0 0.0
    %3507 = vmatpush1.msra.mxu0 0.0
    %3508 = vmatprep.subr.mxu0 0.0
    %3509 = vmatpush1.msra.mxu0 0.0
    %3510 = vmatprep.subr.mxu0 0.0
    %3511 = vmatpush1.msra.mxu0 0.0
    %3512 = vmatprep.subr.mxu0 0.0
    %3513 = vmatpush1.msra.mxu0 0.0
    %3514 = vmatprep.subr.mxu0 0.0
    %3515 = vmatpush1.msra.mxu0 0.0
    %3516 = vmatprep.subr.mxu0 0.0
    %3517 = vmatpush1.msra.mxu0 0.0
    %3518 = vmatprep.subr.mxu0 0.0
    %3519 = vmatpush1.msra.mxu0 0.0
    %3520 = vmatprep.subr.mxu0 0.0
    %3521 = vmatpush1.msra.mxu0 0.0
    %3522 = vmatprep.subr.mxu0 0.0
    %3523 = vmatpush1.msra.mxu0 0.0
    %3524 = vmatprep.subr.mxu0 0.0
    %3525 = vmatpush1.msra.mxu0 0.0
    %3526 = vmatprep.subr.mxu0 0.0
    %3527 = vmatpush1.msra.mxu0 0.0
    %3528 = vmatprep.subr.mxu0 0.0
    %3529 = vmatpush1.msra.mxu0 0.0
    %3530 = vmatprep.subr.mxu0 0.0
    %3531 = vmatpush1.msra.mxu0 0.0
    %3532 = vmatprep.mubr.f32.mxu0 0.0
    %3533 = vmatmul.mubr.f32.gmra.mrb[0].mxu0 %v3463
    %v3534 = vpop.f32.mrb[0].mxu0
    %v3535 = vadd.f32 %v3460, %v3534
    %v3536 = vpop.f32.mrb[0].mxu0
    %3537 = vmatprep.mubr.f32.mxu0 0.0
    %3538 = vmatmul.mubr.f32.gmra.mrb[0].mxu0 %v3466
    %v3539 = vpop.f32.mrb[0].mxu0
    %v3540 = vadd.f32 %v3460, %v3539
    %v3541 = vpop.f32.mrb[0].mxu0
    %3542 = vdwg.mxu0
    %v3543 = vsel %vm424, %v3535, 0.0
    %v3544 = vrot.slane %v3543, 4
    %v3545 = vadd.f32 %v3543, %v3544
    %v3546 = vrot.slane %v3545, 2
    %v3547 = vadd.f32 %v3545, %v3546
    %v3548 = vrot.slane %v3547, 1
    %v3549 = vadd.f32 %v3547, %v3548
    %v3550 = vsel %vm424, %v3540, 0.0
    %v3551 = vrot.slane %v3550, 4
    %v3552 = vadd.f32 %v3550, %v3551
    %v3553 = vrot.slane %v3552, 2
    %v3554 = vadd.f32 %v3552, %v3553
    %v3555 = vrot.slane %v3554, 1
    %v3556 = vadd.f32 %v3554, %v3555
    %v3557 = vld [vmem:[#allocation10] sm:$0xff]
    %v3558 = vld [vmem:[#allocation10 + $0x8] sm:$0xff]
    %v3559 = vld [vmem:[#allocation10 + $0x10] sm:$0xff]
    %v3560 = vld [vmem:[#allocation10 + $0x18] sm:$0xff]
    %v3561 = vld [vmem:[%s13] sm:$0x1]
    %v3563 = vlaneseq
    %v3564 = vshrl.u32 %v3563, 7
    %v3565 = vsub.s32 0, %v3564
    %v3566 = vrot.slane %v3561, %v3565
    %vm3570 = vcmask 1041409
    %v3571 = vsel %vm3570, %v3556, %v3549
    %v3572 = vsel %vm424, %v3571, 0
    %3574 = vmatprep.subr.mxu0 0.0
    %3575 = vmatpush1.msra.mxu0 %v3557
    %3576 = vmatprep.subr.mxu0 0.0
    %3577 = vmatpush1.msra.mxu0 %v3558
    %3578 = vmatprep.subr.mxu0 0.0
    %3579 = vmatpush1.msra.mxu0 %v3559
    %3580 = vmatprep.subr.mxu0 0.0
    %3581 = vmatpush1.msra.mxu0 %v3560
    %3582 = vmatprep.subr.mxu0 0.0
    %3583 = vmatpush1.msra.mxu0 0.0
    %3584 = vmatprep.subr.mxu0 0.0
    %3585 = vmatpush1.msra.mxu0 0.0
    %3586 = vmatprep.subr.mxu0 0.0
    %3587 = vmatpush1.msra.mxu0 0.0
    %3588 = vmatprep.subr.mxu0 0.0
    %3589 = vmatpush1.msra.mxu0 0.0
    %3590 = vmatprep.subr.mxu0 0.0
    %3591 = vmatpush1.msra.mxu0 0.0
    %3592 = vmatprep.subr.mxu0 0.0
    %3593 = vmatpush1.msra.mxu0 0.0
    %3594 = vmatprep.subr.mxu0 0.0
    %3595 = vmatpush1.msra.mxu0 0.0
    %3596 = vmatprep.subr.mxu0 0.0
    %3597 = vmatpush1.msra.mxu0 0.0
    %3598 = vmatprep.subr.mxu0 0.0
    %3599 = vmatpush1.msra.mxu0 0.0
    %3600 = vmatprep.subr.mxu0 0.0
    %3601 = vmatpush1.msra.mxu0 0.0
    %3602 = vmatprep.subr.mxu0 0.0
    %3603 = vmatpush1.msra.mxu0 0.0
    %3604 = vmatprep.subr.mxu0 0.0
    %3605 = vmatpush1.msra.mxu0 0.0
    %3606 = vmatprep.subr.mxu0 0.0
    %3607 = vmatpush1.msra.mxu0 0.0
    %3608 = vmatprep.subr.mxu0 0.0
    %3609 = vmatpush1.msra.mxu0 0.0
    %3610 = vmatprep.subr.mxu0 0.0
    %3611 = vmatpush1.msra.mxu0 0.0
    %3612 = vmatprep.subr.mxu0 0.0
    %3613 = vmatpush1.msra.mxu0 0.0
    %3614 = vmatprep.subr.mxu0 0.0
    %3615 = vmatpush1.msra.mxu0 0.0
    %3616 = vmatprep.subr.mxu0 0.0
    %3617 = vmatpush1.msra.mxu0 0.0
    %3618 = vmatprep.subr.mxu0 0.0
    %3619 = vmatpush1.msra.mxu0 0.0
    %3620 = vmatprep.subr.mxu0 0.0
    %3621 = vmatpush1.msra.mxu0 0.0
    %3622 = vmatprep.subr.mxu0 0.0
    %3623 = vmatpush1.msra.mxu0 0.0
    %3624 = vmatprep.subr.mxu0 0.0
    %3625 = vmatpush1.msra.mxu0 0.0
    %3626 = vmatprep.subr.mxu0 0.0
    %3627 = vmatpush1.msra.mxu0 0.0
    %3628 = vmatprep.subr.mxu0 0.0
    %3629 = vmatpush1.msra.mxu0 0.0
    %3630 = vmatprep.subr.mxu0 0.0
    %3631 = vmatpush1.msra.mxu0 0.0
    %3632 = vmatprep.subr.mxu0 0.0
    %3633 = vmatpush1.msra.mxu0 0.0
    %3634 = vmatprep.subr.mxu0 0.0
    %3635 = vmatpush1.msra.mxu0 0.0
    %3636 = vmatprep.subr.mxu0 0.0
    %3637 = vmatpush1.msra.mxu0 0.0
    %3638 = vmatprep.mubr.f32.mxu0 0.0
    %3639 = vmatmul.mubr.f32.gmra.mrb[0].mxu0 %v3572
    %v3640 = vpop.f32.mrb[0].mxu0
    %v3641 = vadd.f32 %v3566, %v3640
    %v3642 = vpop.f32.mrb[0].mxu0
    %3643 = vdwg.mxu0
    %3644 = vst [vmem:[#allocation11] sm:$0x3] %v3641
    // Predicated region
    $region78: #{tpu_custom_call.1} parent=1 // pred_check
      _
    $region79: #{tpu_custom_call.1} parent=1 // pred_check_branch
      %3646 = sbr.rel (0) target = $region81
    $region80: #{tpu_custom_call.1} parent=1 // pred_region
      %s3648 = ssub.s32 32, 32
      %3649 = vsyncadd [#allocation4], %s3648
      %s3651 = sshll.u32 [#allocation11], 4
      %s3652 = int_to_ptr.vmem [resolvable:$true] %s3651
      %3654 = dma.vmem_to_hbm [thread:$0]  %s3652, 32, %s14, [#allocation4]
    $region81: #{tpu_custom_call.1} parent=1 // pred_fallthru
      _
    // Predicated region
    $region82: #{tpu_custom_call.1} parent=1 // pred_check
      _
    $region83: #{tpu_custom_call.1} parent=1 // pred_check_branch
      %3656 = sbr.rel (0) target = $region85
    $region84: #{tpu_custom_call.1} parent=1 // pred_region
      %3657 = dma.done [#allocation4], 32
    $region85: #{tpu_custom_call.1} parent=1 // pred_fallthru
      _
    %3658 = vsyncpa [#allocation3], 1
    %3659 = vsyncpa [#allocation6], 1
    %3660 = vsyncpa [#allocation9], 1
    %3661 = vsyncpa [#allocation4], 1

</llo_original>
